<compile_context>
chip_gen: v7x
topology: tpu7x:2x2x1
jax: 0.10.0
libtpu: 0.0.40
codegen_flags: <defaults>
</compile_context>

<pallas_src>
import numpy as np
import jax
import jax.numpy as jnp
from jax import lax
from jax.experimental import pallas as pl
from jax.experimental.pallas import tpu as pltpu

IMG = 28      # input H = W
PAD_H = 40    # padded rows per image: 2 (pad) + 28 + 10 (pad; keeps 8-row windows in-bounds)
PAD_W = 32    # padded cols: 2 + 28 + 2


# ---------------------------------------------------------------------------
# Fused LeNet kernel (13 inputs, 1 output, no scratch; everything is values)
# ---------------------------------------------------------------------------
def _lenet_kernel(x_ref, w1_ref, b1_ref, pc1_ref, w2_ref, b2_ref, pc2_ref,
                  fc1_ref, fb1_ref, fc2_ref, fb2_ref, fc3_ref, fb3_ref, out_ref):
    f32 = jnp.float32
    N = out_ref.shape[1]          # batch size (static)
    W14 = N * 14                  # pool1 lanes per pooled row

    def shift_left(v, s):
        # out[:, i] = v[:, i + s] for the lanes we keep (wrapped tail lanes get
        # zero weight in the pool matrices, so they are harmless).
        return jnp.concatenate([v[:, s:], v[:, :s]], axis=1)

    # ---- stage 1: conv1(5x5, pad 2) + ReLU + avgpool 2x2, 4 output rows / group ----
    # raw[kw*32 + j*8 + co, n*32 + u] = sum_kh W1[co,kh,kw] * xpad[n, 4g+j+kh, u]
    p1_rows = []
    for g in range(7):                                    # 28 conv rows = 7 groups of 4
        band = jnp.concatenate(                           # (8, N*32): rows 4g..4g+7 per image
            [x_ref[n * PAD_H + 4 * g:n * PAD_H + 4 * g + 8, :] for n in range(N)],
            axis=1)
        raw = jnp.dot(w1_ref[...], band, preferred_element_type=f32)      # (160, N*32)
        acc = raw[0:32, :]
        for kw in range(1, 5):
            acc = acc + shift_left(raw[kw * 32:(kw + 1) * 32, :], kw)     # sum over kw
        relu = jnp.maximum(acc + b1_ref[...], 0.0)                        # (32, N*32)
        hsum0 = relu[0:8, :] + relu[8:16, :]                              # pooled row 2g
        hsum1 = relu[16:24, :] + relu[24:32, :]                           # pooled row 2g+1
        pooled = jnp.dot(jnp.concatenate([hsum0, hsum1], axis=1), pc1_ref[...],
                         preferred_element_type=f32)                      # (8, 2*N*14)
        p1_rows.append(pooled)
    p1 = jnp.concatenate(p1_rows, axis=1)                 # (8, 14*N*14): lane = h*14N + n*14 + w

    # ---- stage 2: conv2(5x5, valid) + ReLU + avgpool 2x2, all 5 pooled rows at once ----
    band2 = jnp.concatenate(                              # (48, 5*N*14): sublane = kh6*8 + ci
        [jnp.concatenate([p1[:, (2 * ho2 + kh6) * W14:(2 * ho2 + kh6 + 1) * W14]
                          for ho2 in range(5)], axis=1)
         for kh6 in range(6)],
        axis=0)
    raw2 = jnp.dot(w2_ref[...], band2, preferred_element_type=f32)        # (160, 5*N*14)
    acc2 = raw2[0:32, :]
    for kw in range(1, 5):
        acc2 = acc2 + shift_left(raw2[kw * 32:(kw + 1) * 32, :], kw)
    relu2 = jnp.maximum(acc2 + b2_ref[...], 0.0)                          # (32, 5*N*14)
    hsum2 = relu2[0:16, :] + relu2[16:32, :]                              # (16, 5*N*14)
    pooled2 = jnp.dot(hsum2, pc2_ref[...], preferred_element_type=f32)    # (16, 25*N)

    # torch NCHW flatten: acts[(h*5+w)*16 + c, n] = pool2[n, c, h, w]
    acts = jnp.concatenate([pooled2[:, p * N:(p + 1) * N] for p in range(25)],
                           axis=0)                                        # (400, N)

    # ---- stage 3: fully-connected stack in (features, batch) orientation ----
    y1 = jnp.maximum(jnp.dot(fc1_ref[...], acts, preferred_element_type=f32)
                     + fb1_ref[...], 0.0)                                 # (120, N)
    y2 = jnp.maximum(jnp.dot(fc2_ref[...], y1, preferred_element_type=f32)
                     + fb2_ref[...], 0.0)                                 # (84, N)
    out_ref[...] = (jnp.dot(fc3_ref[...], y2, preferred_element_type=f32)
                    + fb3_ref[...])                                       # (10, N)


# ---------------------------------------------------------------------------
# Wrappers
# ---------------------------------------------------------------------------
@jax.jit
def lenet_forward(prepared, x_nchw):
    n, c, h, w = x_nchw.shape
    assert (c, h, w) == (1, IMG, IMG), "LeNet expects 1x28x28 inputs"
    # conv1's zero padding (pad=2) done in XLA; extra bottom pad keeps every
    # 8-row window of the kernel's band reads in-bounds.
    xp = jnp.pad(x_nchw[:, 0].astype(jnp.float32),
                 ((0, 0), (2, PAD_H - IMG - 2), (2, 2))).reshape(n * PAD_H, PAD_W)
    vmem = pl.BlockSpec(memory_space=pltpu.MemorySpace.VMEM)
    out_t = pl.pallas_call(
        _lenet_kernel,
        out_shape=jax.ShapeDtypeStruct((10, n), jnp.float32),
        in_specs=[vmem] * 13,
        out_specs=vmem,
    )(xp,
      prepared["w1s"], prepared["b1s"], prepared["pc1"],
      prepared["w2s"], prepared["b2s"], prepared["pc2"],
      prepared["fc1"], prepared["fb1"],
      prepared["fc2"], prepared["fb2"],
      prepared["fc3"], prepared["fb3"])
    return out_t.T                                                        # (N, 10)


def prepare_params(params, n_img):
    """Pack PyTorch-layout LeNet parameters into kernel-ready matrices (run once)."""
    f32 = np.float32
    N = n_img

    # conv1 -> (160, 8): row = kw*32 + j*8 + co (j = row within a group of 4), col = j + kh
    w1 = np.asarray(params["conv1_w"], f32).reshape(6, 5, 5)              # [co, kh, kw]
    w1s = np.zeros((160, 8), f32)
    for kw in range(5):
        for j in range(4):
            for kh in range(5):
                w1s[kw * 32 + j * 8:kw * 32 + j * 8 + 6, j + kh] = w1[:, kh, kw]
    b1s = np.tile(np.pad(np.asarray(params["conv1_b"], f32), (0, 2)), 4).reshape(32, 1)

    # conv1 pool matrix: lane q*32N + n*32 + x  ->  lane q*14N + n*14 + w  (x in {2w, 2w+1})
    pc1 = np.zeros((2 * N * 32, 2 * N * 14), f32)
    for q in range(2):
        for n in range(N):
            for w in range(14):
                pc1[q * N * 32 + n * 32 + 2 * w, q * N * 14 + n * 14 + w] = 0.25
                pc1[q * N * 32 + n * 32 + 2 * w + 1, q * N * 14 + n * 14 + w] = 0.25

    # conv2 -> (160, 48): row = kw*32 + dr*16 + co, col = (dr + kh)*8 + ci
    w2 = np.asarray(params["conv2_w"], f32)                               # [co, ci, kh, kw]
    w2s = np.zeros((160, 48), f32)
    for kw in range(5):
        for dr in range(2):
            for kh in range(5):
                for ci in range(6):
                    w2s[kw * 32 + dr * 16:kw * 32 + dr * 16 + 16,
                        (dr + kh) * 8 + ci] = w2[:, ci, kh, kw]
    b2s = np.tile(np.asarray(params["conv2_b"], f32), 2).reshape(32, 1)

    # conv2 pool matrix: lane ho2*14N + n*14 + x  ->  lane (ho2*5 + w)*N + n
    pc2 = np.zeros((5 * N * 14, 25 * N), f32)
    for ho2 in range(5):
        for n in range(N):
            for w in range(5):
                pc2[ho2 * N * 14 + n * 14 + 2 * w, (ho2 * 5 + w) * N + n] = 0.25
                pc2[ho2 * N * 14 + n * 14 + 2 * w + 1, (ho2 * 5 + w) * N + n] = 0.25

    # fc1: bake torch NCHW flatten (c*25 + h*5 + w) into column order (h*5 + w)*16 + c
    fc1 = np.asarray(params["fc1_w"], f32).reshape(120, 16, 5, 5)
    fc1p = np.transpose(fc1, (0, 2, 3, 1)).reshape(120, 400)

    jn = lambda a: jnp.asarray(a, jnp.float32)
    return {
        "w1s": jn(w1s), "b1s": jn(b1s), "pc1": jn(pc1),
        "w2s": jn(w2s), "b2s": jn(b2s), "pc2": jn(pc2),
        "fc1": jn(fc1p), "fb1": jn(np.asarray(params["fc1_b"], f32).reshape(120, 1)),
        "fc2": jn(np.asarray(params["fc2_w"], f32)),
        "fb2": jn(np.asarray(params["fc2_b"], f32).reshape(84, 1)),
        "fc3": jn(np.asarray(params["fc3_w"], f32)),
        "fb3": jn(np.asarray(params["fc3_b"], f32).reshape(10, 1)),
    }


def init_params(key):
    """Synthetic test parameters in PyTorch layout (OIHW convs, (out,in) linears)."""
    ks = jax.random.split(key, 10)
    s = 0.1
    return {
        "conv1_w": s * jax.random.normal(ks[0], (6, 1, 5, 5), jnp.float32),
        "conv1_b": 0.05 * jax.random.normal(ks[1], (6,), jnp.float32),
        "conv2_w": s * jax.random.normal(ks[2], (16, 6, 5, 5), jnp.float32),
        "conv2_b": 0.05 * jax.random.normal(ks[3], (16,), jnp.float32),
        "fc1_w": s * jax.random.normal(ks[4], (120, 400), jnp.float32),
        "fc1_b": 0.05 * jax.random.normal(ks[5], (120,), jnp.float32),
        "fc2_w": s * jax.random.normal(ks[6], (84, 120), jnp.float32),
        "fc2_b": 0.05 * jax.random.normal(ks[7], (84,), jnp.float32),
        "fc3_w": s * jax.random.normal(ks[8], (10, 84), jnp.float32),
        "fc3_b": 0.05 * jax.random.normal(ks[9], (10,), jnp.float32),
    }


def lenet_reference(params, x_nchw):
    """Pure-JAX (XLA) reference of LeNetModelDef.forward for a numeric cross-check."""
    f32 = jnp.float32
    dn = ("NCHW", "OIHW", "NCHW")
    x = x_nchw.astype(f32)
    x = lax.conv_general_dilated(x, params["conv1_w"].astype(f32), (1, 1),
                                 [(2, 2), (2, 2)], dimension_numbers=dn)
    x = jnp.maximum(x + params["conv1_b"].reshape(1, 6, 1, 1), 0.0)
    x = lax.reduce_window(x, 0.0, lax.add, (1, 1, 2, 2), (1, 1, 2, 2), "VALID") * 0.25
    x = lax.conv_general_dilated(x, params["conv2_w"].astype(f32), (1, 1),
                                 [(0, 0), (0, 0)], dimension_numbers=dn)
    x = jnp.maximum(x + params["conv2_b"].reshape(1, 16, 1, 1), 0.0)
    x = lax.reduce_window(x, 0.0, lax.add, (1, 1, 2, 2), (1, 1, 2, 2), "VALID") * 0.25
    x = x.reshape(x.shape[0], -1)                          # torch NCHW flatten -> (N, 400)
    x = jnp.maximum(x @ params["fc1_w"].T + params["fc1_b"], 0.0)
    x = jnp.maximum(x @ params["fc2_w"].T + params["fc2_b"], 0.0)
    return x @ params["fc3_w"].T + params["fc3_b"]


if __name__ == "__main__":
    key = jax.random.PRNGKey(0)
    kp, kx = jax.random.split(key)
    params = init_params(kp)
    # LeNet expects 1x28x28 inputs; small batch of 2.
    x = jax.random.normal(kx, (2, 1, 28, 28), jnp.float32)
    prepared = prepare_params(params, n_img=x.shape[0])

    y = lenet_forward(prepared, x)
    jax.block_until_ready(y)
    assert y.shape == (2, 10) and y.dtype == jnp.float32

    y_ref = lenet_reference(params, x)
    err = float(jnp.max(jnp.abs(y - y_ref)))
    assert err < 1e-3, f"fused kernel mismatch vs XLA reference: max|diff|={err}"
    print("KERNEL_OK")
</pallas_src>

<mosaic_0001>
module attributes {stable_mosaic.version = 11 : i64} {
  func.func @_lenet_kernel(%arg0: memref<80x32xf32, #tpu.memory_space<vmem>>, %arg1: memref<160x8xf32, #tpu.memory_space<vmem>>, %arg2: memref<32x1xf32, #tpu.memory_space<vmem>>, %arg3: memref<128x56xf32, #tpu.memory_space<vmem>>, %arg4: memref<160x48xf32, #tpu.memory_space<vmem>>, %arg5: memref<32x1xf32, #tpu.memory_space<vmem>>, %arg6: memref<140x50xf32, #tpu.memory_space<vmem>>, %arg7: memref<120x400xf32, #tpu.memory_space<vmem>>, %arg8: memref<120x1xf32, #tpu.memory_space<vmem>>, %arg9: memref<84x120xf32, #tpu.memory_space<vmem>>, %arg10: memref<84x1xf32, #tpu.memory_space<vmem>>, %arg11: memref<10x84xf32, #tpu.memory_space<vmem>>, %arg12: memref<10x1xf32, #tpu.memory_space<vmem>>, %arg13: memref<10x2xf32, #tpu.memory_space<vmem>>) attributes {dimension_semantics = [], scalar_prefetch = 0 : i64, scratch_operands = 0 : i64, tpu.core_type = #tpu.core_type<tc>} {
    %c0 = arith.constant 0 : index
    %c0_0 = arith.constant 0 : index
    %0 = vector.load %arg0[%c0, %c0_0] : memref<80x32xf32, #tpu.memory_space<vmem>>, vector<8x32xf32>
    %c40 = arith.constant 40 : index
    %c0_1 = arith.constant 0 : index
    %1 = vector.load %arg0[%c40, %c0_1] : memref<80x32xf32, #tpu.memory_space<vmem>>, vector<8x32xf32>
    %2 = tpu.concatenate %0, %1 in 1 : vector<8x32xf32>, vector<8x32xf32> -> vector<8x64xf32>
    %c0_2 = arith.constant 0 : index
    %c0_3 = arith.constant 0 : index
    %3 = vector.load %arg1[%c0_2, %c0_3] : memref<160x8xf32, #tpu.memory_space<vmem>>, vector<160x8xf32>
    %cst = arith.constant dense<0.000000e+00> : vector<160x64xf32>
    %4 = tpu.matmul %3, %2, %cst {dimension_numbers = #tpu.dot_dimension_numbers<[1], [0], [0], [1], [0, 0, 1, 1], [], []>} : vector<160x8xf32>, vector<8x64xf32>, vector<160x64xf32> -> vector<160x64xf32>
    %5 = vector.extract_strided_slice %4 {offsets = [0, 0], sizes = [32, 64], strides = [1, 1]} : vector<160x64xf32> to vector<32x64xf32>
    %6 = vector.extract_strided_slice %4 {offsets = [32, 0], sizes = [32, 64], strides = [1, 1]} : vector<160x64xf32> to vector<32x64xf32>
    %7 = vector.extract_strided_slice %6 {offsets = [0, 1], sizes = [32, 63], strides = [1, 1]} : vector<32x64xf32> to vector<32x63xf32>
    %8 = vector.extract_strided_slice %6 {offsets = [0, 0], sizes = [32, 1], strides = [1, 1]} : vector<32x64xf32> to vector<32x1xf32>
    %9 = tpu.concatenate %7, %8 in 1 : vector<32x63xf32>, vector<32x1xf32> -> vector<32x64xf32>
    %10 = arith.addf %5, %9 : vector<32x64xf32>
    %11 = vector.extract_strided_slice %4 {offsets = [64, 0], sizes = [32, 64], strides = [1, 1]} : vector<160x64xf32> to vector<32x64xf32>
    %12 = vector.extract_strided_slice %11 {offsets = [0, 2], sizes = [32, 62], strides = [1, 1]} : vector<32x64xf32> to vector<32x62xf32>
    %13 = vector.extract_strided_slice %11 {offsets = [0, 0], sizes = [32, 2], strides = [1, 1]} : vector<32x64xf32> to vector<32x2xf32>
    %14 = tpu.concatenate %12, %13 in 1 : vector<32x62xf32>, vector<32x2xf32> -> vector<32x64xf32>
    %15 = arith.addf %10, %14 : vector<32x64xf32>
    %16 = vector.extract_strided_slice %4 {offsets = [96, 0], sizes = [32, 64], strides = [1, 1]} : vector<160x64xf32> to vector<32x64xf32>
    %17 = vector.extract_strided_slice %16 {offsets = [0, 3], sizes = [32, 61], strides = [1, 1]} : vector<32x64xf32> to vector<32x61xf32>
    %18 = vector.extract_strided_slice %16 {offsets = [0, 0], sizes = [32, 3], strides = [1, 1]} : vector<32x64xf32> to vector<32x3xf32>
    %19 = tpu.concatenate %17, %18 in 1 : vector<32x61xf32>, vector<32x3xf32> -> vector<32x64xf32>
    %20 = arith.addf %15, %19 : vector<32x64xf32>
    %21 = vector.extract_strided_slice %4 {offsets = [128, 0], sizes = [32, 64], strides = [1, 1]} : vector<160x64xf32> to vector<32x64xf32>
    %22 = vector.extract_strided_slice %21 {offsets = [0, 4], sizes = [32, 60], strides = [1, 1]} : vector<32x64xf32> to vector<32x60xf32>
    %23 = vector.extract_strided_slice %21 {offsets = [0, 0], sizes = [32, 4], strides = [1, 1]} : vector<32x64xf32> to vector<32x4xf32>
    %24 = tpu.concatenate %22, %23 in 1 : vector<32x60xf32>, vector<32x4xf32> -> vector<32x64xf32>
    %25 = arith.addf %20, %24 : vector<32x64xf32>
    %c0_4 = arith.constant 0 : index
    %c0_5 = arith.constant 0 : index
    %26 = vector.load %arg2[%c0_4, %c0_5] : memref<32x1xf32, #tpu.memory_space<vmem>>, vector<32x1xf32>
    %27 = vector.broadcast %26 : vector<32x1xf32> to vector<32x64xf32>
    %28 = arith.addf %25, %27 : vector<32x64xf32>
    %cst_6 = arith.constant 0.000000e+00 : f32
    %29 = vector.broadcast %cst_6 : f32 to vector<32x64xf32>
    %30 = arith.maximumf %28, %29 : vector<32x64xf32>
    %31 = vector.extract_strided_slice %30 {offsets = [0, 0], sizes = [8, 64], strides = [1, 1]} : vector<32x64xf32> to vector<8x64xf32>
    %32 = vector.extract_strided_slice %30 {offsets = [8, 0], sizes = [8, 64], strides = [1, 1]} : vector<32x64xf32> to vector<8x64xf32>
    %33 = arith.addf %31, %32 : vector<8x64xf32>
    %34 = vector.extract_strided_slice %30 {offsets = [16, 0], sizes = [8, 64], strides = [1, 1]} : vector<32x64xf32> to vector<8x64xf32>
    %35 = vector.extract_strided_slice %30 {offsets = [24, 0], sizes = [8, 64], strides = [1, 1]} : vector<32x64xf32> to vector<8x64xf32>
    %36 = arith.addf %34, %35 : vector<8x64xf32>
    %37 = tpu.concatenate %33, %36 in 1 : vector<8x64xf32>, vector<8x64xf32> -> vector<8x128xf32>
    %c0_7 = arith.constant 0 : index
    %c0_8 = arith.constant 0 : index
    %38 = vector.load %arg3[%c0_7, %c0_8] : memref<128x56xf32, #tpu.memory_space<vmem>>, vector<128x56xf32>
    %cst_9 = arith.constant dense<0.000000e+00> : vector<8x56xf32>
    %39 = tpu.matmul %37, %38, %cst_9 {dimension_numbers = #tpu.dot_dimension_numbers<[1], [0], [0], [1], [0, 0, 1, 1], [], []>} : vector<8x128xf32>, vector<128x56xf32>, vector<8x56xf32> -> vector<8x56xf32>
    %c4 = arith.constant 4 : index
    %c0_10 = arith.constant 0 : index
    %40 = vector.load %arg0[%c4, %c0_10] : memref<80x32xf32, #tpu.memory_space<vmem>>, vector<8x32xf32>
    %c44 = arith.constant 44 : index
    %c0_11 = arith.constant 0 : index
    %41 = vector.load %arg0[%c44, %c0_11] : memref<80x32xf32, #tpu.memory_space<vmem>>, vector<8x32xf32>
    %42 = tpu.concatenate %40, %41 in 1 : vector<8x32xf32>, vector<8x32xf32> -> vector<8x64xf32>
    %c0_12 = arith.constant 0 : index
    %c0_13 = arith.constant 0 : index
    %43 = vector.load %arg1[%c0_12, %c0_13] : memref<160x8xf32, #tpu.memory_space<vmem>>, vector<160x8xf32>
    %cst_14 = arith.constant dense<0.000000e+00> : vector<160x64xf32>
    %44 = tpu.matmul %43, %42, %cst_14 {dimension_numbers = #tpu.dot_dimension_numbers<[1], [0], [0], [1], [0, 0, 1, 1], [], []>} : vector<160x8xf32>, vector<8x64xf32>, vector<160x64xf32> -> vector<160x64xf32>
    %45 = vector.extract_strided_slice %44 {offsets = [0, 0], sizes = [32, 64], strides = [1, 1]} : vector<160x64xf32> to vector<32x64xf32>
    %46 = vector.extract_strided_slice %44 {offsets = [32, 0], sizes = [32, 64], strides = [1, 1]} : vector<160x64xf32> to vector<32x64xf32>
    %47 = vector.extract_strided_slice %46 {offsets = [0, 1], sizes = [32, 63], strides = [1, 1]} : vector<32x64xf32> to vector<32x63xf32>
    %48 = vector.extract_strided_slice %46 {offsets = [0, 0], sizes = [32, 1], strides = [1, 1]} : vector<32x64xf32> to vector<32x1xf32>
    %49 = tpu.concatenate %47, %48 in 1 : vector<32x63xf32>, vector<32x1xf32> -> vector<32x64xf32>
    %50 = arith.addf %45, %49 : vector<32x64xf32>
    %51 = vector.extract_strided_slice %44 {offsets = [64, 0], sizes = [32, 64], strides = [1, 1]} : vector<160x64xf32> to vector<32x64xf32>
    %52 = vector.extract_strided_slice %51 {offsets = [0, 2], sizes = [32, 62], strides = [1, 1]} : vector<32x64xf32> to vector<32x62xf32>
    %53 = vector.extract_strided_slice %51 {offsets = [0, 0], sizes = [32, 2], strides = [1, 1]} : vector<32x64xf32> to vector<32x2xf32>
    %54 = tpu.concatenate %52, %53 in 1 : vector<32x62xf32>, vector<32x2xf32> -> vector<32x64xf32>
    %55 = arith.addf %50, %54 : vector<32x64xf32>
    %56 = vector.extract_strided_slice %44 {offsets = [96, 0], sizes = [32, 64], strides = [1, 1]} : vector<160x64xf32> to vector<32x64xf32>
    %57 = vector.extract_strided_slice %56 {offsets = [0, 3], sizes = [32, 61], strides = [1, 1]} : vector<32x64xf32> to vector<32x61xf32>
    %58 = vector.extract_strided_slice %56 {offsets = [0, 0], sizes = [32, 3], strides = [1, 1]} : vector<32x64xf32> to vector<32x3xf32>
    %59 = tpu.concatenate %57, %58 in 1 : vector<32x61xf32>, vector<32x3xf32> -> vector<32x64xf32>
    %60 = arith.addf %55, %59 : vector<32x64xf32>
    %61 = vector.extract_strided_slice %44 {offsets = [128, 0], sizes = [32, 64], strides = [1, 1]} : vector<160x64xf32> to vector<32x64xf32>
    %62 = vector.extract_strided_slice %61 {offsets = [0, 4], sizes = [32, 60], strides = [1, 1]} : vector<32x64xf32> to vector<32x60xf32>
    %63 = vector.extract_strided_slice %61 {offsets = [0, 0], sizes = [32, 4], strides = [1, 1]} : vector<32x64xf32> to vector<32x4xf32>
    %64 = tpu.concatenate %62, %63 in 1 : vector<32x60xf32>, vector<32x4xf32> -> vector<32x64xf32>
    %65 = arith.addf %60, %64 : vector<32x64xf32>
    %c0_15 = arith.constant 0 : index
    %c0_16 = arith.constant 0 : index
    %66 = vector.load %arg2[%c0_15, %c0_16] : memref<32x1xf32, #tpu.memory_space<vmem>>, vector<32x1xf32>
    %67 = vector.broadcast %66 : vector<32x1xf32> to vector<32x64xf32>
    %68 = arith.addf %65, %67 : vector<32x64xf32>
    %cst_17 = arith.constant 0.000000e+00 : f32
    %69 = vector.broadcast %cst_17 : f32 to vector<32x64xf32>
    %70 = arith.maximumf %68, %69 : vector<32x64xf32>
    %71 = vector.extract_strided_slice %70 {offsets = [0, 0], sizes = [8, 64], strides = [1, 1]} : vector<32x64xf32> to vector<8x64xf32>
    %72 = vector.extract_strided_slice %70 {offsets = [8, 0], sizes = [8, 64], strides = [1, 1]} : vector<32x64xf32> to vector<8x64xf32>
    %73 = arith.addf %71, %72 : vector<8x64xf32>
    %74 = vector.extract_strided_slice %70 {offsets = [16, 0], sizes = [8, 64], strides = [1, 1]} : vector<32x64xf32> to vector<8x64xf32>
    %75 = vector.extract_strided_slice %70 {offsets = [24, 0], sizes = [8, 64], strides = [1, 1]} : vector<32x64xf32> to vector<8x64xf32>
    %76 = arith.addf %74, %75 : vector<8x64xf32>
    %77 = tpu.concatenate %73, %76 in 1 : vector<8x64xf32>, vector<8x64xf32> -> vector<8x128xf32>
    %c0_18 = arith.constant 0 : index
    %c0_19 = arith.constant 0 : index
    %78 = vector.load %arg3[%c0_18, %c0_19] : memref<128x56xf32, #tpu.memory_space<vmem>>, vector<128x56xf32>
    %cst_20 = arith.constant dense<0.000000e+00> : vector<8x56xf32>
    %79 = tpu.matmul %77, %78, %cst_20 {dimension_numbers = #tpu.dot_dimension_numbers<[1], [0], [0], [1], [0, 0, 1, 1], [], []>} : vector<8x128xf32>, vector<128x56xf32>, vector<8x56xf32> -> vector<8x56xf32>
    %c8 = arith.constant 8 : index
    %c0_21 = arith.constant 0 : index
    %80 = vector.load %arg0[%c8, %c0_21] : memref<80x32xf32, #tpu.memory_space<vmem>>, vector<8x32xf32>
    %c48 = arith.constant 48 : index
    %c0_22 = arith.constant 0 : index
    %81 = vector.load %arg0[%c48, %c0_22] : memref<80x32xf32, #tpu.memory_space<vmem>>, vector<8x32xf32>
    %82 = tpu.concatenate %80, %81 in 1 : vector<8x32xf32>, vector<8x32xf32> -> vector<8x64xf32>
    %c0_23 = arith.constant 0 : index
    %c0_24 = arith.constant 0 : index
    %83 = vector.load %arg1[%c0_23, %c0_24] : memref<160x8xf32, #tpu.memory_space<vmem>>, vector<160x8xf32>
    %cst_25 = arith.constant dense<0.000000e+00> : vector<160x64xf32>
    %84 = tpu.matmul %83, %82, %cst_25 {dimension_numbers = #tpu.dot_dimension_numbers<[1], [0], [0], [1], [0, 0, 1, 1], [], []>} : vector<160x8xf32>, vector<8x64xf32>, vector<160x64xf32> -> vector<160x64xf32>
    %85 = vector.extract_strided_slice %84 {offsets = [0, 0], sizes = [32, 64], strides = [1, 1]} : vector<160x64xf32> to vector<32x64xf32>
    %86 = vector.extract_strided_slice %84 {offsets = [32, 0], sizes = [32, 64], strides = [1, 1]} : vector<160x64xf32> to vector<32x64xf32>
    %87 = vector.extract_strided_slice %86 {offsets = [0, 1], sizes = [32, 63], strides = [1, 1]} : vector<32x64xf32> to vector<32x63xf32>
    %88 = vector.extract_strided_slice %86 {offsets = [0, 0], sizes = [32, 1], strides = [1, 1]} : vector<32x64xf32> to vector<32x1xf32>
    %89 = tpu.concatenate %87, %88 in 1 : vector<32x63xf32>, vector<32x1xf32> -> vector<32x64xf32>
    %90 = arith.addf %85, %89 : vector<32x64xf32>
    %91 = vector.extract_strided_slice %84 {offsets = [64, 0], sizes = [32, 64], strides = [1, 1]} : vector<160x64xf32> to vector<32x64xf32>
    %92 = vector.extract_strided_slice %91 {offsets = [0, 2], sizes = [32, 62], strides = [1, 1]} : vector<32x64xf32> to vector<32x62xf32>
    %93 = vector.extract_strided_slice %91 {offsets = [0, 0], sizes = [32, 2], strides = [1, 1]} : vector<32x64xf32> to vector<32x2xf32>
    %94 = tpu.concatenate %92, %93 in 1 : vector<32x62xf32>, vector<32x2xf32> -> vector<32x64xf32>
    %95 = arith.addf %90, %94 : vector<32x64xf32>
    %96 = vector.extract_strided_slice %84 {offsets = [96, 0], sizes = [32, 64], strides = [1, 1]} : vector<160x64xf32> to vector<32x64xf32>
    %97 = vector.extract_strided_slice %96 {offsets = [0, 3], sizes = [32, 61], strides = [1, 1]} : vector<32x64xf32> to vector<32x61xf32>
    %98 = vector.extract_strided_slice %96 {offsets = [0, 0], sizes = [32, 3], strides = [1, 1]} : vector<32x64xf32> to vector<32x3xf32>
    %99 = tpu.concatenate %97, %98 in 1 : vector<32x61xf32>, vector<32x3xf32> -> vector<32x64xf32>
    %100 = arith.addf %95, %99 : vector<32x64xf32>
    %101 = vector.extract_strided_slice %84 {offsets = [128, 0], sizes = [32, 64], strides = [1, 1]} : vector<160x64xf32> to vector<32x64xf32>
    %102 = vector.extract_strided_slice %101 {offsets = [0, 4], sizes = [32, 60], strides = [1, 1]} : vector<32x64xf32> to vector<32x60xf32>
    %103 = vector.extract_strided_slice %101 {offsets = [0, 0], sizes = [32, 4], strides = [1, 1]} : vector<32x64xf32> to vector<32x4xf32>
    %104 = tpu.concatenate %102, %103 in 1 : vector<32x60xf32>, vector<32x4xf32> -> vector<32x64xf32>
    %105 = arith.addf %100, %104 : vector<32x64xf32>
    %c0_26 = arith.constant 0 : index
    %c0_27 = arith.constant 0 : index
    %106 = vector.load %arg2[%c0_26, %c0_27] : memref<32x1xf32, #tpu.memory_space<vmem>>, vector<32x1xf32>
    %107 = vector.broadcast %106 : vector<32x1xf32> to vector<32x64xf32>
    %108 = arith.addf %105, %107 : vector<32x64xf32>
    %cst_28 = arith.constant 0.000000e+00 : f32
    %109 = vector.broadcast %cst_28 : f32 to vector<32x64xf32>
    %110 = arith.maximumf %108, %109 : vector<32x64xf32>
    %111 = vector.extract_strided_slice %110 {offsets = [0, 0], sizes = [8, 64], strides = [1, 1]} : vector<32x64xf32> to vector<8x64xf32>
    %112 = vector.extract_strided_slice %110 {offsets = [8, 0], sizes = [8, 64], strides = [1, 1]} : vector<32x64xf32> to vector<8x64xf32>
    %113 = arith.addf %111, %112 : vector<8x64xf32>
    %114 = vector.extract_strided_slice %110 {offsets = [16, 0], sizes = [8, 64], strides = [1, 1]} : vector<32x64xf32> to vector<8x64xf32>
    %115 = vector.extract_strided_slice %110 {offsets = [24, 0], sizes = [8, 64], strides = [1, 1]} : vector<32x64xf32> to vector<8x64xf32>
    %116 = arith.addf %114, %115 : vector<8x64xf32>
    %117 = tpu.concatenate %113, %116 in 1 : vector<8x64xf32>, vector<8x64xf32> -> vector<8x128xf32>
    %c0_29 = arith.constant 0 : index
    %c0_30 = arith.constant 0 : index
    %118 = vector.load %arg3[%c0_29, %c0_30] : memref<128x56xf32, #tpu.memory_space<vmem>>, vector<128x56xf32>
    %cst_31 = arith.constant dense<0.000000e+00> : vector<8x56xf32>
    %119 = tpu.matmul %117, %118, %cst_31 {dimension_numbers = #tpu.dot_dimension_numbers<[1], [0], [0], [1], [0, 0, 1, 1], [], []>} : vector<8x128xf32>, vector<128x56xf32>, vector<8x56xf32> -> vector<8x56xf32>
    %c12 = arith.constant 12 : index
    %c0_32 = arith.constant 0 : index
    %120 = vector.load %arg0[%c12, %c0_32] : memref<80x32xf32, #tpu.memory_space<vmem>>, vector<8x32xf32>
    %c52 = arith.constant 52 : index
    %c0_33 = arith.constant 0 : index
    %121 = vector.load %arg0[%c52, %c0_33] : memref<80x32xf32, #tpu.memory_space<vmem>>, vector<8x32xf32>
    %122 = tpu.concatenate %120, %121 in 1 : vector<8x32xf32>, vector<8x32xf32> -> vector<8x64xf32>
    %c0_34 = arith.constant 0 : index
    %c0_35 = arith.constant 0 : index
    %123 = vector.load %arg1[%c0_34, %c0_35] : memref<160x8xf32, #tpu.memory_space<vmem>>, vector<160x8xf32>
    %cst_36 = arith.constant dense<0.000000e+00> : vector<160x64xf32>
    %124 = tpu.matmul %123, %122, %cst_36 {dimension_numbers = #tpu.dot_dimension_numbers<[1], [0], [0], [1], [0, 0, 1, 1], [], []>} : vector<160x8xf32>, vector<8x64xf32>, vector<160x64xf32> -> vector<160x64xf32>
    %125 = vector.extract_strided_slice %124 {offsets = [0, 0], sizes = [32, 64], strides = [1, 1]} : vector<160x64xf32> to vector<32x64xf32>
    %126 = vector.extract_strided_slice %124 {offsets = [32, 0], sizes = [32, 64], strides = [1, 1]} : vector<160x64xf32> to vector<32x64xf32>
    %127 = vector.extract_strided_slice %126 {offsets = [0, 1], sizes = [32, 63], strides = [1, 1]} : vector<32x64xf32> to vector<32x63xf32>
    %128 = vector.extract_strided_slice %126 {offsets = [0, 0], sizes = [32, 1], strides = [1, 1]} : vector<32x64xf32> to vector<32x1xf32>
    %129 = tpu.concatenate %127, %128 in 1 : vector<32x63xf32>, vector<32x1xf32> -> vector<32x64xf32>
    %130 = arith.addf %125, %129 : vector<32x64xf32>
    %131 = vector.extract_strided_slice %124 {offsets = [64, 0], sizes = [32, 64], strides = [1, 1]} : vector<160x64xf32> to vector<32x64xf32>
    %132 = vector.extract_strided_slice %131 {offsets = [0, 2], sizes = [32, 62], strides = [1, 1]} : vector<32x64xf32> to vector<32x62xf32>
    %133 = vector.extract_strided_slice %131 {offsets = [0, 0], sizes = [32, 2], strides = [1, 1]} : vector<32x64xf32> to vector<32x2xf32>
    %134 = tpu.concatenate %132, %133 in 1 : vector<32x62xf32>, vector<32x2xf32> -> vector<32x64xf32>
    %135 = arith.addf %130, %134 : vector<32x64xf32>
    %136 = vector.extract_strided_slice %124 {offsets = [96, 0], sizes = [32, 64], strides = [1, 1]} : vector<160x64xf32> to vector<32x64xf32>
    %137 = vector.extract_strided_slice %136 {offsets = [0, 3], sizes = [32, 61], strides = [1, 1]} : vector<32x64xf32> to vector<32x61xf32>
    %138 = vector.extract_strided_slice %136 {offsets = [0, 0], sizes = [32, 3], strides = [1, 1]} : vector<32x64xf32> to vector<32x3xf32>
    %139 = tpu.concatenate %137, %138 in 1 : vector<32x61xf32>, vector<32x3xf32> -> vector<32x64xf32>
    %140 = arith.addf %135, %139 : vector<32x64xf32>
    %141 = vector.extract_strided_slice %124 {offsets = [128, 0], sizes = [32, 64], strides = [1, 1]} : vector<160x64xf32> to vector<32x64xf32>
    %142 = vector.extract_strided_slice %141 {offsets = [0, 4], sizes = [32, 60], strides = [1, 1]} : vector<32x64xf32> to vector<32x60xf32>
    %143 = vector.extract_strided_slice %141 {offsets = [0, 0], sizes = [32, 4], strides = [1, 1]} : vector<32x64xf32> to vector<32x4xf32>
    %144 = tpu.concatenate %142, %143 in 1 : vector<32x60xf32>, vector<32x4xf32> -> vector<32x64xf32>
    %145 = arith.addf %140, %144 : vector<32x64xf32>
    %c0_37 = arith.constant 0 : index
    %c0_38 = arith.constant 0 : index
    %146 = vector.load %arg2[%c0_37, %c0_38] : memref<32x1xf32, #tpu.memory_space<vmem>>, vector<32x1xf32>
    %147 = vector.broadcast %146 : vector<32x1xf32> to vector<32x64xf32>
    %148 = arith.addf %145, %147 : vector<32x64xf32>
    %cst_39 = arith.constant 0.000000e+00 : f32
    %149 = vector.broadcast %cst_39 : f32 to vector<32x64xf32>
    %150 = arith.maximumf %148, %149 : vector<32x64xf32>
    %151 = vector.extract_strided_slice %150 {offsets = [0, 0], sizes = [8, 64], strides = [1, 1]} : vector<32x64xf32> to vector<8x64xf32>
    %152 = vector.extract_strided_slice %150 {offsets = [8, 0], sizes = [8, 64], strides = [1, 1]} : vector<32x64xf32> to vector<8x64xf32>
    %153 = arith.addf %151, %152 : vector<8x64xf32>
    %154 = vector.extract_strided_slice %150 {offsets = [16, 0], sizes = [8, 64], strides = [1, 1]} : vector<32x64xf32> to vector<8x64xf32>
    %155 = vector.extract_strided_slice %150 {offsets = [24, 0], sizes = [8, 64], strides = [1, 1]} : vector<32x64xf32> to vector<8x64xf32>
    %156 = arith.addf %154, %155 : vector<8x64xf32>
    %157 = tpu.concatenate %153, %156 in 1 : vector<8x64xf32>, vector<8x64xf32> -> vector<8x128xf32>
    %c0_40 = arith.constant 0 : index
    %c0_41 = arith.constant 0 : index
    %158 = vector.load %arg3[%c0_40, %c0_41] : memref<128x56xf32, #tpu.memory_space<vmem>>, vector<128x56xf32>
    %cst_42 = arith.constant dense<0.000000e+00> : vector<8x56xf32>
    %159 = tpu.matmul %157, %158, %cst_42 {dimension_numbers = #tpu.dot_dimension_numbers<[1], [0], [0], [1], [0, 0, 1, 1], [], []>} : vector<8x128xf32>, vector<128x56xf32>, vector<8x56xf32> -> vector<8x56xf32>
    %c16 = arith.constant 16 : index
    %c0_43 = arith.constant 0 : index
    %160 = vector.load %arg0[%c16, %c0_43] : memref<80x32xf32, #tpu.memory_space<vmem>>, vector<8x32xf32>
    %c56 = arith.constant 56 : index
    %c0_44 = arith.constant 0 : index
    %161 = vector.load %arg0[%c56, %c0_44] : memref<80x32xf32, #tpu.memory_space<vmem>>, vector<8x32xf32>
    %162 = tpu.concatenate %160, %161 in 1 : vector<8x32xf32>, vector<8x32xf32> -> vector<8x64xf32>
    %c0_45 = arith.constant 0 : index
    %c0_46 = arith.constant 0 : index
    %163 = vector.load %arg1[%c0_45, %c0_46] : memref<160x8xf32, #tpu.memory_space<vmem>>, vector<160x8xf32>
    %cst_47 = arith.constant dense<0.000000e+00> : vector<160x64xf32>
    %164 = tpu.matmul %163, %162, %cst_47 {dimension_numbers = #tpu.dot_dimension_numbers<[1], [0], [0], [1], [0, 0, 1, 1], [], []>} : vector<160x8xf32>, vector<8x64xf32>, vector<160x64xf32> -> vector<160x64xf32>
    %165 = vector.extract_strided_slice %164 {offsets = [0, 0], sizes = [32, 64], strides = [1, 1]} : vector<160x64xf32> to vector<32x64xf32>
    %166 = vector.extract_strided_slice %164 {offsets = [32, 0], sizes = [32, 64], strides = [1, 1]} : vector<160x64xf32> to vector<32x64xf32>
    %167 = vector.extract_strided_slice %166 {offsets = [0, 1], sizes = [32, 63], strides = [1, 1]} : vector<32x64xf32> to vector<32x63xf32>
    %168 = vector.extract_strided_slice %166 {offsets = [0, 0], sizes = [32, 1], strides = [1, 1]} : vector<32x64xf32> to vector<32x1xf32>
    %169 = tpu.concatenate %167, %168 in 1 : vector<32x63xf32>, vector<32x1xf32> -> vector<32x64xf32>
    %170 = arith.addf %165, %169 : vector<32x64xf32>
    %171 = vector.extract_strided_slice %164 {offsets = [64, 0], sizes = [32, 64], strides = [1, 1]} : vector<160x64xf32> to vector<32x64xf32>
    %172 = vector.extract_strided_slice %171 {offsets = [0, 2], sizes = [32, 62], strides = [1, 1]} : vector<32x64xf32> to vector<32x62xf32>
    %173 = vector.extract_strided_slice %171 {offsets = [0, 0], sizes = [32, 2], strides = [1, 1]} : vector<32x64xf32> to vector<32x2xf32>
    %174 = tpu.concatenate %172, %173 in 1 : vector<32x62xf32>, vector<32x2xf32> -> vector<32x64xf32>
    %175 = arith.addf %170, %174 : vector<32x64xf32>
    %176 = vector.extract_strided_slice %164 {offsets = [96, 0], sizes = [32, 64], strides = [1, 1]} : vector<160x64xf32> to vector<32x64xf32>
    %177 = vector.extract_strided_slice %176 {offsets = [0, 3], sizes = [32, 61], strides = [1, 1]} : vector<32x64xf32> to vector<32x61xf32>
    %178 = vector.extract_strided_slice %176 {offsets = [0, 0], sizes = [32, 3], strides = [1, 1]} : vector<32x64xf32> to vector<32x3xf32>
    %179 = tpu.concatenate %177, %178 in 1 : vector<32x61xf32>, vector<32x3xf32> -> vector<32x64xf32>
    %180 = arith.addf %175, %179 : vector<32x64xf32>
    %181 = vector.extract_strided_slice %164 {offsets = [128, 0], sizes = [32, 64], strides = [1, 1]} : vector<160x64xf32> to vector<32x64xf32>
    %182 = vector.extract_strided_slice %181 {offsets = [0, 4], sizes = [32, 60], strides = [1, 1]} : vector<32x64xf32> to vector<32x60xf32>
    %183 = vector.extract_strided_slice %181 {offsets = [0, 0], sizes = [32, 4], strides = [1, 1]} : vector<32x64xf32> to vector<32x4xf32>
    %184 = tpu.concatenate %182, %183 in 1 : vector<32x60xf32>, vector<32x4xf32> -> vector<32x64xf32>
    %185 = arith.addf %180, %184 : vector<32x64xf32>
    %c0_48 = arith.constant 0 : index
    %c0_49 = arith.constant 0 : index
    %186 = vector.load %arg2[%c0_48, %c0_49] : memref<32x1xf32, #tpu.memory_space<vmem>>, vector<32x1xf32>
    %187 = vector.broadcast %186 : vector<32x1xf32> to vector<32x64xf32>
    %188 = arith.addf %185, %187 : vector<32x64xf32>
    %cst_50 = arith.constant 0.000000e+00 : f32
    %189 = vector.broadcast %cst_50 : f32 to vector<32x64xf32>
    %190 = arith.maximumf %188, %189 : vector<32x64xf32>
    %191 = vector.extract_strided_slice %190 {offsets = [0, 0], sizes = [8, 64], strides = [1, 1]} : vector<32x64xf32> to vector<8x64xf32>
    %192 = vector.extract_strided_slice %190 {offsets = [8, 0], sizes = [8, 64], strides = [1, 1]} : vector<32x64xf32> to vector<8x64xf32>
    %193 = arith.addf %191, %192 : vector<8x64xf32>
    %194 = vector.extract_strided_slice %190 {offsets = [16, 0], sizes = [8, 64], strides = [1, 1]} : vector<32x64xf32> to vector<8x64xf32>
    %195 = vector.extract_strided_slice %190 {offsets = [24, 0], sizes = [8, 64], strides = [1, 1]} : vector<32x64xf32> to vector<8x64xf32>
    %196 = arith.addf %194, %195 : vector<8x64xf32>
    %197 = tpu.concatenate %193, %196 in 1 : vector<8x64xf32>, vector<8x64xf32> -> vector<8x128xf32>
    %c0_51 = arith.constant 0 : index
    %c0_52 = arith.constant 0 : index
    %198 = vector.load %arg3[%c0_51, %c0_52] : memref<128x56xf32, #tpu.memory_space<vmem>>, vector<128x56xf32>
    %cst_53 = arith.constant dense<0.000000e+00> : vector<8x56xf32>
    %199 = tpu.matmul %197, %198, %cst_53 {dimension_numbers = #tpu.dot_dimension_numbers<[1], [0], [0], [1], [0, 0, 1, 1], [], []>} : vector<8x128xf32>, vector<128x56xf32>, vector<8x56xf32> -> vector<8x56xf32>
    %c20 = arith.constant 20 : index
    %c0_54 = arith.constant 0 : index
    %200 = vector.load %arg0[%c20, %c0_54] : memref<80x32xf32, #tpu.memory_space<vmem>>, vector<8x32xf32>
    %c60 = arith.constant 60 : index
    %c0_55 = arith.constant 0 : index
    %201 = vector.load %arg0[%c60, %c0_55] : memref<80x32xf32, #tpu.memory_space<vmem>>, vector<8x32xf32>
    %202 = tpu.concatenate %200, %201 in 1 : vector<8x32xf32>, vector<8x32xf32> -> vector<8x64xf32>
    %c0_56 = arith.constant 0 : index
    %c0_57 = arith.constant 0 : index
    %203 = vector.load %arg1[%c0_56, %c0_57] : memref<160x8xf32, #tpu.memory_space<vmem>>, vector<160x8xf32>
    %cst_58 = arith.constant dense<0.000000e+00> : vector<160x64xf32>
    %204 = tpu.matmul %203, %202, %cst_58 {dimension_numbers = #tpu.dot_dimension_numbers<[1], [0], [0], [1], [0, 0, 1, 1], [], []>} : vector<160x8xf32>, vector<8x64xf32>, vector<160x64xf32> -> vector<160x64xf32>
    %205 = vector.extract_strided_slice %204 {offsets = [0, 0], sizes = [32, 64], strides = [1, 1]} : vector<160x64xf32> to vector<32x64xf32>
    %206 = vector.extract_strided_slice %204 {offsets = [32, 0], sizes = [32, 64], strides = [1, 1]} : vector<160x64xf32> to vector<32x64xf32>
    %207 = vector.extract_strided_slice %206 {offsets = [0, 1], sizes = [32, 63], strides = [1, 1]} : vector<32x64xf32> to vector<32x63xf32>
    %208 = vector.extract_strided_slice %206 {offsets = [0, 0], sizes = [32, 1], strides = [1, 1]} : vector<32x64xf32> to vector<32x1xf32>
    %209 = tpu.concatenate %207, %208 in 1 : vector<32x63xf32>, vector<32x1xf32> -> vector<32x64xf32>
    %210 = arith.addf %205, %209 : vector<32x64xf32>
    %211 = vector.extract_strided_slice %204 {offsets = [64, 0], sizes = [32, 64], strides = [1, 1]} : vector<160x64xf32> to vector<32x64xf32>
    %212 = vector.extract_strided_slice %211 {offsets = [0, 2], sizes = [32, 62], strides = [1, 1]} : vector<32x64xf32> to vector<32x62xf32>
    %213 = vector.extract_strided_slice %211 {offsets = [0, 0], sizes = [32, 2], strides = [1, 1]} : vector<32x64xf32> to vector<32x2xf32>
    %214 = tpu.concatenate %212, %213 in 1 : vector<32x62xf32>, vector<32x2xf32> -> vector<32x64xf32>
    %215 = arith.addf %210, %214 : vector<32x64xf32>
    %216 = vector.extract_strided_slice %204 {offsets = [96, 0], sizes = [32, 64], strides = [1, 1]} : vector<160x64xf32> to vector<32x64xf32>
    %217 = vector.extract_strided_slice %216 {offsets = [0, 3], sizes = [32, 61], strides = [1, 1]} : vector<32x64xf32> to vector<32x61xf32>
    %218 = vector.extract_strided_slice %216 {offsets = [0, 0], sizes = [32, 3], strides = [1, 1]} : vector<32x64xf32> to vector<32x3xf32>
    %219 = tpu.concatenate %217, %218 in 1 : vector<32x61xf32>, vector<32x3xf32> -> vector<32x64xf32>
    %220 = arith.addf %215, %219 : vector<32x64xf32>
    %221 = vector.extract_strided_slice %204 {offsets = [128, 0], sizes = [32, 64], strides = [1, 1]} : vector<160x64xf32> to vector<32x64xf32>
    %222 = vector.extract_strided_slice %221 {offsets = [0, 4], sizes = [32, 60], strides = [1, 1]} : vector<32x64xf32> to vector<32x60xf32>
    %223 = vector.extract_strided_slice %221 {offsets = [0, 0], sizes = [32, 4], strides = [1, 1]} : vector<32x64xf32> to vector<32x4xf32>
    %224 = tpu.concatenate %222, %223 in 1 : vector<32x60xf32>, vector<32x4xf32> -> vector<32x64xf32>
    %225 = arith.addf %220, %224 : vector<32x64xf32>
    %c0_59 = arith.constant 0 : index
    %c0_60 = arith.constant 0 : index
    %226 = vector.load %arg2[%c0_59, %c0_60] : memref<32x1xf32, #tpu.memory_space<vmem>>, vector<32x1xf32>
    %227 = vector.broadcast %226 : vector<32x1xf32> to vector<32x64xf32>
    %228 = arith.addf %225, %227 : vector<32x64xf32>
    %cst_61 = arith.constant 0.000000e+00 : f32
    %229 = vector.broadcast %cst_61 : f32 to vector<32x64xf32>
    %230 = arith.maximumf %228, %229 : vector<32x64xf32>
    %231 = vector.extract_strided_slice %230 {offsets = [0, 0], sizes = [8, 64], strides = [1, 1]} : vector<32x64xf32> to vector<8x64xf32>
    %232 = vector.extract_strided_slice %230 {offsets = [8, 0], sizes = [8, 64], strides = [1, 1]} : vector<32x64xf32> to vector<8x64xf32>
    %233 = arith.addf %231, %232 : vector<8x64xf32>
    %234 = vector.extract_strided_slice %230 {offsets = [16, 0], sizes = [8, 64], strides = [1, 1]} : vector<32x64xf32> to vector<8x64xf32>
    %235 = vector.extract_strided_slice %230 {offsets = [24, 0], sizes = [8, 64], strides = [1, 1]} : vector<32x64xf32> to vector<8x64xf32>
    %236 = arith.addf %234, %235 : vector<8x64xf32>
    %237 = tpu.concatenate %233, %236 in 1 : vector<8x64xf32>, vector<8x64xf32> -> vector<8x128xf32>
    %c0_62 = arith.constant 0 : index
    %c0_63 = arith.constant 0 : index
    %238 = vector.load %arg3[%c0_62, %c0_63] : memref<128x56xf32, #tpu.memory_space<vmem>>, vector<128x56xf32>
    %cst_64 = arith.constant dense<0.000000e+00> : vector<8x56xf32>
    %239 = tpu.matmul %237, %238, %cst_64 {dimension_numbers = #tpu.dot_dimension_numbers<[1], [0], [0], [1], [0, 0, 1, 1], [], []>} : vector<8x128xf32>, vector<128x56xf32>, vector<8x56xf32> -> vector<8x56xf32>
    %c24 = arith.constant 24 : index
    %c0_65 = arith.constant 0 : index
    %240 = vector.load %arg0[%c24, %c0_65] : memref<80x32xf32, #tpu.memory_space<vmem>>, vector<8x32xf32>
    %c64 = arith.constant 64 : index
    %c0_66 = arith.constant 0 : index
    %241 = vector.load %arg0[%c64, %c0_66] : memref<80x32xf32, #tpu.memory_space<vmem>>, vector<8x32xf32>
    %242 = tpu.concatenate %240, %241 in 1 : vector<8x32xf32>, vector<8x32xf32> -> vector<8x64xf32>
    %c0_67 = arith.constant 0 : index
    %c0_68 = arith.constant 0 : index
    %243 = vector.load %arg1[%c0_67, %c0_68] : memref<160x8xf32, #tpu.memory_space<vmem>>, vector<160x8xf32>
    %cst_69 = arith.constant dense<0.000000e+00> : vector<160x64xf32>
    %244 = tpu.matmul %243, %242, %cst_69 {dimension_numbers = #tpu.dot_dimension_numbers<[1], [0], [0], [1], [0, 0, 1, 1], [], []>} : vector<160x8xf32>, vector<8x64xf32>, vector<160x64xf32> -> vector<160x64xf32>
    %245 = vector.extract_strided_slice %244 {offsets = [0, 0], sizes = [32, 64], strides = [1, 1]} : vector<160x64xf32> to vector<32x64xf32>
    %246 = vector.extract_strided_slice %244 {offsets = [32, 0], sizes = [32, 64], strides = [1, 1]} : vector<160x64xf32> to vector<32x64xf32>
    %247 = vector.extract_strided_slice %246 {offsets = [0, 1], sizes = [32, 63], strides = [1, 1]} : vector<32x64xf32> to vector<32x63xf32>
    %248 = vector.extract_strided_slice %246 {offsets = [0, 0], sizes = [32, 1], strides = [1, 1]} : vector<32x64xf32> to vector<32x1xf32>
    %249 = tpu.concatenate %247, %248 in 1 : vector<32x63xf32>, vector<32x1xf32> -> vector<32x64xf32>
    %250 = arith.addf %245, %249 : vector<32x64xf32>
    %251 = vector.extract_strided_slice %244 {offsets = [64, 0], sizes = [32, 64], strides = [1, 1]} : vector<160x64xf32> to vector<32x64xf32>
    %252 = vector.extract_strided_slice %251 {offsets = [0, 2], sizes = [32, 62], strides = [1, 1]} : vector<32x64xf32> to vector<32x62xf32>
    %253 = vector.extract_strided_slice %251 {offsets = [0, 0], sizes = [32, 2], strides = [1, 1]} : vector<32x64xf32> to vector<32x2xf32>
    %254 = tpu.concatenate %252, %253 in 1 : vector<32x62xf32>, vector<32x2xf32> -> vector<32x64xf32>
    %255 = arith.addf %250, %254 : vector<32x64xf32>
    %256 = vector.extract_strided_slice %244 {offsets = [96, 0], sizes = [32, 64], strides = [1, 1]} : vector<160x64xf32> to vector<32x64xf32>
    %257 = vector.extract_strided_slice %256 {offsets = [0, 3], sizes = [32, 61], strides = [1, 1]} : vector<32x64xf32> to vector<32x61xf32>
    %258 = vector.extract_strided_slice %256 {offsets = [0, 0], sizes = [32, 3], strides = [1, 1]} : vector<32x64xf32> to vector<32x3xf32>
    %259 = tpu.concatenate %257, %258 in 1 : vector<32x61xf32>, vector<32x3xf32> -> vector<32x64xf32>
    %260 = arith.addf %255, %259 : vector<32x64xf32>
    %261 = vector.extract_strided_slice %244 {offsets = [128, 0], sizes = [32, 64], strides = [1, 1]} : vector<160x64xf32> to vector<32x64xf32>
    %262 = vector.extract_strided_slice %261 {offsets = [0, 4], sizes = [32, 60], strides = [1, 1]} : vector<32x64xf32> to vector<32x60xf32>
    %263 = vector.extract_strided_slice %261 {offsets = [0, 0], sizes = [32, 4], strides = [1, 1]} : vector<32x64xf32> to vector<32x4xf32>
    %264 = tpu.concatenate %262, %263 in 1 : vector<32x60xf32>, vector<32x4xf32> -> vector<32x64xf32>
    %265 = arith.addf %260, %264 : vector<32x64xf32>
    %c0_70 = arith.constant 0 : index
    %c0_71 = arith.constant 0 : index
    %266 = vector.load %arg2[%c0_70, %c0_71] : memref<32x1xf32, #tpu.memory_space<vmem>>, vector<32x1xf32>
    %267 = vector.broadcast %266 : vector<32x1xf32> to vector<32x64xf32>
    %268 = arith.addf %265, %267 : vector<32x64xf32>
    %cst_72 = arith.constant 0.000000e+00 : f32
    %269 = vector.broadcast %cst_72 : f32 to vector<32x64xf32>
    %270 = arith.maximumf %268, %269 : vector<32x64xf32>
    %271 = vector.extract_strided_slice %270 {offsets = [0, 0], sizes = [8, 64], strides = [1, 1]} : vector<32x64xf32> to vector<8x64xf32>
    %272 = vector.extract_strided_slice %270 {offsets = [8, 0], sizes = [8, 64], strides = [1, 1]} : vector<32x64xf32> to vector<8x64xf32>
    %273 = arith.addf %271, %272 : vector<8x64xf32>
    %274 = vector.extract_strided_slice %270 {offsets = [16, 0], sizes = [8, 64], strides = [1, 1]} : vector<32x64xf32> to vector<8x64xf32>
    %275 = vector.extract_strided_slice %270 {offsets = [24, 0], sizes = [8, 64], strides = [1, 1]} : vector<32x64xf32> to vector<8x64xf32>
    %276 = arith.addf %274, %275 : vector<8x64xf32>
    %277 = tpu.concatenate %273, %276 in 1 : vector<8x64xf32>, vector<8x64xf32> -> vector<8x128xf32>
    %c0_73 = arith.constant 0 : index
    %c0_74 = arith.constant 0 : index
    %278 = vector.load %arg3[%c0_73, %c0_74] : memref<128x56xf32, #tpu.memory_space<vmem>>, vector<128x56xf32>
    %cst_75 = arith.constant dense<0.000000e+00> : vector<8x56xf32>
    %279 = tpu.matmul %277, %278, %cst_75 {dimension_numbers = #tpu.dot_dimension_numbers<[1], [0], [0], [1], [0, 0, 1, 1], [], []>} : vector<8x128xf32>, vector<128x56xf32>, vector<8x56xf32> -> vector<8x56xf32>
    %280 = tpu.concatenate %39, %79, %119, %159, %199, %239, %279 in 1 : vector<8x56xf32>, vector<8x56xf32>, vector<8x56xf32>, vector<8x56xf32>, vector<8x56xf32>, vector<8x56xf32>, vector<8x56xf32> -> vector<8x392xf32>
    %281 = vector.extract_strided_slice %280 {offsets = [0, 0], sizes = [8, 28], strides = [1, 1]} : vector<8x392xf32> to vector<8x28xf32>
    %282 = vector.extract_strided_slice %280 {offsets = [0, 56], sizes = [8, 28], strides = [1, 1]} : vector<8x392xf32> to vector<8x28xf32>
    %283 = vector.extract_strided_slice %280 {offsets = [0, 112], sizes = [8, 28], strides = [1, 1]} : vector<8x392xf32> to vector<8x28xf32>
    %284 = vector.extract_strided_slice %280 {offsets = [0, 168], sizes = [8, 28], strides = [1, 1]} : vector<8x392xf32> to vector<8x28xf32>
    %285 = vector.extract_strided_slice %280 {offsets = [0, 224], sizes = [8, 28], strides = [1, 1]} : vector<8x392xf32> to vector<8x28xf32>
    %286 = tpu.concatenate %281, %282, %283, %284, %285 in 1 : vector<8x28xf32>, vector<8x28xf32>, vector<8x28xf32>, vector<8x28xf32>, vector<8x28xf32> -> vector<8x140xf32>
    %287 = vector.extract_strided_slice %280 {offsets = [0, 28], sizes = [8, 28], strides = [1, 1]} : vector<8x392xf32> to vector<8x28xf32>
    %288 = vector.extract_strided_slice %280 {offsets = [0, 84], sizes = [8, 28], strides = [1, 1]} : vector<8x392xf32> to vector<8x28xf32>
    %289 = vector.extract_strided_slice %280 {offsets = [0, 140], sizes = [8, 28], strides = [1, 1]} : vector<8x392xf32> to vector<8x28xf32>
    %290 = vector.extract_strided_slice %280 {offsets = [0, 196], sizes = [8, 28], strides = [1, 1]} : vector<8x392xf32> to vector<8x28xf32>
    %291 = vector.extract_strided_slice %280 {offsets = [0, 252], sizes = [8, 28], strides = [1, 1]} : vector<8x392xf32> to vector<8x28xf32>
    %292 = tpu.concatenate %287, %288, %289, %290, %291 in 1 : vector<8x28xf32>, vector<8x28xf32>, vector<8x28xf32>, vector<8x28xf32>, vector<8x28xf32> -> vector<8x140xf32>
    %293 = vector.extract_strided_slice %280 {offsets = [0, 56], sizes = [8, 28], strides = [1, 1]} : vector<8x392xf32> to vector<8x28xf32>
    %294 = vector.extract_strided_slice %280 {offsets = [0, 112], sizes = [8, 28], strides = [1, 1]} : vector<8x392xf32> to vector<8x28xf32>
    %295 = vector.extract_strided_slice %280 {offsets = [0, 168], sizes = [8, 28], strides = [1, 1]} : vector<8x392xf32> to vector<8x28xf32>
    %296 = vector.extract_strided_slice %280 {offsets = [0, 224], sizes = [8, 28], strides = [1, 1]} : vector<8x392xf32> to vector<8x28xf32>
    %297 = vector.extract_strided_slice %280 {offsets = [0, 280], sizes = [8, 28], strides = [1, 1]} : vector<8x392xf32> to vector<8x28xf32>
    %298 = tpu.concatenate %293, %294, %295, %296, %297 in 1 : vector<8x28xf32>, vector<8x28xf32>, vector<8x28xf32>, vector<8x28xf32>, vector<8x28xf32> -> vector<8x140xf32>
    %299 = vector.extract_strided_slice %280 {offsets = [0, 84], sizes = [8, 28], strides = [1, 1]} : vector<8x392xf32> to vector<8x28xf32>
    %300 = vector.extract_strided_slice %280 {offsets = [0, 140], sizes = [8, 28], strides = [1, 1]} : vector<8x392xf32> to vector<8x28xf32>
    %301 = vector.extract_strided_slice %280 {offsets = [0, 196], sizes = [8, 28], strides = [1, 1]} : vector<8x392xf32> to vector<8x28xf32>
    %302 = vector.extract_strided_slice %280 {offsets = [0, 252], sizes = [8, 28], strides = [1, 1]} : vector<8x392xf32> to vector<8x28xf32>
    %303 = vector.extract_strided_slice %280 {offsets = [0, 308], sizes = [8, 28], strides = [1, 1]} : vector<8x392xf32> to vector<8x28xf32>
    %304 = tpu.concatenate %299, %300, %301, %302, %303 in 1 : vector<8x28xf32>, vector<8x28xf32>, vector<8x28xf32>, vector<8x28xf32>, vector<8x28xf32> -> vector<8x140xf32>
    %305 = vector.extract_strided_slice %280 {offsets = [0, 112], sizes = [8, 28], strides = [1, 1]} : vector<8x392xf32> to vector<8x28xf32>
    %306 = vector.extract_strided_slice %280 {offsets = [0, 168], sizes = [8, 28], strides = [1, 1]} : vector<8x392xf32> to vector<8x28xf32>
    %307 = vector.extract_strided_slice %280 {offsets = [0, 224], sizes = [8, 28], strides = [1, 1]} : vector<8x392xf32> to vector<8x28xf32>
    %308 = vector.extract_strided_slice %280 {offsets = [0, 280], sizes = [8, 28], strides = [1, 1]} : vector<8x392xf32> to vector<8x28xf32>
    %309 = vector.extract_strided_slice %280 {offsets = [0, 336], sizes = [8, 28], strides = [1, 1]} : vector<8x392xf32> to vector<8x28xf32>
    %310 = tpu.concatenate %305, %306, %307, %308, %309 in 1 : vector<8x28xf32>, vector<8x28xf32>, vector<8x28xf32>, vector<8x28xf32>, vector<8x28xf32> -> vector<8x140xf32>
    %311 = vector.extract_strided_slice %280 {offsets = [0, 140], sizes = [8, 28], strides = [1, 1]} : vector<8x392xf32> to vector<8x28xf32>
    %312 = vector.extract_strided_slice %280 {offsets = [0, 196], sizes = [8, 28], strides = [1, 1]} : vector<8x392xf32> to vector<8x28xf32>
    %313 = vector.extract_strided_slice %280 {offsets = [0, 252], sizes = [8, 28], strides = [1, 1]} : vector<8x392xf32> to vector<8x28xf32>
    %314 = vector.extract_strided_slice %280 {offsets = [0, 308], sizes = [8, 28], strides = [1, 1]} : vector<8x392xf32> to vector<8x28xf32>
    %315 = vector.extract_strided_slice %280 {offsets = [0, 364], sizes = [8, 28], strides = [1, 1]} : vector<8x392xf32> to vector<8x28xf32>
    %316 = tpu.concatenate %311, %312, %313, %314, %315 in 1 : vector<8x28xf32>, vector<8x28xf32>, vector<8x28xf32>, vector<8x28xf32>, vector<8x28xf32> -> vector<8x140xf32>
    %317 = tpu.concatenate %286, %292, %298, %304, %310, %316 in 0 : vector<8x140xf32>, vector<8x140xf32>, vector<8x140xf32>, vector<8x140xf32>, vector<8x140xf32>, vector<8x140xf32> -> vector<48x140xf32>
    %c0_76 = arith.constant 0 : index
    %c0_77 = arith.constant 0 : index
    %318 = vector.load %arg4[%c0_76, %c0_77] : memref<160x48xf32, #tpu.memory_space<vmem>>, vector<160x48xf32>
    %cst_78 = arith.constant dense<0.000000e+00> : vector<160x140xf32>
    %319 = tpu.matmul %318, %317, %cst_78 {dimension_numbers = #tpu.dot_dimension_numbers<[1], [0], [0], [1], [0, 0, 1, 1], [], []>} : vector<160x48xf32>, vector<48x140xf32>, vector<160x140xf32> -> vector<160x140xf32>
    %320 = vector.extract_strided_slice %319 {offsets = [0, 0], sizes = [32, 140], strides = [1, 1]} : vector<160x140xf32> to vector<32x140xf32>
    %321 = vector.extract_strided_slice %319 {offsets = [32, 0], sizes = [32, 140], strides = [1, 1]} : vector<160x140xf32> to vector<32x140xf32>
    %322 = vector.extract_strided_slice %321 {offsets = [0, 1], sizes = [32, 139], strides = [1, 1]} : vector<32x140xf32> to vector<32x139xf32>
    %323 = vector.extract_strided_slice %321 {offsets = [0, 0], sizes = [32, 1], strides = [1, 1]} : vector<32x140xf32> to vector<32x1xf32>
    %324 = tpu.concatenate %322, %323 in 1 : vector<32x139xf32>, vector<32x1xf32> -> vector<32x140xf32>
    %325 = arith.addf %320, %324 : vector<32x140xf32>
    %326 = vector.extract_strided_slice %319 {offsets = [64, 0], sizes = [32, 140], strides = [1, 1]} : vector<160x140xf32> to vector<32x140xf32>
    %327 = vector.extract_strided_slice %326 {offsets = [0, 2], sizes = [32, 138], strides = [1, 1]} : vector<32x140xf32> to vector<32x138xf32>
    %328 = vector.extract_strided_slice %326 {offsets = [0, 0], sizes = [32, 2], strides = [1, 1]} : vector<32x140xf32> to vector<32x2xf32>
    %329 = tpu.concatenate %327, %328 in 1 : vector<32x138xf32>, vector<32x2xf32> -> vector<32x140xf32>
    %330 = arith.addf %325, %329 : vector<32x140xf32>
    %331 = vector.extract_strided_slice %319 {offsets = [96, 0], sizes = [32, 140], strides = [1, 1]} : vector<160x140xf32> to vector<32x140xf32>
    %332 = vector.extract_strided_slice %331 {offsets = [0, 3], sizes = [32, 137], strides = [1, 1]} : vector<32x140xf32> to vector<32x137xf32>
    %333 = vector.extract_strided_slice %331 {offsets = [0, 0], sizes = [32, 3], strides = [1, 1]} : vector<32x140xf32> to vector<32x3xf32>
    %334 = tpu.concatenate %332, %333 in 1 : vector<32x137xf32>, vector<32x3xf32> -> vector<32x140xf32>
    %335 = arith.addf %330, %334 : vector<32x140xf32>
    %336 = vector.extract_strided_slice %319 {offsets = [128, 0], sizes = [32, 140], strides = [1, 1]} : vector<160x140xf32> to vector<32x140xf32>
    %337 = vector.extract_strided_slice %336 {offsets = [0, 4], sizes = [32, 136], strides = [1, 1]} : vector<32x140xf32> to vector<32x136xf32>
    %338 = vector.extract_strided_slice %336 {offsets = [0, 0], sizes = [32, 4], strides = [1, 1]} : vector<32x140xf32> to vector<32x4xf32>
    %339 = tpu.concatenate %337, %338 in 1 : vector<32x136xf32>, vector<32x4xf32> -> vector<32x140xf32>
    %340 = arith.addf %335, %339 : vector<32x140xf32>
    %c0_79 = arith.constant 0 : index
    %c0_80 = arith.constant 0 : index
    %341 = vector.load %arg5[%c0_79, %c0_80] : memref<32x1xf32, #tpu.memory_space<vmem>>, vector<32x1xf32>
    %342 = vector.broadcast %341 : vector<32x1xf32> to vector<32x140xf32>
    %343 = arith.addf %340, %342 : vector<32x140xf32>
    %cst_81 = arith.constant 0.000000e+00 : f32
    %344 = vector.broadcast %cst_81 : f32 to vector<32x140xf32>
    %345 = arith.maximumf %343, %344 : vector<32x140xf32>
    %346 = vector.extract_strided_slice %345 {offsets = [0, 0], sizes = [16, 140], strides = [1, 1]} : vector<32x140xf32> to vector<16x140xf32>
    %347 = vector.extract_strided_slice %345 {offsets = [16, 0], sizes = [16, 140], strides = [1, 1]} : vector<32x140xf32> to vector<16x140xf32>
    %348 = arith.addf %346, %347 : vector<16x140xf32>
    %c0_82 = arith.constant 0 : index
    %c0_83 = arith.constant 0 : index
    %349 = vector.load %arg6[%c0_82, %c0_83] : memref<140x50xf32, #tpu.memory_space<vmem>>, vector<140x50xf32>
    %cst_84 = arith.constant dense<0.000000e+00> : vector<16x50xf32>
    %350 = tpu.matmul %348, %349, %cst_84 {dimension_numbers = #tpu.dot_dimension_numbers<[1], [0], [0], [1], [0, 0, 1, 1], [], []>} : vector<16x140xf32>, vector<140x50xf32>, vector<16x50xf32> -> vector<16x50xf32>
    %351 = vector.extract_strided_slice %350 {offsets = [0, 0], sizes = [16, 2], strides = [1, 1]} : vector<16x50xf32> to vector<16x2xf32>
    %352 = vector.extract_strided_slice %350 {offsets = [0, 2], sizes = [16, 2], strides = [1, 1]} : vector<16x50xf32> to vector<16x2xf32>
    %353 = vector.extract_strided_slice %350 {offsets = [0, 4], sizes = [16, 2], strides = [1, 1]} : vector<16x50xf32> to vector<16x2xf32>
    %354 = vector.extract_strided_slice %350 {offsets = [0, 6], sizes = [16, 2], strides = [1, 1]} : vector<16x50xf32> to vector<16x2xf32>
    %355 = vector.extract_strided_slice %350 {offsets = [0, 8], sizes = [16, 2], strides = [1, 1]} : vector<16x50xf32> to vector<16x2xf32>
    %356 = vector.extract_strided_slice %350 {offsets = [0, 10], sizes = [16, 2], strides = [1, 1]} : vector<16x50xf32> to vector<16x2xf32>
    %357 = vector.extract_strided_slice %350 {offsets = [0, 12], sizes = [16, 2], strides = [1, 1]} : vector<16x50xf32> to vector<16x2xf32>
    %358 = vector.extract_strided_slice %350 {offsets = [0, 14], sizes = [16, 2], strides = [1, 1]} : vector<16x50xf32> to vector<16x2xf32>
    %359 = vector.extract_strided_slice %350 {offsets = [0, 16], sizes = [16, 2], strides = [1, 1]} : vector<16x50xf32> to vector<16x2xf32>
    %360 = vector.extract_strided_slice %350 {offsets = [0, 18], sizes = [16, 2], strides = [1, 1]} : vector<16x50xf32> to vector<16x2xf32>
    %361 = vector.extract_strided_slice %350 {offsets = [0, 20], sizes = [16, 2], strides = [1, 1]} : vector<16x50xf32> to vector<16x2xf32>
    %362 = vector.extract_strided_slice %350 {offsets = [0, 22], sizes = [16, 2], strides = [1, 1]} : vector<16x50xf32> to vector<16x2xf32>
    %363 = vector.extract_strided_slice %350 {offsets = [0, 24], sizes = [16, 2], strides = [1, 1]} : vector<16x50xf32> to vector<16x2xf32>
    %364 = vector.extract_strided_slice %350 {offsets = [0, 26], sizes = [16, 2], strides = [1, 1]} : vector<16x50xf32> to vector<16x2xf32>
    %365 = vector.extract_strided_slice %350 {offsets = [0, 28], sizes = [16, 2], strides = [1, 1]} : vector<16x50xf32> to vector<16x2xf32>
    %366 = vector.extract_strided_slice %350 {offsets = [0, 30], sizes = [16, 2], strides = [1, 1]} : vector<16x50xf32> to vector<16x2xf32>
    %367 = vector.extract_strided_slice %350 {offsets = [0, 32], sizes = [16, 2], strides = [1, 1]} : vector<16x50xf32> to vector<16x2xf32>
    %368 = vector.extract_strided_slice %350 {offsets = [0, 34], sizes = [16, 2], strides = [1, 1]} : vector<16x50xf32> to vector<16x2xf32>
    %369 = vector.extract_strided_slice %350 {offsets = [0, 36], sizes = [16, 2], strides = [1, 1]} : vector<16x50xf32> to vector<16x2xf32>
    %370 = vector.extract_strided_slice %350 {offsets = [0, 38], sizes = [16, 2], strides = [1, 1]} : vector<16x50xf32> to vector<16x2xf32>
    %371 = vector.extract_strided_slice %350 {offsets = [0, 40], sizes = [16, 2], strides = [1, 1]} : vector<16x50xf32> to vector<16x2xf32>
    %372 = vector.extract_strided_slice %350 {offsets = [0, 42], sizes = [16, 2], strides = [1, 1]} : vector<16x50xf32> to vector<16x2xf32>
    %373 = vector.extract_strided_slice %350 {offsets = [0, 44], sizes = [16, 2], strides = [1, 1]} : vector<16x50xf32> to vector<16x2xf32>
    %374 = vector.extract_strided_slice %350 {offsets = [0, 46], sizes = [16, 2], strides = [1, 1]} : vector<16x50xf32> to vector<16x2xf32>
    %375 = vector.extract_strided_slice %350 {offsets = [0, 48], sizes = [16, 2], strides = [1, 1]} : vector<16x50xf32> to vector<16x2xf32>
    %376 = tpu.concatenate %351, %352, %353, %354, %355, %356, %357, %358, %359, %360, %361, %362, %363, %364, %365, %366 in 0 : vector<16x2xf32>, vector<16x2xf32>, vector<16x2xf32>, vector<16x2xf32>, vector<16x2xf32>, vector<16x2xf32>, vector<16x2xf32>, vector<16x2xf32>, vector<16x2xf32>, vector<16x2xf32>, vector<16x2xf32>, vector<16x2xf32>, vector<16x2xf32>, vector<16x2xf32>, vector<16x2xf32>, vector<16x2xf32> -> vector<256x2xf32>
    %377 = tpu.concatenate %367, %368, %369, %370, %371, %372, %373, %374, %375 in 0 : vector<16x2xf32>, vector<16x2xf32>, vector<16x2xf32>, vector<16x2xf32>, vector<16x2xf32>, vector<16x2xf32>, vector<16x2xf32>, vector<16x2xf32>, vector<16x2xf32> -> vector<144x2xf32>
    %378 = tpu.concatenate %376, %377 in 0 : vector<256x2xf32>, vector<144x2xf32> -> vector<400x2xf32>
    %c0_85 = arith.constant 0 : index
    %c0_86 = arith.constant 0 : index
    %379 = vector.load %arg7[%c0_85, %c0_86] : memref<120x400xf32, #tpu.memory_space<vmem>>, vector<120x400xf32>
    %cst_87 = arith.constant dense<0.000000e+00> : vector<120x2xf32>
    %380 = tpu.matmul %379, %378, %cst_87 {dimension_numbers = #tpu.dot_dimension_numbers<[1], [0], [0], [1], [0, 0, 1, 1], [], []>} : vector<120x400xf32>, vector<400x2xf32>, vector<120x2xf32> -> vector<120x2xf32>
    %c0_88 = arith.constant 0 : index
    %c0_89 = arith.constant 0 : index
    %381 = vector.load %arg8[%c0_88, %c0_89] : memref<120x1xf32, #tpu.memory_space<vmem>>, vector<120x1xf32>
    %382 = vector.broadcast %381 : vector<120x1xf32> to vector<120x2xf32>
    %383 = arith.addf %380, %382 : vector<120x2xf32>
    %cst_90 = arith.constant 0.000000e+00 : f32
    %384 = vector.broadcast %cst_90 : f32 to vector<120x2xf32>
    %385 = arith.maximumf %383, %384 : vector<120x2xf32>
    %c0_91 = arith.constant 0 : index
    %c0_92 = arith.constant 0 : index
    %386 = vector.load %arg9[%c0_91, %c0_92] : memref<84x120xf32, #tpu.memory_space<vmem>>, vector<84x120xf32>
    %cst_93 = arith.constant dense<0.000000e+00> : vector<84x2xf32>
    %387 = tpu.matmul %386, %385, %cst_93 {dimension_numbers = #tpu.dot_dimension_numbers<[1], [0], [0], [1], [0, 0, 1, 1], [], []>} : vector<84x120xf32>, vector<120x2xf32>, vector<84x2xf32> -> vector<84x2xf32>
    %c0_94 = arith.constant 0 : index
    %c0_95 = arith.constant 0 : index
    %388 = vector.load %arg10[%c0_94, %c0_95] : memref<84x1xf32, #tpu.memory_space<vmem>>, vector<84x1xf32>
    %389 = vector.broadcast %388 : vector<84x1xf32> to vector<84x2xf32>
    %390 = arith.addf %387, %389 : vector<84x2xf32>
    %cst_96 = arith.constant 0.000000e+00 : f32
    %391 = vector.broadcast %cst_96 : f32 to vector<84x2xf32>
    %392 = arith.maximumf %390, %391 : vector<84x2xf32>
    %c0_97 = arith.constant 0 : index
    %c0_98 = arith.constant 0 : index
    %393 = vector.load %arg11[%c0_97, %c0_98] : memref<10x84xf32, #tpu.memory_space<vmem>>, vector<10x84xf32>
    %cst_99 = arith.constant dense<0.000000e+00> : vector<10x2xf32>
    %394 = tpu.matmul %393, %392, %cst_99 {dimension_numbers = #tpu.dot_dimension_numbers<[1], [0], [0], [1], [0, 0, 1, 1], [], []>} : vector<10x84xf32>, vector<84x2xf32>, vector<10x2xf32> -> vector<10x2xf32>
    %c0_100 = arith.constant 0 : index
    %c0_101 = arith.constant 0 : index
    %395 = vector.load %arg12[%c0_100, %c0_101] : memref<10x1xf32, #tpu.memory_space<vmem>>, vector<10x1xf32>
    %396 = vector.broadcast %395 : vector<10x1xf32> to vector<10x2xf32>
    %397 = arith.addf %394, %396 : vector<10x2xf32>
    %c0_102 = arith.constant 0 : index
    %c0_103 = arith.constant 0 : index
    %398 = vector.load %arg13[%c0_102, %c0_103] : memref<10x2xf32, #tpu.memory_space<vmem>>, vector<10x2xf32>
    tpu.vector_store %arg13[%c0_102, %c0_103], %397 {strides = array<i32>} : memref<10x2xf32, #tpu.memory_space<vmem>>, vector<10x2xf32>,
    return
  }
}

</mosaic_0001>

<llo_original>
// kernel: lenet_forward.1
$region0: #{lenet_forward.1}
  #allocation0 [shape = 'u32[]', space=smem, size = 0x4, offset = 0x4, fixed_abs, tag = 'smem constant byte address 0x4 - core index']
  #allocation1 [shape = 'u32[144,128]{1,0:T(1,128)}', space=vmem, size = 0x12000, scoped, tag = 'internal scratch']
  %s0 = inlined_call_operand.vmem [shape: f32[80,32], index: 0, kind: input, shape index: {}]
  %s1 = inlined_call_operand.vmem [shape: f32[160,8], index: 1, kind: input, shape index: {}]
  %s2 = inlined_call_operand.vmem [shape: f32[32,1], index: 2, kind: input, shape index: {}]
  %s3 = inlined_call_operand.vmem [shape: f32[128,56], index: 3, kind: input, shape index: {}]
  %s4 = inlined_call_operand.vmem [shape: f32[160,48], index: 4, kind: input, shape index: {}]
  %s5 = inlined_call_operand.vmem [shape: f32[32,1], index: 5, kind: input, shape index: {}]
  %s6 = inlined_call_operand.vmem [shape: f32[140,50], index: 6, kind: input, shape index: {}]
  %s7 = inlined_call_operand.vmem [shape: f32[120,400], index: 7, kind: input, shape index: {}]
  %s8 = inlined_call_operand.vmem [shape: f32[120,1], index: 8, kind: input, shape index: {}]
  %s9 = inlined_call_operand.vmem [shape: f32[84,120], index: 9, kind: input, shape index: {}]
  %s10 = inlined_call_operand.vmem [shape: f32[84,1], index: 10, kind: input, shape index: {}]
  %s11 = inlined_call_operand.vmem [shape: f32[10,84], index: 11, kind: input, shape index: {}]
  %s12 = inlined_call_operand.vmem [shape: f32[10,1], index: 12, kind: input, shape index: {}]
  %s13 = inlined_call_operand.vmem [shape: f32[10,2], index: 13, kind: output, shape index: {}]
  %s14 = sld [smem:[#allocation0]]
  $region62: #{lenet_forward.1} parent=0
    _
  %s16 = ssub.s32 1, %s14
  %s17 = scalar_select 0, %s16, %s14
  // Predicated region
  $region2: #{lenet_forward.1} parent=0 // pred_check
    _
  $region3: #{lenet_forward.1} parent=0 // pred_check_branch
    %19 = sbr.rel (0) target = $region5
  $region4: #{lenet_forward.1} parent=0 // pred_region
    _
  $region5: #{lenet_forward.1} parent=0 // pred_fallthru
    _
  // Predicated region
  $region6: #{lenet_forward.1} parent=0 // pred_check
    _
  $region7: #{lenet_forward.1} parent=0 // pred_check_branch
    %21 = sbr.rel (0) target = $region9
  $region8: #{lenet_forward.1} parent=0 // pred_region
    _
  $region9: #{lenet_forward.1} parent=0 // pred_fallthru
    _
  // Predicated region
  $region10: #{lenet_forward.1} parent=0 // pred_check
    _
  $region11: #{lenet_forward.1} parent=0 // pred_check_branch
    %23 = sbr.rel (0) target = $region13
  $region12: #{lenet_forward.1} parent=0 // pred_region
    _
  $region13: #{lenet_forward.1} parent=0 // pred_fallthru
    _
  // Predicated region
  $region14: #{lenet_forward.1} parent=0 // pred_check
    _
  $region15: #{lenet_forward.1} parent=0 // pred_check_branch
    %25 = sbr.rel (0) target = $region17
  $region16: #{lenet_forward.1} parent=0 // pred_region
    _
  $region17: #{lenet_forward.1} parent=0 // pred_fallthru
    _
  // Predicated region
  $region18: #{lenet_forward.1} parent=0 // pred_check
    _
  $region19: #{lenet_forward.1} parent=0 // pred_check_branch
    %27 = sbr.rel (0) target = $region21
  $region20: #{lenet_forward.1} parent=0 // pred_region
    _
  $region21: #{lenet_forward.1} parent=0 // pred_fallthru
    _
  // Predicated region
  $region22: #{lenet_forward.1} parent=0 // pred_check
    _
  $region23: #{lenet_forward.1} parent=0 // pred_check_branch
    %29 = sbr.rel (0) target = $region25
  $region24: #{lenet_forward.1} parent=0 // pred_region
    _
  $region25: #{lenet_forward.1} parent=0 // pred_fallthru
    _
  // Predicated region
  $region26: #{lenet_forward.1} parent=0 // pred_check
    _
  $region27: #{lenet_forward.1} parent=0 // pred_check_branch
    %31 = sbr.rel (0) target = $region29
  $region28: #{lenet_forward.1} parent=0 // pred_region
    _
  $region29: #{lenet_forward.1} parent=0 // pred_fallthru
    _
  // Predicated region
  $region30: #{lenet_forward.1} parent=0 // pred_check
    _
  $region31: #{lenet_forward.1} parent=0 // pred_check_branch
    %33 = sbr.rel (0) target = $region33
  $region32: #{lenet_forward.1} parent=0 // pred_region
    _
  $region33: #{lenet_forward.1} parent=0 // pred_fallthru
    _
  // Predicated region
  $region34: #{lenet_forward.1} parent=0 // pred_check
    _
  $region35: #{lenet_forward.1} parent=0 // pred_check_branch
    %35 = sbr.rel (0) target = $region37
  $region36: #{lenet_forward.1} parent=0 // pred_region
    _
  $region37: #{lenet_forward.1} parent=0 // pred_fallthru
    _
  // Predicated region
  $region38: #{lenet_forward.1} parent=0 // pred_check
    _
  $region39: #{lenet_forward.1} parent=0 // pred_check_branch
    %37 = sbr.rel (0) target = $region41
  $region40: #{lenet_forward.1} parent=0 // pred_region
    _
  $region41: #{lenet_forward.1} parent=0 // pred_fallthru
    _
  // Predicated region
  $region42: #{lenet_forward.1} parent=0 // pred_check
    _
  $region43: #{lenet_forward.1} parent=0 // pred_check_branch
    %39 = sbr.rel (0) target = $region45
  $region44: #{lenet_forward.1} parent=0 // pred_region
    _
  $region45: #{lenet_forward.1} parent=0 // pred_fallthru
    _
  // Predicated region
  $region46: #{lenet_forward.1} parent=0 // pred_check
    _
  $region47: #{lenet_forward.1} parent=0 // pred_check_branch
    %41 = sbr.rel (0) target = $region49
  $region48: #{lenet_forward.1} parent=0 // pred_region
    _
  $region49: #{lenet_forward.1} parent=0 // pred_fallthru
    _
  // Predicated region
  $region50: #{lenet_forward.1} parent=0 // pred_check
    _
  $region51: #{lenet_forward.1} parent=0 // pred_check_branch
    %43 = sbr.rel (0) target = $region53
  $region52: #{lenet_forward.1} parent=0 // pred_region
    _
  $region53: #{lenet_forward.1} parent=0 // pred_fallthru
    _
  %v44 = vld [vmem:[%s0] sm:$0xff]
  %v45 = vld [vmem:[%s0 + $0x28] sm:$0xff]
  %47 = vrot.lane.b32.xlu0 %v45, 32
  %v48 = vpop.permute.xlu0 %47
  %vm50 = vcmask 261120
  %v51 = vsel %vm50, %v44, %v48
  %v52 = vld [vmem:[%s1] sm:$0xff]
  %v53 = vld [vmem:[%s1 + $0x8] sm:$0xff]
  %v54 = vld [vmem:[%s1 + $0x10] sm:$0xff]
  %v55 = vld [vmem:[%s1 + $0x18] sm:$0xff]
  %v56 = vld [vmem:[%s1 + $0x20] sm:$0xff]
  %v57 = vld [vmem:[%s1 + $0x28] sm:$0xff]
  %v58 = vld [vmem:[%s1 + $0x30] sm:$0xff]
  %v59 = vld [vmem:[%s1 + $0x38] sm:$0xff]
  %v60 = vld [vmem:[%s1 + $0x40] sm:$0xff]
  %v61 = vld [vmem:[%s1 + $0x48] sm:$0xff]
  %v62 = vld [vmem:[%s1 + $0x50] sm:$0xff]
  %v63 = vld [vmem:[%s1 + $0x58] sm:$0xff]
  %v64 = vld [vmem:[%s1 + $0x60] sm:$0xff]
  %v65 = vld [vmem:[%s1 + $0x68] sm:$0xff]
  %v66 = vld [vmem:[%s1 + $0x70] sm:$0xff]
  %v67 = vld [vmem:[%s1 + $0x78] sm:$0xff]
  %v68 = vld [vmem:[%s1 + $0x80] sm:$0xff]
  %v69 = vld [vmem:[%s1 + $0x88] sm:$0xff]
  %v70 = vld [vmem:[%s1 + $0x90] sm:$0xff]
  %v71 = vld [vmem:[%s1 + $0x98] sm:$0xff]
  %vm72 = vcmask 64512
  %v74 = vsel %vm72, %v52, 0
  %v77 = vsel %vm72, %v53, 0
  %v80 = vsel %vm72, %v54, 0
  %v83 = vsel %vm72, %v55, 0
  %v86 = vsel %vm72, %v56, 0
  %v89 = vsel %vm72, %v57, 0
  %v92 = vsel %vm72, %v58, 0
  %v95 = vsel %vm72, %v59, 0
  %v98 = vsel %vm72, %v60, 0
  %v101 = vsel %vm72, %v61, 0
  %v104 = vsel %vm72, %v62, 0
  %v107 = vsel %vm72, %v63, 0
  %v110 = vsel %vm72, %v64, 0
  %v113 = vsel %vm72, %v65, 0
  %v116 = vsel %vm72, %v66, 0
  %v119 = vsel %vm72, %v67, 0
  %v122 = vsel %vm72, %v68, 0
  %v125 = vsel %vm72, %v69, 0
  %v128 = vsel %vm72, %v70, 0
  %v131 = vsel %vm72, %v71, 0
  %133 = vmatprep.subr.mxu0 0.0
  %134 = vmatpush1.msra.mxu0 %v51
  %135 = vmatprep.subr.mxu0 0.0
  %136 = vmatpush1.msra.mxu0 0.0
  %137 = vmatprep.subr.mxu0 0.0
  %138 = vmatpush1.msra.mxu0 0.0
  %139 = vmatprep.subr.mxu0 0.0
  %140 = vmatpush1.msra.mxu0 0.0
  %141 = vmatprep.subr.mxu0 0.0
  %142 = vmatpush1.msra.mxu0 0.0
  %143 = vmatprep.subr.mxu0 0.0
  %144 = vmatpush1.msra.mxu0 0.0
  %145 = vmatprep.subr.mxu0 0.0
  %146 = vmatpush1.msra.mxu0 0.0
  %147 = vmatprep.subr.mxu0 0.0
  %148 = vmatpush1.msra.mxu0 0.0
  %149 = vmatprep.subr.mxu0 0.0
  %150 = vmatpush1.msra.mxu0 0.0
  %151 = vmatprep.subr.mxu0 0.0
  %152 = vmatpush1.msra.mxu0 0.0
  %153 = vmatprep.subr.mxu0 0.0
  %154 = vmatpush1.msra.mxu0 0.0
  %155 = vmatprep.subr.mxu0 0.0
  %156 = vmatpush1.msra.mxu0 0.0
  %157 = vmatprep.subr.mxu0 0.0
  %158 = vmatpush1.msra.mxu0 0.0
  %159 = vmatprep.subr.mxu0 0.0
  %160 = vmatpush1.msra.mxu0 0.0
  %161 = vmatprep.subr.mxu0 0.0
  %162 = vmatpush1.msra.mxu0 0.0
  %163 = vmatprep.subr.mxu0 0.0
  %164 = vmatpush1.msra.mxu0 0.0
  %165 = vmatprep.subr.mxu0 0.0
  %166 = vmatpush1.msra.mxu0 0.0
  %167 = vmatprep.subr.mxu0 0.0
  %168 = vmatpush1.msra.mxu0 0.0
  %169 = vmatprep.subr.mxu0 0.0
  %170 = vmatpush1.msra.mxu0 0.0
  %171 = vmatprep.subr.mxu0 0.0
  %172 = vmatpush1.msra.mxu0 0.0
  %173 = vmatprep.subr.mxu0 0.0
  %174 = vmatpush1.msra.mxu0 0.0
  %175 = vmatprep.subr.mxu0 0.0
  %176 = vmatpush1.msra.mxu0 0.0
  %177 = vmatprep.subr.mxu0 0.0
  %178 = vmatpush1.msra.mxu0 0.0
  %179 = vmatprep.subr.mxu0 0.0
  %180 = vmatpush1.msra.mxu0 0.0
  %181 = vmatprep.subr.mxu0 0.0
  %182 = vmatpush1.msra.mxu0 0.0
  %183 = vmatprep.subr.mxu0 0.0
  %184 = vmatpush1.msra.mxu0 0.0
  %185 = vmatprep.subr.mxu0 0.0
  %186 = vmatpush1.msra.mxu0 0.0
  %187 = vmatprep.subr.mxu0 0.0
  %188 = vmatpush1.msra.mxu0 0.0
  %189 = vmatprep.subr.mxu0 0.0
  %190 = vmatpush1.msra.mxu0 0.0
  %191 = vmatprep.subr.mxu0 0.0
  %192 = vmatpush1.msra.mxu0 0.0
  %193 = vmatprep.subr.mxu0 0.0
  %194 = vmatpush1.msra.mxu0 0.0
  %195 = vmatprep.subr.mxu0 0.0
  %196 = vmatpush1.msra.mxu0 0.0
  %197 = vmatprep.mubr.f32.mxu0 0.0
  %198 = vmatmul.mubr.f32.gmra.mrb[0].mxu0 %v74
  %v199 = vpop.f32.mrb[0].mxu0
  %v200 = vadd.f32 0.0, %v199
  %v201 = vpop.f32.mrb[0].mxu0
  %202 = vmatprep.mubr.f32.mxu0 0.0
  %203 = vmatmul.mubr.f32.gmra.mrb[0].mxu0 %v77
  %v204 = vpop.f32.mrb[0].mxu0
  %v205 = vadd.f32 0.0, %v204
  %v206 = vpop.f32.mrb[0].mxu0
  %207 = vmatprep.mubr.f32.mxu0 0.0
  %208 = vmatmul.mubr.f32.gmra.mrb[0].mxu0 %v80
  %v209 = vpop.f32.mrb[0].mxu0
  %v210 = vadd.f32 0.0, %v209
  %v211 = vpop.f32.mrb[0].mxu0
  %212 = vmatprep.mubr.f32.mxu0 0.0
  %213 = vmatmul.mubr.f32.gmra.mrb[0].mxu0 %v83
  %v214 = vpop.f32.mrb[0].mxu0
  %v215 = vadd.f32 0.0, %v214
  %v216 = vpop.f32.mrb[0].mxu0
  %217 = vmatprep.mubr.f32.mxu0 0.0
  %218 = vmatmul.mubr.f32.gmra.mrb[0].mxu0 %v86
  %v219 = vpop.f32.mrb[0].mxu0
  %v220 = vadd.f32 0.0, %v219
  %v221 = vpop.f32.mrb[0].mxu0
  %222 = vmatprep.mubr.f32.mxu0 0.0
  %223 = vmatmul.mubr.f32.gmra.mrb[0].mxu0 %v89
  %v224 = vpop.f32.mrb[0].mxu0
  %v225 = vadd.f32 0.0, %v224
  %v226 = vpop.f32.mrb[0].mxu0
  %227 = vmatprep.mubr.f32.mxu0 0.0
  %228 = vmatmul.mubr.f32.gmra.mrb[0].mxu0 %v92
  %v229 = vpop.f32.mrb[0].mxu0
  %v230 = vadd.f32 0.0, %v229
  %v231 = vpop.f32.mrb[0].mxu0
  %232 = vmatprep.mubr.f32.mxu0 0.0
  %233 = vmatmul.mubr.f32.gmra.mrb[0].mxu0 %v95
  %v234 = vpop.f32.mrb[0].mxu0
  %v235 = vadd.f32 0.0, %v234
  %v236 = vpop.f32.mrb[0].mxu0
  %237 = vmatprep.mubr.f32.mxu0 0.0
  %238 = vmatmul.mubr.f32.gmra.mrb[0].mxu0 %v98
  %v239 = vpop.f32.mrb[0].mxu0
  %v240 = vadd.f32 0.0, %v239
  %v241 = vpop.f32.mrb[0].mxu0
  %242 = vmatprep.mubr.f32.mxu0 0.0
  %243 = vmatmul.mubr.f32.gmra.mrb[0].mxu0 %v101
  %v244 = vpop.f32.mrb[0].mxu0
  %v245 = vadd.f32 0.0, %v244
  %v246 = vpop.f32.mrb[0].mxu0
  %247 = vmatprep.mubr.f32.mxu0 0.0
  %248 = vmatmul.mubr.f32.gmra.mrb[0].mxu0 %v104
  %v249 = vpop.f32.mrb[0].mxu0
  %v250 = vadd.f32 0.0, %v249
  %v251 = vpop.f32.mrb[0].mxu0
  %252 = vmatprep.mubr.f32.mxu0 0.0
  %253 = vmatmul.mubr.f32.gmra.mrb[0].mxu0 %v107
  %v254 = vpop.f32.mrb[0].mxu0
  %v255 = vadd.f32 0.0, %v254
  %v256 = vpop.f32.mrb[0].mxu0
  %257 = vmatprep.mubr.f32.mxu0 0.0
  %258 = vmatmul.mubr.f32.gmra.mrb[0].mxu0 %v110
  %v259 = vpop.f32.mrb[0].mxu0
  %v260 = vadd.f32 0.0, %v259
  %v261 = vpop.f32.mrb[0].mxu0
  %262 = vmatprep.mubr.f32.mxu0 0.0
  %263 = vmatmul.mubr.f32.gmra.mrb[0].mxu0 %v113
  %v264 = vpop.f32.mrb[0].mxu0
  %v265 = vadd.f32 0.0, %v264
  %v266 = vpop.f32.mrb[0].mxu0
  %267 = vmatprep.mubr.f32.mxu0 0.0
  %268 = vmatmul.mubr.f32.gmra.mrb[0].mxu0 %v116
  %v269 = vpop.f32.mrb[0].mxu0
  %v270 = vadd.f32 0.0, %v269
  %v271 = vpop.f32.mrb[0].mxu0
  %272 = vmatprep.mubr.f32.mxu0 0.0
  %273 = vmatmul.mubr.f32.gmra.mrb[0].mxu0 %v119
  %v274 = vpop.f32.mrb[0].mxu0
  %v275 = vadd.f32 0.0, %v274
  %v276 = vpop.f32.mrb[0].mxu0
  %277 = vmatprep.mubr.f32.mxu0 0.0
  %278 = vmatmul.mubr.f32.gmra.mrb[0].mxu0 %v122
  %v279 = vpop.f32.mrb[0].mxu0
  %v280 = vadd.f32 0.0, %v279
  %v281 = vpop.f32.mrb[0].mxu0
  %282 = vmatprep.mubr.f32.mxu0 0.0
  %283 = vmatmul.mubr.f32.gmra.mrb[0].mxu0 %v125
  %v284 = vpop.f32.mrb[0].mxu0
  %v285 = vadd.f32 0.0, %v284
  %v286 = vpop.f32.mrb[0].mxu0
  %287 = vmatprep.mubr.f32.mxu0 0.0
  %288 = vmatmul.mubr.f32.gmra.mrb[0].mxu0 %v128
  %v289 = vpop.f32.mrb[0].mxu0
  %v290 = vadd.f32 0.0, %v289
  %v291 = vpop.f32.mrb[0].mxu0
  %292 = vmatprep.mubr.f32.mxu0 0.0
  %293 = vmatmul.mubr.f32.gmra.mrb[0].mxu0 %v131
  %v294 = vpop.f32.mrb[0].mxu0
  %v295 = vadd.f32 0.0, %v294
  %v296 = vpop.f32.mrb[0].mxu0
  %297 = vdwg.mxu0
  %302 = vrot.lane.b32.xlu0 %v220, 127
  %v303 = vpop.permute.xlu0 %302
  %304 = vrot.lane.b32.xlu0 %v225, 127
  %v305 = vpop.permute.xlu0 %304
  %306 = vrot.lane.b32.xlu0 %v230, 127
  %v307 = vpop.permute.xlu0 %306
  %308 = vrot.lane.b32.xlu0 %v235, 127
  %v309 = vpop.permute.xlu0 %308
  %314 = vrot.lane.b32.xlu0 %v220, 63
  %v315 = vpop.permute.xlu0 %314
  %316 = vrot.lane.b32.xlu0 %v225, 63
  %v317 = vpop.permute.xlu0 %316
  %318 = vrot.lane.b32.xlu0 %v230, 63
  %v319 = vpop.permute.xlu0 %318
  %320 = vrot.lane.b32.xlu0 %v235, 63
  %v321 = vpop.permute.xlu0 %320
  %vm326 = vcmask 515072
  %v327 = vsel %vm326, %v303, %v315
  %v328 = vsel %vm326, %v305, %v317
  %v329 = vsel %vm326, %v307, %v319
  %v330 = vsel %vm326, %v309, %v321
  %v331 = vadd.f32 %v200, %v327
  %v332 = vadd.f32 %v205, %v328
  %v333 = vadd.f32 %v210, %v329
  %v334 = vadd.f32 %v215, %v330
  %339 = vrot.lane.b32.xlu0 %v240, 126
  %v340 = vpop.permute.xlu0 %339
  %341 = vrot.lane.b32.xlu0 %v245, 126
  %v342 = vpop.permute.xlu0 %341
  %343 = vrot.lane.b32.xlu0 %v250, 126
  %v344 = vpop.permute.xlu0 %343
  %345 = vrot.lane.b32.xlu0 %v255, 126
  %v346 = vpop.permute.xlu0 %345
  %351 = vrot.lane.b32.xlu0 %v240, 62
  %v352 = vpop.permute.xlu0 %351
  %353 = vrot.lane.b32.xlu0 %v245, 62
  %v354 = vpop.permute.xlu0 %353
  %355 = vrot.lane.b32.xlu0 %v250, 62
  %v356 = vpop.permute.xlu0 %355
  %357 = vrot.lane.b32.xlu0 %v255, 62
  %v358 = vpop.permute.xlu0 %357
  %vm363 = vcmask 506880
  %v364 = vsel %vm363, %v340, %v352
  %v365 = vsel %vm363, %v342, %v354
  %v366 = vsel %vm363, %v344, %v356
  %v367 = vsel %vm363, %v346, %v358
  %v368 = vadd.f32 %v331, %v364
  %v369 = vadd.f32 %v332, %v365
  %v370 = vadd.f32 %v333, %v366
  %v371 = vadd.f32 %v334, %v367
  %376 = vrot.lane.b32.xlu0 %v260, 125
  %v377 = vpop.permute.xlu0 %376
  %378 = vrot.lane.b32.xlu0 %v265, 125
  %v379 = vpop.permute.xlu0 %378
  %380 = vrot.lane.b32.xlu0 %v270, 125
  %v381 = vpop.permute.xlu0 %380
  %382 = vrot.lane.b32.xlu0 %v275, 125
  %v383 = vpop.permute.xlu0 %382
  %388 = vrot.lane.b32.xlu0 %v260, 61
  %v389 = vpop.permute.xlu0 %388
  %390 = vrot.lane.b32.xlu0 %v265, 61
  %v391 = vpop.permute.xlu0 %390
  %392 = vrot.lane.b32.xlu0 %v270, 61
  %v393 = vpop.permute.xlu0 %392
  %394 = vrot.lane.b32.xlu0 %v275, 61
  %v395 = vpop.permute.xlu0 %394
  %vm400 = vcmask 498688
  %v401 = vsel %vm400, %v377, %v389
  %v402 = vsel %vm400, %v379, %v391
  %v403 = vsel %vm400, %v381, %v393
  %v404 = vsel %vm400, %v383, %v395
  %v405 = vadd.f32 %v368, %v401
  %v406 = vadd.f32 %v369, %v402
  %v407 = vadd.f32 %v370, %v403
  %v408 = vadd.f32 %v371, %v404
  %413 = vrot.lane.b32.xlu0 %v280, 124
  %v414 = vpop.permute.xlu0 %413
  %415 = vrot.lane.b32.xlu0 %v285, 124
  %v416 = vpop.permute.xlu0 %415
  %417 = vrot.lane.b32.xlu0 %v290, 124
  %v418 = vpop.permute.xlu0 %417
  %419 = vrot.lane.b32.xlu0 %v295, 124
  %v420 = vpop.permute.xlu0 %419
  %425 = vrot.lane.b32.xlu0 %v280, 60
  %v426 = vpop.permute.xlu0 %425
  %427 = vrot.lane.b32.xlu0 %v285, 60
  %v428 = vpop.permute.xlu0 %427
  %429 = vrot.lane.b32.xlu0 %v290, 60
  %v430 = vpop.permute.xlu0 %429
  %431 = vrot.lane.b32.xlu0 %v295, 60
  %v432 = vpop.permute.xlu0 %431
  %vm437 = vcmask 490496
  %v438 = vsel %vm437, %v414, %v426
  %v439 = vsel %vm437, %v416, %v428
  %v440 = vsel %vm437, %v418, %v430
  %v441 = vsel %vm437, %v420, %v432
  %v442 = vadd.f32 %v405, %v438
  %v443 = vadd.f32 %v406, %v439
  %v444 = vadd.f32 %v407, %v440
  %v445 = vadd.f32 %v408, %v441
  %v446 = vld [vmem:[%s2] sm:$0xff]
  %v447 = vld [vmem:[%s2 + $0x8] sm:$0xff]
  %v448 = vld [vmem:[%s2 + $0x10] sm:$0xff]
  %v449 = vld [vmem:[%s2 + $0x18] sm:$0xff]
  %451 = vset.pattern.permute.xlu0 0
  %452 = vperm.xlu0 %451, %v446
  %v453 = vpop.permute.xlu0 %452
  %456 = vset.pattern.permute.xlu0 0
  %457 = vperm.xlu0 %456, %v447
  %v458 = vpop.permute.xlu0 %457
  %461 = vset.pattern.permute.xlu0 0
  %462 = vperm.xlu0 %461, %v448
  %v463 = vpop.permute.xlu0 %462
  %466 = vset.pattern.permute.xlu0 0
  %467 = vperm.xlu0 %466, %v449
  %v468 = vpop.permute.xlu0 %467
  %v470 = vadd.f32 %v442, %v453
  %v471 = vadd.f32 %v443, %v458
  %v472 = vadd.f32 %v444, %v463
  %v473 = vadd.f32 %v445, %v468
  %v474 = vmax.f32 %v470, 0.0
  %v475 = vmax.f32 %v471, 0.0
  %v476 = vmax.f32 %v472, 0.0
  %v477 = vmax.f32 %v473, 0.0
  %v478 = vadd.f32 %v474, %v475
  %v479 = vadd.f32 %v476, %v477
  %481 = vrot.lane.b32.xlu0 %v479, 64
  %v482 = vpop.permute.xlu0 %481
  %vm484 = vcmask 523264
  %v485 = vsel %vm484, %v478, %v482
  %v486 = vld [vmem:[%s3] sm:$0xff]
  %v487 = vld [vmem:[%s3 + $0x8] sm:$0xff]
  %v488 = vld [vmem:[%s3 + $0x10] sm:$0xff]
  %v489 = vld [vmem:[%s3 + $0x18] sm:$0xff]
  %v490 = vld [vmem:[%s3 + $0x20] sm:$0xff]
  %v491 = vld [vmem:[%s3 + $0x28] sm:$0xff]
  %v492 = vld [vmem:[%s3 + $0x30] sm:$0xff]
  %v493 = vld [vmem:[%s3 + $0x38] sm:$0xff]
  %v494 = vld [vmem:[%s3 + $0x40] sm:$0xff]
  %v495 = vld [vmem:[%s3 + $0x48] sm:$0xff]
  %v496 = vld [vmem:[%s3 + $0x50] sm:$0xff]
  %v497 = vld [vmem:[%s3 + $0x58] sm:$0xff]
  %v498 = vld [vmem:[%s3 + $0x60] sm:$0xff]
  %v499 = vld [vmem:[%s3 + $0x68] sm:$0xff]
  %v500 = vld [vmem:[%s3 + $0x70] sm:$0xff]
  %v501 = vld [vmem:[%s3 + $0x78] sm:$0xff]
  %502 = vmatprep.subr.mxu0 0.0
  %503 = vmatpush1.msra.mxu0 %v486
  %504 = vmatprep.subr.mxu0 0.0
  %505 = vmatpush1.msra.mxu0 %v487
  %506 = vmatprep.subr.mxu0 0.0
  %507 = vmatpush1.msra.mxu0 %v488
  %508 = vmatprep.subr.mxu0 0.0
  %509 = vmatpush1.msra.mxu0 %v489
  %510 = vmatprep.subr.mxu0 0.0
  %511 = vmatpush1.msra.mxu0 %v490
  %512 = vmatprep.subr.mxu0 0.0
  %513 = vmatpush1.msra.mxu0 %v491
  %514 = vmatprep.subr.mxu0 0.0
  %515 = vmatpush1.msra.mxu0 %v492
  %516 = vmatprep.subr.mxu0 0.0
  %517 = vmatpush1.msra.mxu0 %v493
  %518 = vmatprep.subr.mxu0 0.0
  %519 = vmatpush1.msra.mxu0 %v494
  %520 = vmatprep.subr.mxu0 0.0
  %521 = vmatpush1.msra.mxu0 %v495
  %522 = vmatprep.subr.mxu0 0.0
  %523 = vmatpush1.msra.mxu0 %v496
  %524 = vmatprep.subr.mxu0 0.0
  %525 = vmatpush1.msra.mxu0 %v497
  %526 = vmatprep.subr.mxu0 0.0
  %527 = vmatpush1.msra.mxu0 %v498
  %528 = vmatprep.subr.mxu0 0.0
  %529 = vmatpush1.msra.mxu0 %v499
  %530 = vmatprep.subr.mxu0 0.0
  %531 = vmatpush1.msra.mxu0 %v500
  %532 = vmatprep.subr.mxu0 0.0
  %533 = vmatpush1.msra.mxu0 %v501
  %534 = vmatprep.subr.mxu0 0.0
  %535 = vmatpush1.msra.mxu0 0.0
  %536 = vmatprep.subr.mxu0 0.0
  %537 = vmatpush1.msra.mxu0 0.0
  %538 = vmatprep.subr.mxu0 0.0
  %539 = vmatpush1.msra.mxu0 0.0
  %540 = vmatprep.subr.mxu0 0.0
  %541 = vmatpush1.msra.mxu0 0.0
  %542 = vmatprep.subr.mxu0 0.0
  %543 = vmatpush1.msra.mxu0 0.0
  %544 = vmatprep.subr.mxu0 0.0
  %545 = vmatpush1.msra.mxu0 0.0
  %546 = vmatprep.subr.mxu0 0.0
  %547 = vmatpush1.msra.mxu0 0.0
  %548 = vmatprep.subr.mxu0 0.0
  %549 = vmatpush1.msra.mxu0 0.0
  %550 = vmatprep.subr.mxu0 0.0
  %551 = vmatpush1.msra.mxu0 0.0
  %552 = vmatprep.subr.mxu0 0.0
  %553 = vmatpush1.msra.mxu0 0.0
  %554 = vmatprep.subr.mxu0 0.0
  %555 = vmatpush1.msra.mxu0 0.0
  %556 = vmatprep.subr.mxu0 0.0
  %557 = vmatpush1.msra.mxu0 0.0
  %558 = vmatprep.subr.mxu0 0.0
  %559 = vmatpush1.msra.mxu0 0.0
  %560 = vmatprep.subr.mxu0 0.0
  %561 = vmatpush1.msra.mxu0 0.0
  %562 = vmatprep.subr.mxu0 0.0
  %563 = vmatpush1.msra.mxu0 0.0
  %564 = vmatprep.subr.mxu0 0.0
  %565 = vmatpush1.msra.mxu0 0.0
  %566 = vmatprep.mubr.f32.mxu0 0.0
  %567 = vmatmul.mubr.f32.gmra.mrb[0].mxu0 %v485
  %v568 = vpop.f32.mrb[0].mxu0
  %v569 = vadd.f32 0.0, %v568
  %v570 = vpop.f32.mrb[0].mxu0
  %571 = vdwg.mxu0
  %v572 = vld [vmem:[%s0 + $0x4] sm:$0xff]
  %v573 = vld [vmem:[%s0 + $0x2c] sm:$0xff]
  %575 = vrot.lane.b32.xlu0 %v573, 32
  %v576 = vpop.permute.xlu0 %575
  %v578 = vsel %vm50, %v572, %v576
  %579 = vmatprep.subr.mxu0 0.0
  %580 = vmatpush1.msra.mxu0 %v578
  %581 = vmatprep.subr.mxu0 0.0
  %582 = vmatpush1.msra.mxu0 0.0
  %583 = vmatprep.subr.mxu0 0.0
  %584 = vmatpush1.msra.mxu0 0.0
  %585 = vmatprep.subr.mxu0 0.0
  %586 = vmatpush1.msra.mxu0 0.0
  %587 = vmatprep.subr.mxu0 0.0
  %588 = vmatpush1.msra.mxu0 0.0
  %589 = vmatprep.subr.mxu0 0.0
  %590 = vmatpush1.msra.mxu0 0.0
  %591 = vmatprep.subr.mxu0 0.0
  %592 = vmatpush1.msra.mxu0 0.0
  %593 = vmatprep.subr.mxu0 0.0
  %594 = vmatpush1.msra.mxu0 0.0
  %595 = vmatprep.subr.mxu0 0.0
  %596 = vmatpush1.msra.mxu0 0.0
  %597 = vmatprep.subr.mxu0 0.0
  %598 = vmatpush1.msra.mxu0 0.0
  %599 = vmatprep.subr.mxu0 0.0
  %600 = vmatpush1.msra.mxu0 0.0
  %601 = vmatprep.subr.mxu0 0.0
  %602 = vmatpush1.msra.mxu0 0.0
  %603 = vmatprep.subr.mxu0 0.0
  %604 = vmatpush1.msra.mxu0 0.0
  %605 = vmatprep.subr.mxu0 0.0
  %606 = vmatpush1.msra.mxu0 0.0
  %607 = vmatprep.subr.mxu0 0.0
  %608 = vmatpush1.msra.mxu0 0.0
  %609 = vmatprep.subr.mxu0 0.0
  %610 = vmatpush1.msra.mxu0 0.0
  %611 = vmatprep.subr.mxu0 0.0
  %612 = vmatpush1.msra.mxu0 0.0
  %613 = vmatprep.subr.mxu0 0.0
  %614 = vmatpush1.msra.mxu0 0.0
  %615 = vmatprep.subr.mxu0 0.0
  %616 = vmatpush1.msra.mxu0 0.0
  %617 = vmatprep.subr.mxu0 0.0
  %618 = vmatpush1.msra.mxu0 0.0
  %619 = vmatprep.subr.mxu0 0.0
  %620 = vmatpush1.msra.mxu0 0.0
  %621 = vmatprep.subr.mxu0 0.0
  %622 = vmatpush1.msra.mxu0 0.0
  %623 = vmatprep.subr.mxu0 0.0
  %624 = vmatpush1.msra.mxu0 0.0
  %625 = vmatprep.subr.mxu0 0.0
  %626 = vmatpush1.msra.mxu0 0.0
  %627 = vmatprep.subr.mxu0 0.0
  %628 = vmatpush1.msra.mxu0 0.0
  %629 = vmatprep.subr.mxu0 0.0
  %630 = vmatpush1.msra.mxu0 0.0
  %631 = vmatprep.subr.mxu0 0.0
  %632 = vmatpush1.msra.mxu0 0.0
  %633 = vmatprep.subr.mxu0 0.0
  %634 = vmatpush1.msra.mxu0 0.0
  %635 = vmatprep.subr.mxu0 0.0
  %636 = vmatpush1.msra.mxu0 0.0
  %637 = vmatprep.subr.mxu0 0.0
  %638 = vmatpush1.msra.mxu0 0.0
  %639 = vmatprep.subr.mxu0 0.0
  %640 = vmatpush1.msra.mxu0 0.0
  %641 = vmatprep.subr.mxu0 0.0
  %642 = vmatpush1.msra.mxu0 0.0
  %643 = vmatprep.mubr.f32.mxu0 0.0
  %644 = vmatmul.mubr.f32.gmra.mrb[0].mxu0 %v74
  %v645 = vpop.f32.mrb[0].mxu0
  %v646 = vadd.f32 0.0, %v645
  %v647 = vpop.f32.mrb[0].mxu0
  %648 = vmatprep.mubr.f32.mxu0 0.0
  %649 = vmatmul.mubr.f32.gmra.mrb[0].mxu0 %v77
  %v650 = vpop.f32.mrb[0].mxu0
  %v651 = vadd.f32 0.0, %v650
  %v652 = vpop.f32.mrb[0].mxu0
  %653 = vmatprep.mubr.f32.mxu0 0.0
  %654 = vmatmul.mubr.f32.gmra.mrb[0].mxu0 %v80
  %v655 = vpop.f32.mrb[0].mxu0
  %v656 = vadd.f32 0.0, %v655
  %v657 = vpop.f32.mrb[0].mxu0
  %658 = vmatprep.mubr.f32.mxu0 0.0
  %659 = vmatmul.mubr.f32.gmra.mrb[0].mxu0 %v83
  %v660 = vpop.f32.mrb[0].mxu0
  %v661 = vadd.f32 0.0, %v660
  %v662 = vpop.f32.mrb[0].mxu0
  %663 = vmatprep.mubr.f32.mxu0 0.0
  %664 = vmatmul.mubr.f32.gmra.mrb[0].mxu0 %v86
  %v665 = vpop.f32.mrb[0].mxu0
  %v666 = vadd.f32 0.0, %v665
  %v667 = vpop.f32.mrb[0].mxu0
  %668 = vmatprep.mubr.f32.mxu0 0.0
  %669 = vmatmul.mubr.f32.gmra.mrb[0].mxu0 %v89
  %v670 = vpop.f32.mrb[0].mxu0
  %v671 = vadd.f32 0.0, %v670
  %v672 = vpop.f32.mrb[0].mxu0
  %673 = vmatprep.mubr.f32.mxu0 0.0
  %674 = vmatmul.mubr.f32.gmra.mrb[0].mxu0 %v92
  %v675 = vpop.f32.mrb[0].mxu0
  %v676 = vadd.f32 0.0, %v675
  %v677 = vpop.f32.mrb[0].mxu0
  %678 = vmatprep.mubr.f32.mxu0 0.0
  %679 = vmatmul.mubr.f32.gmra.mrb[0].mxu0 %v95
  %v680 = vpop.f32.mrb[0].mxu0
  %v681 = vadd.f32 0.0, %v680
  %v682 = vpop.f32.mrb[0].mxu0
  %683 = vmatprep.mubr.f32.mxu0 0.0
  %684 = vmatmul.mubr.f32.gmra.mrb[0].mxu0 %v98
  %v685 = vpop.f32.mrb[0].mxu0
  %v686 = vadd.f32 0.0, %v685
  %v687 = vpop.f32.mrb[0].mxu0
  %688 = vmatprep.mubr.f32.mxu0 0.0
  %689 = vmatmul.mubr.f32.gmra.mrb[0].mxu0 %v101
  %v690 = vpop.f32.mrb[0].mxu0
  %v691 = vadd.f32 0.0, %v690
  %v692 = vpop.f32.mrb[0].mxu0
  %693 = vmatprep.mubr.f32.mxu0 0.0
  %694 = vmatmul.mubr.f32.gmra.mrb[0].mxu0 %v104
  %v695 = vpop.f32.mrb[0].mxu0
  %v696 = vadd.f32 0.0, %v695
  %v697 = vpop.f32.mrb[0].mxu0
  %698 = vmatprep.mubr.f32.mxu0 0.0
  %699 = vmatmul.mubr.f32.gmra.mrb[0].mxu0 %v107
  %v700 = vpop.f32.mrb[0].mxu0
  %v701 = vadd.f32 0.0, %v700
  %v702 = vpop.f32.mrb[0].mxu0
  %703 = vmatprep.mubr.f32.mxu0 0.0
  %704 = vmatmul.mubr.f32.gmra.mrb[0].mxu0 %v110
  %v705 = vpop.f32.mrb[0].mxu0
  %v706 = vadd.f32 0.0, %v705
  %v707 = vpop.f32.mrb[0].mxu0
  %708 = vmatprep.mubr.f32.mxu0 0.0
  %709 = vmatmul.mubr.f32.gmra.mrb[0].mxu0 %v113
  %v710 = vpop.f32.mrb[0].mxu0
  %v711 = vadd.f32 0.0, %v710
  %v712 = vpop.f32.mrb[0].mxu0
  %713 = vmatprep.mubr.f32.mxu0 0.0
  %714 = vmatmul.mubr.f32.gmra.mrb[0].mxu0 %v116
  %v715 = vpop.f32.mrb[0].mxu0
  %v716 = vadd.f32 0.0, %v715
  %v717 = vpop.f32.mrb[0].mxu0
  %718 = vmatprep.mubr.f32.mxu0 0.0
  %719 = vmatmul.mubr.f32.gmra.mrb[0].mxu0 %v119
  %v720 = vpop.f32.mrb[0].mxu0
  %v721 = vadd.f32 0.0, %v720
  %v722 = vpop.f32.mrb[0].mxu0
  %723 = vmatprep.mubr.f32.mxu0 0.0
  %724 = vmatmul.mubr.f32.gmra.mrb[0].mxu0 %v122
  %v725 = vpop.f32.mrb[0].mxu0
  %v726 = vadd.f32 0.0, %v725
  %v727 = vpop.f32.mrb[0].mxu0
  %728 = vmatprep.mubr.f32.mxu0 0.0
  %729 = vmatmul.mubr.f32.gmra.mrb[0].mxu0 %v125
  %v730 = vpop.f32.mrb[0].mxu0
  %v731 = vadd.f32 0.0, %v730
  %v732 = vpop.f32.mrb[0].mxu0
  %733 = vmatprep.mubr.f32.mxu0 0.0
  %734 = vmatmul.mubr.f32.gmra.mrb[0].mxu0 %v128
  %v735 = vpop.f32.mrb[0].mxu0
  %v736 = vadd.f32 0.0, %v735
  %v737 = vpop.f32.mrb[0].mxu0
  %738 = vmatprep.mubr.f32.mxu0 0.0
  %739 = vmatmul.mubr.f32.gmra.mrb[0].mxu0 %v131
  %v740 = vpop.f32.mrb[0].mxu0
  %v741 = vadd.f32 0.0, %v740
  %v742 = vpop.f32.mrb[0].mxu0
  %743 = vdwg.mxu0
  %748 = vrot.lane.b32.xlu0 %v666, 127
  %v749 = vpop.permute.xlu0 %748
  %750 = vrot.lane.b32.xlu0 %v671, 127
  %v751 = vpop.permute.xlu0 %750
  %752 = vrot.lane.b32.xlu0 %v676, 127
  %v753 = vpop.permute.xlu0 %752
  %754 = vrot.lane.b32.xlu0 %v681, 127
  %v755 = vpop.permute.xlu0 %754
  %760 = vrot.lane.b32.xlu0 %v666, 63
  %v761 = vpop.permute.xlu0 %760
  %762 = vrot.lane.b32.xlu0 %v671, 63
  %v763 = vpop.permute.xlu0 %762
  %764 = vrot.lane.b32.xlu0 %v676, 63
  %v765 = vpop.permute.xlu0 %764
  %766 = vrot.lane.b32.xlu0 %v681, 63
  %v767 = vpop.permute.xlu0 %766
  %v772 = vsel %vm326, %v749, %v761
  %v773 = vsel %vm326, %v751, %v763
  %v774 = vsel %vm326, %v753, %v765
  %v775 = vsel %vm326, %v755, %v767
  %v776 = vadd.f32 %v646, %v772
  %v777 = vadd.f32 %v651, %v773
  %v778 = vadd.f32 %v656, %v774
  %v779 = vadd.f32 %v661, %v775
  %784 = vrot.lane.b32.xlu0 %v686, 126
  %v785 = vpop.permute.xlu0 %784
  %786 = vrot.lane.b32.xlu0 %v691, 126
  %v787 = vpop.permute.xlu0 %786
  %788 = vrot.lane.b32.xlu0 %v696, 126
  %v789 = vpop.permute.xlu0 %788
  %790 = vrot.lane.b32.xlu0 %v701, 126
  %v791 = vpop.permute.xlu0 %790
  %796 = vrot.lane.b32.xlu0 %v686, 62
  %v797 = vpop.permute.xlu0 %796
  %798 = vrot.lane.b32.xlu0 %v691, 62
  %v799 = vpop.permute.xlu0 %798
  %800 = vrot.lane.b32.xlu0 %v696, 62
  %v801 = vpop.permute.xlu0 %800
  %802 = vrot.lane.b32.xlu0 %v701, 62
  %v803 = vpop.permute.xlu0 %802
  %v808 = vsel %vm363, %v785, %v797
  %v809 = vsel %vm363, %v787, %v799
  %v810 = vsel %vm363, %v789, %v801
  %v811 = vsel %vm363, %v791, %v803
  %v812 = vadd.f32 %v776, %v808
  %v813 = vadd.f32 %v777, %v809
  %v814 = vadd.f32 %v778, %v810
  %v815 = vadd.f32 %v779, %v811
  %820 = vrot.lane.b32.xlu0 %v706, 125
  %v821 = vpop.permute.xlu0 %820
  %822 = vrot.lane.b32.xlu0 %v711, 125
  %v823 = vpop.permute.xlu0 %822
  %824 = vrot.lane.b32.xlu0 %v716, 125
  %v825 = vpop.permute.xlu0 %824
  %826 = vrot.lane.b32.xlu0 %v721, 125
  %v827 = vpop.permute.xlu0 %826
  %832 = vrot.lane.b32.xlu0 %v706, 61
  %v833 = vpop.permute.xlu0 %832
  %834 = vrot.lane.b32.xlu0 %v711, 61
  %v835 = vpop.permute.xlu0 %834
  %836 = vrot.lane.b32.xlu0 %v716, 61
  %v837 = vpop.permute.xlu0 %836
  %838 = vrot.lane.b32.xlu0 %v721, 61
  %v839 = vpop.permute.xlu0 %838
  %v844 = vsel %vm400, %v821, %v833
  %v845 = vsel %vm400, %v823, %v835
  %v846 = vsel %vm400, %v825, %v837
  %v847 = vsel %vm400, %v827, %v839
  %v848 = vadd.f32 %v812, %v844
  %v849 = vadd.f32 %v813, %v845
  %v850 = vadd.f32 %v814, %v846
  %v851 = vadd.f32 %v815, %v847
  %856 = vrot.lane.b32.xlu0 %v726, 124
  %v857 = vpop.permute.xlu0 %856
  %858 = vrot.lane.b32.xlu0 %v731, 124
  %v859 = vpop.permute.xlu0 %858
  %860 = vrot.lane.b32.xlu0 %v736, 124
  %v861 = vpop.permute.xlu0 %860
  %862 = vrot.lane.b32.xlu0 %v741, 124
  %v863 = vpop.permute.xlu0 %862
  %868 = vrot.lane.b32.xlu0 %v726, 60
  %v869 = vpop.permute.xlu0 %868
  %870 = vrot.lane.b32.xlu0 %v731, 60
  %v871 = vpop.permute.xlu0 %870
  %872 = vrot.lane.b32.xlu0 %v736, 60
  %v873 = vpop.permute.xlu0 %872
  %874 = vrot.lane.b32.xlu0 %v741, 60
  %v875 = vpop.permute.xlu0 %874
  %v880 = vsel %vm437, %v857, %v869
  %v881 = vsel %vm437, %v859, %v871
  %v882 = vsel %vm437, %v861, %v873
  %v883 = vsel %vm437, %v863, %v875
  %v884 = vadd.f32 %v848, %v880
  %v885 = vadd.f32 %v849, %v881
  %v886 = vadd.f32 %v850, %v882
  %v887 = vadd.f32 %v851, %v883
  %v888 = vadd.f32 %v884, %v453
  %v889 = vadd.f32 %v885, %v458
  %v890 = vadd.f32 %v886, %v463
  %v891 = vadd.f32 %v887, %v468
  %v892 = vmax.f32 %v888, 0.0
  %v893 = vmax.f32 %v889, 0.0
  %v894 = vmax.f32 %v890, 0.0
  %v895 = vmax.f32 %v891, 0.0
  %v896 = vadd.f32 %v892, %v893
  %v897 = vadd.f32 %v894, %v895
  %899 = vrot.lane.b32.xlu0 %v897, 64
  %v900 = vpop.permute.xlu0 %899
  %v902 = vsel %vm484, %v896, %v900
  %903 = vmatprep.subr.mxu0 0.0
  %904 = vmatpush1.msra.mxu0 %v486
  %905 = vmatprep.subr.mxu0 0.0
  %906 = vmatpush1.msra.mxu0 %v487
  %907 = vmatprep.subr.mxu0 0.0
  %908 = vmatpush1.msra.mxu0 %v488
  %909 = vmatprep.subr.mxu0 0.0
  %910 = vmatpush1.msra.mxu0 %v489
  %911 = vmatprep.subr.mxu0 0.0
  %912 = vmatpush1.msra.mxu0 %v490
  %913 = vmatprep.subr.mxu0 0.0
  %914 = vmatpush1.msra.mxu0 %v491
  %915 = vmatprep.subr.mxu0 0.0
  %916 = vmatpush1.msra.mxu0 %v492
  %917 = vmatprep.subr.mxu0 0.0
  %918 = vmatpush1.msra.mxu0 %v493
  %919 = vmatprep.subr.mxu0 0.0
  %920 = vmatpush1.msra.mxu0 %v494
  %921 = vmatprep.subr.mxu0 0.0
  %922 = vmatpush1.msra.mxu0 %v495
  %923 = vmatprep.subr.mxu0 0.0
  %924 = vmatpush1.msra.mxu0 %v496
  %925 = vmatprep.subr.mxu0 0.0
  %926 = vmatpush1.msra.mxu0 %v497
  %927 = vmatprep.subr.mxu0 0.0
  %928 = vmatpush1.msra.mxu0 %v498
  %929 = vmatprep.subr.mxu0 0.0
  %930 = vmatpush1.msra.mxu0 %v499
  %931 = vmatprep.subr.mxu0 0.0
  %932 = vmatpush1.msra.mxu0 %v500
  %933 = vmatprep.subr.mxu0 0.0
  %934 = vmatpush1.msra.mxu0 %v501
  %935 = vmatprep.subr.mxu0 0.0
  %936 = vmatpush1.msra.mxu0 0.0
  %937 = vmatprep.subr.mxu0 0.0
  %938 = vmatpush1.msra.mxu0 0.0
  %939 = vmatprep.subr.mxu0 0.0
  %940 = vmatpush1.msra.mxu0 0.0
  %941 = vmatprep.subr.mxu0 0.0
  %942 = vmatpush1.msra.mxu0 0.0
  %943 = vmatprep.subr.mxu0 0.0
  %944 = vmatpush1.msra.mxu0 0.0
  %945 = vmatprep.subr.mxu0 0.0
  %946 = vmatpush1.msra.mxu0 0.0
  %947 = vmatprep.subr.mxu0 0.0
  %948 = vmatpush1.msra.mxu0 0.0
  %949 = vmatprep.subr.mxu0 0.0
  %950 = vmatpush1.msra.mxu0 0.0
  %951 = vmatprep.subr.mxu0 0.0
  %952 = vmatpush1.msra.mxu0 0.0
  %953 = vmatprep.subr.mxu0 0.0
  %954 = vmatpush1.msra.mxu0 0.0
  %955 = vmatprep.subr.mxu0 0.0
  %956 = vmatpush1.msra.mxu0 0.0
  %957 = vmatprep.subr.mxu0 0.0
  %958 = vmatpush1.msra.mxu0 0.0
  %959 = vmatprep.subr.mxu0 0.0
  %960 = vmatpush1.msra.mxu0 0.0
  %961 = vmatprep.subr.mxu0 0.0
  %962 = vmatpush1.msra.mxu0 0.0
  %963 = vmatprep.subr.mxu0 0.0
  %964 = vmatpush1.msra.mxu0 0.0
  %965 = vmatprep.subr.mxu0 0.0
  %966 = vmatpush1.msra.mxu0 0.0
  %967 = vmatprep.mubr.f32.mxu0 0.0
  %968 = vmatmul.mubr.f32.gmra.mrb[0].mxu0 %v902
  %v969 = vpop.f32.mrb[0].mxu0
  %v970 = vadd.f32 0.0, %v969
  %v971 = vpop.f32.mrb[0].mxu0
  %972 = vdwg.mxu0
  %v973 = vld [vmem:[%s0 + $0x8] sm:$0xff]
  %v974 = vld [vmem:[%s0 + $0x30] sm:$0xff]
  %976 = vrot.lane.b32.xlu0 %v974, 32
  %v977 = vpop.permute.xlu0 %976
  %v979 = vsel %vm50, %v973, %v977
  %980 = vmatprep.subr.mxu0 0.0
  %981 = vmatpush1.msra.mxu0 %v979
  %982 = vmatprep.subr.mxu0 0.0
  %983 = vmatpush1.msra.mxu0 0.0
  %984 = vmatprep.subr.mxu0 0.0
  %985 = vmatpush1.msra.mxu0 0.0
  %986 = vmatprep.subr.mxu0 0.0
  %987 = vmatpush1.msra.mxu0 0.0
  %988 = vmatprep.subr.mxu0 0.0
  %989 = vmatpush1.msra.mxu0 0.0
  %990 = vmatprep.subr.mxu0 0.0
  %991 = vmatpush1.msra.mxu0 0.0
  %992 = vmatprep.subr.mxu0 0.0
  %993 = vmatpush1.msra.mxu0 0.0
  %994 = vmatprep.subr.mxu0 0.0
  %995 = vmatpush1.msra.mxu0 0.0
  %996 = vmatprep.subr.mxu0 0.0
  %997 = vmatpush1.msra.mxu0 0.0
  %998 = vmatprep.subr.mxu0 0.0
  %999 = vmatpush1.msra.mxu0 0.0
  %1000 = vmatprep.subr.mxu0 0.0
  %1001 = vmatpush1.msra.mxu0 0.0
  %1002 = vmatprep.subr.mxu0 0.0
  %1003 = vmatpush1.msra.mxu0 0.0
  %1004 = vmatprep.subr.mxu0 0.0
  %1005 = vmatpush1.msra.mxu0 0.0
  %1006 = vmatprep.subr.mxu0 0.0
  %1007 = vmatpush1.msra.mxu0 0.0
  %1008 = vmatprep.subr.mxu0 0.0
  %1009 = vmatpush1.msra.mxu0 0.0
  %1010 = vmatprep.subr.mxu0 0.0
  %1011 = vmatpush1.msra.mxu0 0.0
  %1012 = vmatprep.subr.mxu0 0.0
  %1013 = vmatpush1.msra.mxu0 0.0
  %1014 = vmatprep.subr.mxu0 0.0
  %1015 = vmatpush1.msra.mxu0 0.0
  %1016 = vmatprep.subr.mxu0 0.0
  %1017 = vmatpush1.msra.mxu0 0.0
  %1018 = vmatprep.subr.mxu0 0.0
  %1019 = vmatpush1.msra.mxu0 0.0
  %1020 = vmatprep.subr.mxu0 0.0
  %1021 = vmatpush1.msra.mxu0 0.0
  %1022 = vmatprep.subr.mxu0 0.0
  %1023 = vmatpush1.msra.mxu0 0.0
  %1024 = vmatprep.subr.mxu0 0.0
  %1025 = vmatpush1.msra.mxu0 0.0
  %1026 = vmatprep.subr.mxu0 0.0
  %1027 = vmatpush1.msra.mxu0 0.0
  %1028 = vmatprep.subr.mxu0 0.0
  %1029 = vmatpush1.msra.mxu0 0.0
  %1030 = vmatprep.subr.mxu0 0.0
  %1031 = vmatpush1.msra.mxu0 0.0
  %1032 = vmatprep.subr.mxu0 0.0
  %1033 = vmatpush1.msra.mxu0 0.0
  %1034 = vmatprep.subr.mxu0 0.0
  %1035 = vmatpush1.msra.mxu0 0.0
  %1036 = vmatprep.subr.mxu0 0.0
  %1037 = vmatpush1.msra.mxu0 0.0
  %1038 = vmatprep.subr.mxu0 0.0
  %1039 = vmatpush1.msra.mxu0 0.0
  %1040 = vmatprep.subr.mxu0 0.0
  %1041 = vmatpush1.msra.mxu0 0.0
  %1042 = vmatprep.subr.mxu0 0.0
  %1043 = vmatpush1.msra.mxu0 0.0
  %1044 = vmatprep.mubr.f32.mxu0 0.0
  %1045 = vmatmul.mubr.f32.gmra.mrb[0].mxu0 %v74
  %v1046 = vpop.f32.mrb[0].mxu0
  %v1047 = vadd.f32 0.0, %v1046
  %v1048 = vpop.f32.mrb[0].mxu0
  %1049 = vmatprep.mubr.f32.mxu0 0.0
  %1050 = vmatmul.mubr.f32.gmra.mrb[0].mxu0 %v77
  %v1051 = vpop.f32.mrb[0].mxu0
  %v1052 = vadd.f32 0.0, %v1051
  %v1053 = vpop.f32.mrb[0].mxu0
  %1054 = vmatprep.mubr.f32.mxu0 0.0
  %1055 = vmatmul.mubr.f32.gmra.mrb[0].mxu0 %v80
  %v1056 = vpop.f32.mrb[0].mxu0
  %v1057 = vadd.f32 0.0, %v1056
  %v1058 = vpop.f32.mrb[0].mxu0
  %1059 = vmatprep.mubr.f32.mxu0 0.0
  %1060 = vmatmul.mubr.f32.gmra.mrb[0].mxu0 %v83
  %v1061 = vpop.f32.mrb[0].mxu0
  %v1062 = vadd.f32 0.0, %v1061
  %v1063 = vpop.f32.mrb[0].mxu0
  %1064 = vmatprep.mubr.f32.mxu0 0.0
  %1065 = vmatmul.mubr.f32.gmra.mrb[0].mxu0 %v86
  %v1066 = vpop.f32.mrb[0].mxu0
  %v1067 = vadd.f32 0.0, %v1066
  %v1068 = vpop.f32.mrb[0].mxu0
  %1069 = vmatprep.mubr.f32.mxu0 0.0
  %1070 = vmatmul.mubr.f32.gmra.mrb[0].mxu0 %v89
  %v1071 = vpop.f32.mrb[0].mxu0
  %v1072 = vadd.f32 0.0, %v1071
  %v1073 = vpop.f32.mrb[0].mxu0
  %1074 = vmatprep.mubr.f32.mxu0 0.0
  %1075 = vmatmul.mubr.f32.gmra.mrb[0].mxu0 %v92
  %v1076 = vpop.f32.mrb[0].mxu0
  %v1077 = vadd.f32 0.0, %v1076
  %v1078 = vpop.f32.mrb[0].mxu0
  %1079 = vmatprep.mubr.f32.mxu0 0.0
  %1080 = vmatmul.mubr.f32.gmra.mrb[0].mxu0 %v95
  %v1081 = vpop.f32.mrb[0].mxu0
  %v1082 = vadd.f32 0.0, %v1081
  %v1083 = vpop.f32.mrb[0].mxu0
  %1084 = vmatprep.mubr.f32.mxu0 0.0
  %1085 = vmatmul.mubr.f32.gmra.mrb[0].mxu0 %v98
  %v1086 = vpop.f32.mrb[0].mxu0
  %v1087 = vadd.f32 0.0, %v1086
  %v1088 = vpop.f32.mrb[0].mxu0
  %1089 = vmatprep.mubr.f32.mxu0 0.0
  %1090 = vmatmul.mubr.f32.gmra.mrb[0].mxu0 %v101
  %v1091 = vpop.f32.mrb[0].mxu0
  %v1092 = vadd.f32 0.0, %v1091
  %v1093 = vpop.f32.mrb[0].mxu0
  %1094 = vmatprep.mubr.f32.mxu0 0.0
  %1095 = vmatmul.mubr.f32.gmra.mrb[0].mxu0 %v104
  %v1096 = vpop.f32.mrb[0].mxu0
  %v1097 = vadd.f32 0.0, %v1096
  %v1098 = vpop.f32.mrb[0].mxu0
  %1099 = vmatprep.mubr.f32.mxu0 0.0
  %1100 = vmatmul.mubr.f32.gmra.mrb[0].mxu0 %v107
  %v1101 = vpop.f32.mrb[0].mxu0
  %v1102 = vadd.f32 0.0, %v1101
  %v1103 = vpop.f32.mrb[0].mxu0
  %1104 = vmatprep.mubr.f32.mxu0 0.0
  %1105 = vmatmul.mubr.f32.gmra.mrb[0].mxu0 %v110
  %v1106 = vpop.f32.mrb[0].mxu0
  %v1107 = vadd.f32 0.0, %v1106
  %v1108 = vpop.f32.mrb[0].mxu0
  %1109 = vmatprep.mubr.f32.mxu0 0.0
  %1110 = vmatmul.mubr.f32.gmra.mrb[0].mxu0 %v113
  %v1111 = vpop.f32.mrb[0].mxu0
  %v1112 = vadd.f32 0.0, %v1111
  %v1113 = vpop.f32.mrb[0].mxu0
  %1114 = vmatprep.mubr.f32.mxu0 0.0
  %1115 = vmatmul.mubr.f32.gmra.mrb[0].mxu0 %v116
  %v1116 = vpop.f32.mrb[0].mxu0
  %v1117 = vadd.f32 0.0, %v1116
  %v1118 = vpop.f32.mrb[0].mxu0
  %1119 = vmatprep.mubr.f32.mxu0 0.0
  %1120 = vmatmul.mubr.f32.gmra.mrb[0].mxu0 %v119
  %v1121 = vpop.f32.mrb[0].mxu0
  %v1122 = vadd.f32 0.0, %v1121
  %v1123 = vpop.f32.mrb[0].mxu0
  %1124 = vmatprep.mubr.f32.mxu0 0.0
  %1125 = vmatmul.mubr.f32.gmra.mrb[0].mxu0 %v122
  %v1126 = vpop.f32.mrb[0].mxu0
  %v1127 = vadd.f32 0.0, %v1126
  %v1128 = vpop.f32.mrb[0].mxu0
  %1129 = vmatprep.mubr.f32.mxu0 0.0
  %1130 = vmatmul.mubr.f32.gmra.mrb[0].mxu0 %v125
  %v1131 = vpop.f32.mrb[0].mxu0
  %v1132 = vadd.f32 0.0, %v1131
  %v1133 = vpop.f32.mrb[0].mxu0
  %1134 = vmatprep.mubr.f32.mxu0 0.0
  %1135 = vmatmul.mubr.f32.gmra.mrb[0].mxu0 %v128
  %v1136 = vpop.f32.mrb[0].mxu0
  %v1137 = vadd.f32 0.0, %v1136
  %v1138 = vpop.f32.mrb[0].mxu0
  %1139 = vmatprep.mubr.f32.mxu0 0.0
  %1140 = vmatmul.mubr.f32.gmra.mrb[0].mxu0 %v131
  %v1141 = vpop.f32.mrb[0].mxu0
  %v1142 = vadd.f32 0.0, %v1141
  %v1143 = vpop.f32.mrb[0].mxu0
  %1144 = vdwg.mxu0
  %1149 = vrot.lane.b32.xlu0 %v1067, 127
  %v1150 = vpop.permute.xlu0 %1149
  %1151 = vrot.lane.b32.xlu0 %v1072, 127
  %v1152 = vpop.permute.xlu0 %1151
  %1153 = vrot.lane.b32.xlu0 %v1077, 127
  %v1154 = vpop.permute.xlu0 %1153
  %1155 = vrot.lane.b32.xlu0 %v1082, 127
  %v1156 = vpop.permute.xlu0 %1155
  %1161 = vrot.lane.b32.xlu0 %v1067, 63
  %v1162 = vpop.permute.xlu0 %1161
  %1163 = vrot.lane.b32.xlu0 %v1072, 63
  %v1164 = vpop.permute.xlu0 %1163
  %1165 = vrot.lane.b32.xlu0 %v1077, 63
  %v1166 = vpop.permute.xlu0 %1165
  %1167 = vrot.lane.b32.xlu0 %v1082, 63
  %v1168 = vpop.permute.xlu0 %1167
  %v1173 = vsel %vm326, %v1150, %v1162
  %v1174 = vsel %vm326, %v1152, %v1164
  %v1175 = vsel %vm326, %v1154, %v1166
  %v1176 = vsel %vm326, %v1156, %v1168
  %v1177 = vadd.f32 %v1047, %v1173
  %v1178 = vadd.f32 %v1052, %v1174
  %v1179 = vadd.f32 %v1057, %v1175
  %v1180 = vadd.f32 %v1062, %v1176
  %1185 = vrot.lane.b32.xlu0 %v1087, 126
  %v1186 = vpop.permute.xlu0 %1185
  %1187 = vrot.lane.b32.xlu0 %v1092, 126
  %v1188 = vpop.permute.xlu0 %1187
  %1189 = vrot.lane.b32.xlu0 %v1097, 126
  %v1190 = vpop.permute.xlu0 %1189
  %1191 = vrot.lane.b32.xlu0 %v1102, 126
  %v1192 = vpop.permute.xlu0 %1191
  %1197 = vrot.lane.b32.xlu0 %v1087, 62
  %v1198 = vpop.permute.xlu0 %1197
  %1199 = vrot.lane.b32.xlu0 %v1092, 62
  %v1200 = vpop.permute.xlu0 %1199
  %1201 = vrot.lane.b32.xlu0 %v1097, 62
  %v1202 = vpop.permute.xlu0 %1201
  %1203 = vrot.lane.b32.xlu0 %v1102, 62
  %v1204 = vpop.permute.xlu0 %1203
  %v1209 = vsel %vm363, %v1186, %v1198
  %v1210 = vsel %vm363, %v1188, %v1200
  %v1211 = vsel %vm363, %v1190, %v1202
  %v1212 = vsel %vm363, %v1192, %v1204
  %v1213 = vadd.f32 %v1177, %v1209
  %v1214 = vadd.f32 %v1178, %v1210
  %v1215 = vadd.f32 %v1179, %v1211
  %v1216 = vadd.f32 %v1180, %v1212
  %1221 = vrot.lane.b32.xlu0 %v1107, 125
  %v1222 = vpop.permute.xlu0 %1221
  %1223 = vrot.lane.b32.xlu0 %v1112, 125
  %v1224 = vpop.permute.xlu0 %1223
  %1225 = vrot.lane.b32.xlu0 %v1117, 125
  %v1226 = vpop.permute.xlu0 %1225
  %1227 = vrot.lane.b32.xlu0 %v1122, 125
  %v1228 = vpop.permute.xlu0 %1227
  %1233 = vrot.lane.b32.xlu0 %v1107, 61
  %v1234 = vpop.permute.xlu0 %1233
  %1235 = vrot.lane.b32.xlu0 %v1112, 61
  %v1236 = vpop.permute.xlu0 %1235
  %1237 = vrot.lane.b32.xlu0 %v1117, 61
  %v1238 = vpop.permute.xlu0 %1237
  %1239 = vrot.lane.b32.xlu0 %v1122, 61
  %v1240 = vpop.permute.xlu0 %1239
  %v1245 = vsel %vm400, %v1222, %v1234
  %v1246 = vsel %vm400, %v1224, %v1236
  %v1247 = vsel %vm400, %v1226, %v1238
  %v1248 = vsel %vm400, %v1228, %v1240
  %v1249 = vadd.f32 %v1213, %v1245
  %v1250 = vadd.f32 %v1214, %v1246
  %v1251 = vadd.f32 %v1215, %v1247
  %v1252 = vadd.f32 %v1216, %v1248
  %1257 = vrot.lane.b32.xlu0 %v1127, 124
  %v1258 = vpop.permute.xlu0 %1257
  %1259 = vrot.lane.b32.xlu0 %v1132, 124
  %v1260 = vpop.permute.xlu0 %1259
  %1261 = vrot.lane.b32.xlu0 %v1137, 124
  %v1262 = vpop.permute.xlu0 %1261
  %1263 = vrot.lane.b32.xlu0 %v1142, 124
  %v1264 = vpop.permute.xlu0 %1263
  %1269 = vrot.lane.b32.xlu0 %v1127, 60
  %v1270 = vpop.permute.xlu0 %1269
  %1271 = vrot.lane.b32.xlu0 %v1132, 60
  %v1272 = vpop.permute.xlu0 %1271
  %1273 = vrot.lane.b32.xlu0 %v1137, 60
  %v1274 = vpop.permute.xlu0 %1273
  %1275 = vrot.lane.b32.xlu0 %v1142, 60
  %v1276 = vpop.permute.xlu0 %1275
  %v1281 = vsel %vm437, %v1258, %v1270
  %v1282 = vsel %vm437, %v1260, %v1272
  %v1283 = vsel %vm437, %v1262, %v1274
  %v1284 = vsel %vm437, %v1264, %v1276
  %v1285 = vadd.f32 %v1249, %v1281
  %v1286 = vadd.f32 %v1250, %v1282
  %v1287 = vadd.f32 %v1251, %v1283
  %v1288 = vadd.f32 %v1252, %v1284
  %v1289 = vadd.f32 %v1285, %v453
  %v1290 = vadd.f32 %v1286, %v458
  %v1291 = vadd.f32 %v1287, %v463
  %v1292 = vadd.f32 %v1288, %v468
  %v1293 = vmax.f32 %v1289, 0.0
  %v1294 = vmax.f32 %v1290, 0.0
  %v1295 = vmax.f32 %v1291, 0.0
  %v1296 = vmax.f32 %v1292, 0.0
  %v1297 = vadd.f32 %v1293, %v1294
  %v1298 = vadd.f32 %v1295, %v1296
  %1300 = vrot.lane.b32.xlu0 %v1298, 64
  %v1301 = vpop.permute.xlu0 %1300
  %v1303 = vsel %vm484, %v1297, %v1301
  %1304 = vmatprep.subr.mxu0 0.0
  %1305 = vmatpush1.msra.mxu0 %v486
  %1306 = vmatprep.subr.mxu0 0.0
  %1307 = vmatpush1.msra.mxu0 %v487
  %1308 = vmatprep.subr.mxu0 0.0
  %1309 = vmatpush1.msra.mxu0 %v488
  %1310 = vmatprep.subr.mxu0 0.0
  %1311 = vmatpush1.msra.mxu0 %v489
  %1312 = vmatprep.subr.mxu0 0.0
  %1313 = vmatpush1.msra.mxu0 %v490
  %1314 = vmatprep.subr.mxu0 0.0
  %1315 = vmatpush1.msra.mxu0 %v491
  %1316 = vmatprep.subr.mxu0 0.0
  %1317 = vmatpush1.msra.mxu0 %v492
  %1318 = vmatprep.subr.mxu0 0.0
  %1319 = vmatpush1.msra.mxu0 %v493
  %1320 = vmatprep.subr.mxu0 0.0
  %1321 = vmatpush1.msra.mxu0 %v494
  %1322 = vmatprep.subr.mxu0 0.0
  %1323 = vmatpush1.msra.mxu0 %v495
  %1324 = vmatprep.subr.mxu0 0.0
  %1325 = vmatpush1.msra.mxu0 %v496
  %1326 = vmatprep.subr.mxu0 0.0
  %1327 = vmatpush1.msra.mxu0 %v497
  %1328 = vmatprep.subr.mxu0 0.0
  %1329 = vmatpush1.msra.mxu0 %v498
  %1330 = vmatprep.subr.mxu0 0.0
  %1331 = vmatpush1.msra.mxu0 %v499
  %1332 = vmatprep.subr.mxu0 0.0
  %1333 = vmatpush1.msra.mxu0 %v500
  %1334 = vmatprep.subr.mxu0 0.0
  %1335 = vmatpush1.msra.mxu0 %v501
  %1336 = vmatprep.subr.mxu0 0.0
  %1337 = vmatpush1.msra.mxu0 0.0
  %1338 = vmatprep.subr.mxu0 0.0
  %1339 = vmatpush1.msra.mxu0 0.0
  %1340 = vmatprep.subr.mxu0 0.0
  %1341 = vmatpush1.msra.mxu0 0.0
  %1342 = vmatprep.subr.mxu0 0.0
  %1343 = vmatpush1.msra.mxu0 0.0
  %1344 = vmatprep.subr.mxu0 0.0
  %1345 = vmatpush1.msra.mxu0 0.0
  %1346 = vmatprep.subr.mxu0 0.0
  %1347 = vmatpush1.msra.mxu0 0.0
  %1348 = vmatprep.subr.mxu0 0.0
  %1349 = vmatpush1.msra.mxu0 0.0
  %1350 = vmatprep.subr.mxu0 0.0
  %1351 = vmatpush1.msra.mxu0 0.0
  %1352 = vmatprep.subr.mxu0 0.0
  %1353 = vmatpush1.msra.mxu0 0.0
  %1354 = vmatprep.subr.mxu0 0.0
  %1355 = vmatpush1.msra.mxu0 0.0
  %1356 = vmatprep.subr.mxu0 0.0
  %1357 = vmatpush1.msra.mxu0 0.0
  %1358 = vmatprep.subr.mxu0 0.0
  %1359 = vmatpush1.msra.mxu0 0.0
  %1360 = vmatprep.subr.mxu0 0.0
  %1361 = vmatpush1.msra.mxu0 0.0
  %1362 = vmatprep.subr.mxu0 0.0
  %1363 = vmatpush1.msra.mxu0 0.0
  %1364 = vmatprep.subr.mxu0 0.0
  %1365 = vmatpush1.msra.mxu0 0.0
  %1366 = vmatprep.subr.mxu0 0.0
  %1367 = vmatpush1.msra.mxu0 0.0
  %1368 = vmatprep.mubr.f32.mxu0 0.0
  %1369 = vmatmul.mubr.f32.gmra.mrb[0].mxu0 %v1303
  %v1370 = vpop.f32.mrb[0].mxu0
  %v1371 = vadd.f32 0.0, %v1370
  %v1372 = vpop.f32.mrb[0].mxu0
  %1373 = vdwg.mxu0
  %v1374 = vld [vmem:[%s0 + $0xc] sm:$0xff]
  %v1375 = vld [vmem:[%s0 + $0x34] sm:$0xff]
  %1377 = vrot.lane.b32.xlu0 %v1375, 32
  %v1378 = vpop.permute.xlu0 %1377
  %v1380 = vsel %vm50, %v1374, %v1378
  %1381 = vmatprep.subr.mxu0 0.0
  %1382 = vmatpush1.msra.mxu0 %v1380
  %1383 = vmatprep.subr.mxu0 0.0
  %1384 = vmatpush1.msra.mxu0 0.0
  %1385 = vmatprep.subr.mxu0 0.0
  %1386 = vmatpush1.msra.mxu0 0.0
  %1387 = vmatprep.subr.mxu0 0.0
  %1388 = vmatpush1.msra.mxu0 0.0
  %1389 = vmatprep.subr.mxu0 0.0
  %1390 = vmatpush1.msra.mxu0 0.0
  %1391 = vmatprep.subr.mxu0 0.0
  %1392 = vmatpush1.msra.mxu0 0.0
  %1393 = vmatprep.subr.mxu0 0.0
  %1394 = vmatpush1.msra.mxu0 0.0
  %1395 = vmatprep.subr.mxu0 0.0
  %1396 = vmatpush1.msra.mxu0 0.0
  %1397 = vmatprep.subr.mxu0 0.0
  %1398 = vmatpush1.msra.mxu0 0.0
  %1399 = vmatprep.subr.mxu0 0.0
  %1400 = vmatpush1.msra.mxu0 0.0
  %1401 = vmatprep.subr.mxu0 0.0
  %1402 = vmatpush1.msra.mxu0 0.0
  %1403 = vmatprep.subr.mxu0 0.0
  %1404 = vmatpush1.msra.mxu0 0.0
  %1405 = vmatprep.subr.mxu0 0.0
  %1406 = vmatpush1.msra.mxu0 0.0
  %1407 = vmatprep.subr.mxu0 0.0
  %1408 = vmatpush1.msra.mxu0 0.0
  %1409 = vmatprep.subr.mxu0 0.0
  %1410 = vmatpush1.msra.mxu0 0.0
  %1411 = vmatprep.subr.mxu0 0.0
  %1412 = vmatpush1.msra.mxu0 0.0
  %1413 = vmatprep.subr.mxu0 0.0
  %1414 = vmatpush1.msra.mxu0 0.0
  %1415 = vmatprep.subr.mxu0 0.0
  %1416 = vmatpush1.msra.mxu0 0.0
  %1417 = vmatprep.subr.mxu0 0.0
  %1418 = vmatpush1.msra.mxu0 0.0
  %1419 = vmatprep.subr.mxu0 0.0
  %1420 = vmatpush1.msra.mxu0 0.0
  %1421 = vmatprep.subr.mxu0 0.0
  %1422 = vmatpush1.msra.mxu0 0.0
  %1423 = vmatprep.subr.mxu0 0.0
  %1424 = vmatpush1.msra.mxu0 0.0
  %1425 = vmatprep.subr.mxu0 0.0
  %1426 = vmatpush1.msra.mxu0 0.0
  %1427 = vmatprep.subr.mxu0 0.0
  %1428 = vmatpush1.msra.mxu0 0.0
  %1429 = vmatprep.subr.mxu0 0.0
  %1430 = vmatpush1.msra.mxu0 0.0
  %1431 = vmatprep.subr.mxu0 0.0
  %1432 = vmatpush1.msra.mxu0 0.0
  %1433 = vmatprep.subr.mxu0 0.0
  %1434 = vmatpush1.msra.mxu0 0.0
  %1435 = vmatprep.subr.mxu0 0.0
  %1436 = vmatpush1.msra.mxu0 0.0
  %1437 = vmatprep.subr.mxu0 0.0
  %1438 = vmatpush1.msra.mxu0 0.0
  %1439 = vmatprep.subr.mxu0 0.0
  %1440 = vmatpush1.msra.mxu0 0.0
  %1441 = vmatprep.subr.mxu0 0.0
  %1442 = vmatpush1.msra.mxu0 0.0
  %1443 = vmatprep.subr.mxu0 0.0
  %1444 = vmatpush1.msra.mxu0 0.0
  %1445 = vmatprep.mubr.f32.mxu0 0.0
  %1446 = vmatmul.mubr.f32.gmra.mrb[0].mxu0 %v74
  %v1447 = vpop.f32.mrb[0].mxu0
  %v1448 = vadd.f32 0.0, %v1447
  %v1449 = vpop.f32.mrb[0].mxu0
  %1450 = vmatprep.mubr.f32.mxu0 0.0
  %1451 = vmatmul.mubr.f32.gmra.mrb[0].mxu0 %v77
  %v1452 = vpop.f32.mrb[0].mxu0
  %v1453 = vadd.f32 0.0, %v1452
  %v1454 = vpop.f32.mrb[0].mxu0
  %1455 = vmatprep.mubr.f32.mxu0 0.0
  %1456 = vmatmul.mubr.f32.gmra.mrb[0].mxu0 %v80
  %v1457 = vpop.f32.mrb[0].mxu0
  %v1458 = vadd.f32 0.0, %v1457
  %v1459 = vpop.f32.mrb[0].mxu0
  %1460 = vmatprep.mubr.f32.mxu0 0.0
  %1461 = vmatmul.mubr.f32.gmra.mrb[0].mxu0 %v83
  %v1462 = vpop.f32.mrb[0].mxu0
  %v1463 = vadd.f32 0.0, %v1462
  %v1464 = vpop.f32.mrb[0].mxu0
  %1465 = vmatprep.mubr.f32.mxu0 0.0
  %1466 = vmatmul.mubr.f32.gmra.mrb[0].mxu0 %v86
  %v1467 = vpop.f32.mrb[0].mxu0
  %v1468 = vadd.f32 0.0, %v1467
  %v1469 = vpop.f32.mrb[0].mxu0
  %1470 = vmatprep.mubr.f32.mxu0 0.0
  %1471 = vmatmul.mubr.f32.gmra.mrb[0].mxu0 %v89
  %v1472 = vpop.f32.mrb[0].mxu0
  %v1473 = vadd.f32 0.0, %v1472
  %v1474 = vpop.f32.mrb[0].mxu0
  %1475 = vmatprep.mubr.f32.mxu0 0.0
  %1476 = vmatmul.mubr.f32.gmra.mrb[0].mxu0 %v92
  %v1477 = vpop.f32.mrb[0].mxu0
  %v1478 = vadd.f32 0.0, %v1477
  %v1479 = vpop.f32.mrb[0].mxu0
  %1480 = vmatprep.mubr.f32.mxu0 0.0
  %1481 = vmatmul.mubr.f32.gmra.mrb[0].mxu0 %v95
  %v1482 = vpop.f32.mrb[0].mxu0
  %v1483 = vadd.f32 0.0, %v1482
  %v1484 = vpop.f32.mrb[0].mxu0
  %1485 = vmatprep.mubr.f32.mxu0 0.0
  %1486 = vmatmul.mubr.f32.gmra.mrb[0].mxu0 %v98
  %v1487 = vpop.f32.mrb[0].mxu0
  %v1488 = vadd.f32 0.0, %v1487
  %v1489 = vpop.f32.mrb[0].mxu0
  %1490 = vmatprep.mubr.f32.mxu0 0.0
  %1491 = vmatmul.mubr.f32.gmra.mrb[0].mxu0 %v101
  %v1492 = vpop.f32.mrb[0].mxu0
  %v1493 = vadd.f32 0.0, %v1492
  %v1494 = vpop.f32.mrb[0].mxu0
  %1495 = vmatprep.mubr.f32.mxu0 0.0
  %1496 = vmatmul.mubr.f32.gmra.mrb[0].mxu0 %v104
  %v1497 = vpop.f32.mrb[0].mxu0
  %v1498 = vadd.f32 0.0, %v1497
  %v1499 = vpop.f32.mrb[0].mxu0
  %1500 = vmatprep.mubr.f32.mxu0 0.0
  %1501 = vmatmul.mubr.f32.gmra.mrb[0].mxu0 %v107
  %v1502 = vpop.f32.mrb[0].mxu0
  %v1503 = vadd.f32 0.0, %v1502
  %v1504 = vpop.f32.mrb[0].mxu0
  %1505 = vmatprep.mubr.f32.mxu0 0.0
  %1506 = vmatmul.mubr.f32.gmra.mrb[0].mxu0 %v110
  %v1507 = vpop.f32.mrb[0].mxu0
  %v1508 = vadd.f32 0.0, %v1507
  %v1509 = vpop.f32.mrb[0].mxu0
  %1510 = vmatprep.mubr.f32.mxu0 0.0
  %1511 = vmatmul.mubr.f32.gmra.mrb[0].mxu0 %v113
  %v1512 = vpop.f32.mrb[0].mxu0
  %v1513 = vadd.f32 0.0, %v1512
  %v1514 = vpop.f32.mrb[0].mxu0
  %1515 = vmatprep.mubr.f32.mxu0 0.0
  %1516 = vmatmul.mubr.f32.gmra.mrb[0].mxu0 %v116
  %v1517 = vpop.f32.mrb[0].mxu0
  %v1518 = vadd.f32 0.0, %v1517
  %v1519 = vpop.f32.mrb[0].mxu0
  %1520 = vmatprep.mubr.f32.mxu0 0.0
  %1521 = vmatmul.mubr.f32.gmra.mrb[0].mxu0 %v119
  %v1522 = vpop.f32.mrb[0].mxu0
  %v1523 = vadd.f32 0.0, %v1522
  %v1524 = vpop.f32.mrb[0].mxu0
  %1525 = vmatprep.mubr.f32.mxu0 0.0
  %1526 = vmatmul.mubr.f32.gmra.mrb[0].mxu0 %v122
  %v1527 = vpop.f32.mrb[0].mxu0
  %v1528 = vadd.f32 0.0, %v1527
  %v1529 = vpop.f32.mrb[0].mxu0
  %1530 = vmatprep.mubr.f32.mxu0 0.0
  %1531 = vmatmul.mubr.f32.gmra.mrb[0].mxu0 %v125
  %v1532 = vpop.f32.mrb[0].mxu0
  %v1533 = vadd.f32 0.0, %v1532
  %v1534 = vpop.f32.mrb[0].mxu0
  %1535 = vmatprep.mubr.f32.mxu0 0.0
  %1536 = vmatmul.mubr.f32.gmra.mrb[0].mxu0 %v128
  %v1537 = vpop.f32.mrb[0].mxu0
  %v1538 = vadd.f32 0.0, %v1537
  %v1539 = vpop.f32.mrb[0].mxu0
  %1540 = vmatprep.mubr.f32.mxu0 0.0
  %1541 = vmatmul.mubr.f32.gmra.mrb[0].mxu0 %v131
  %v1542 = vpop.f32.mrb[0].mxu0
  %v1543 = vadd.f32 0.0, %v1542
  %v1544 = vpop.f32.mrb[0].mxu0
  %1545 = vdwg.mxu0
  %1550 = vrot.lane.b32.xlu0 %v1468, 127
  %v1551 = vpop.permute.xlu0 %1550
  %1552 = vrot.lane.b32.xlu0 %v1473, 127
  %v1553 = vpop.permute.xlu0 %1552
  %1554 = vrot.lane.b32.xlu0 %v1478, 127
  %v1555 = vpop.permute.xlu0 %1554
  %1556 = vrot.lane.b32.xlu0 %v1483, 127
  %v1557 = vpop.permute.xlu0 %1556
  %1562 = vrot.lane.b32.xlu0 %v1468, 63
  %v1563 = vpop.permute.xlu0 %1562
  %1564 = vrot.lane.b32.xlu0 %v1473, 63
  %v1565 = vpop.permute.xlu0 %1564
  %1566 = vrot.lane.b32.xlu0 %v1478, 63
  %v1567 = vpop.permute.xlu0 %1566
  %1568 = vrot.lane.b32.xlu0 %v1483, 63
  %v1569 = vpop.permute.xlu0 %1568
  %v1574 = vsel %vm326, %v1551, %v1563
  %v1575 = vsel %vm326, %v1553, %v1565
  %v1576 = vsel %vm326, %v1555, %v1567
  %v1577 = vsel %vm326, %v1557, %v1569
  %v1578 = vadd.f32 %v1448, %v1574
  %v1579 = vadd.f32 %v1453, %v1575
  %v1580 = vadd.f32 %v1458, %v1576
  %v1581 = vadd.f32 %v1463, %v1577
  %1586 = vrot.lane.b32.xlu0 %v1488, 126
  %v1587 = vpop.permute.xlu0 %1586
  %1588 = vrot.lane.b32.xlu0 %v1493, 126
  %v1589 = vpop.permute.xlu0 %1588
  %1590 = vrot.lane.b32.xlu0 %v1498, 126
  %v1591 = vpop.permute.xlu0 %1590
  %1592 = vrot.lane.b32.xlu0 %v1503, 126
  %v1593 = vpop.permute.xlu0 %1592
  %1598 = vrot.lane.b32.xlu0 %v1488, 62
  %v1599 = vpop.permute.xlu0 %1598
  %1600 = vrot.lane.b32.xlu0 %v1493, 62
  %v1601 = vpop.permute.xlu0 %1600
  %1602 = vrot.lane.b32.xlu0 %v1498, 62
  %v1603 = vpop.permute.xlu0 %1602
  %1604 = vrot.lane.b32.xlu0 %v1503, 62
  %v1605 = vpop.permute.xlu0 %1604
  %v1610 = vsel %vm363, %v1587, %v1599
  %v1611 = vsel %vm363, %v1589, %v1601
  %v1612 = vsel %vm363, %v1591, %v1603
  %v1613 = vsel %vm363, %v1593, %v1605
  %v1614 = vadd.f32 %v1578, %v1610
  %v1615 = vadd.f32 %v1579, %v1611
  %v1616 = vadd.f32 %v1580, %v1612
  %v1617 = vadd.f32 %v1581, %v1613
  %1622 = vrot.lane.b32.xlu0 %v1508, 125
  %v1623 = vpop.permute.xlu0 %1622
  %1624 = vrot.lane.b32.xlu0 %v1513, 125
  %v1625 = vpop.permute.xlu0 %1624
  %1626 = vrot.lane.b32.xlu0 %v1518, 125
  %v1627 = vpop.permute.xlu0 %1626
  %1628 = vrot.lane.b32.xlu0 %v1523, 125
  %v1629 = vpop.permute.xlu0 %1628
  %1634 = vrot.lane.b32.xlu0 %v1508, 61
  %v1635 = vpop.permute.xlu0 %1634
  %1636 = vrot.lane.b32.xlu0 %v1513, 61
  %v1637 = vpop.permute.xlu0 %1636
  %1638 = vrot.lane.b32.xlu0 %v1518, 61
  %v1639 = vpop.permute.xlu0 %1638
  %1640 = vrot.lane.b32.xlu0 %v1523, 61
  %v1641 = vpop.permute.xlu0 %1640
  %v1646 = vsel %vm400, %v1623, %v1635
  %v1647 = vsel %vm400, %v1625, %v1637
  %v1648 = vsel %vm400, %v1627, %v1639
  %v1649 = vsel %vm400, %v1629, %v1641
  %v1650 = vadd.f32 %v1614, %v1646
  %v1651 = vadd.f32 %v1615, %v1647
  %v1652 = vadd.f32 %v1616, %v1648
  %v1653 = vadd.f32 %v1617, %v1649
  %1658 = vrot.lane.b32.xlu0 %v1528, 124
  %v1659 = vpop.permute.xlu0 %1658
  %1660 = vrot.lane.b32.xlu0 %v1533, 124
  %v1661 = vpop.permute.xlu0 %1660
  %1662 = vrot.lane.b32.xlu0 %v1538, 124
  %v1663 = vpop.permute.xlu0 %1662
  %1664 = vrot.lane.b32.xlu0 %v1543, 124
  %v1665 = vpop.permute.xlu0 %1664
  %1670 = vrot.lane.b32.xlu0 %v1528, 60
  %v1671 = vpop.permute.xlu0 %1670
  %1672 = vrot.lane.b32.xlu0 %v1533, 60
  %v1673 = vpop.permute.xlu0 %1672
  %1674 = vrot.lane.b32.xlu0 %v1538, 60
  %v1675 = vpop.permute.xlu0 %1674
  %1676 = vrot.lane.b32.xlu0 %v1543, 60
  %v1677 = vpop.permute.xlu0 %1676
  %v1682 = vsel %vm437, %v1659, %v1671
  %v1683 = vsel %vm437, %v1661, %v1673
  %v1684 = vsel %vm437, %v1663, %v1675
  %v1685 = vsel %vm437, %v1665, %v1677
  %v1686 = vadd.f32 %v1650, %v1682
  %v1687 = vadd.f32 %v1651, %v1683
  %v1688 = vadd.f32 %v1652, %v1684
  %v1689 = vadd.f32 %v1653, %v1685
  %v1690 = vadd.f32 %v1686, %v453
  %v1691 = vadd.f32 %v1687, %v458
  %v1692 = vadd.f32 %v1688, %v463
  %v1693 = vadd.f32 %v1689, %v468
  %v1694 = vmax.f32 %v1690, 0.0
  %v1695 = vmax.f32 %v1691, 0.0
  %v1696 = vmax.f32 %v1692, 0.0
  %v1697 = vmax.f32 %v1693, 0.0
  %v1698 = vadd.f32 %v1694, %v1695
  %v1699 = vadd.f32 %v1696, %v1697
  %1701 = vrot.lane.b32.xlu0 %v1699, 64
  %v1702 = vpop.permute.xlu0 %1701
  %v1704 = vsel %vm484, %v1698, %v1702
  %1705 = vmatprep.subr.mxu0 0.0
  %1706 = vmatpush1.msra.mxu0 %v486
  %1707 = vmatprep.subr.mxu0 0.0
  %1708 = vmatpush1.msra.mxu0 %v487
  %1709 = vmatprep.subr.mxu0 0.0
  %1710 = vmatpush1.msra.mxu0 %v488
  %1711 = vmatprep.subr.mxu0 0.0
  %1712 = vmatpush1.msra.mxu0 %v489
  %1713 = vmatprep.subr.mxu0 0.0
  %1714 = vmatpush1.msra.mxu0 %v490
  %1715 = vmatprep.subr.mxu0 0.0
  %1716 = vmatpush1.msra.mxu0 %v491
  %1717 = vmatprep.subr.mxu0 0.0
  %1718 = vmatpush1.msra.mxu0 %v492
  %1719 = vmatprep.subr.mxu0 0.0
  %1720 = vmatpush1.msra.mxu0 %v493
  %1721 = vmatprep.subr.mxu0 0.0
  %1722 = vmatpush1.msra.mxu0 %v494
  %1723 = vmatprep.subr.mxu0 0.0
  %1724 = vmatpush1.msra.mxu0 %v495
  %1725 = vmatprep.subr.mxu0 0.0
  %1726 = vmatpush1.msra.mxu0 %v496
  %1727 = vmatprep.subr.mxu0 0.0
  %1728 = vmatpush1.msra.mxu0 %v497
  %1729 = vmatprep.subr.mxu0 0.0
  %1730 = vmatpush1.msra.mxu0 %v498
  %1731 = vmatprep.subr.mxu0 0.0
  %1732 = vmatpush1.msra.mxu0 %v499
  %1733 = vmatprep.subr.mxu0 0.0
  %1734 = vmatpush1.msra.mxu0 %v500
  %1735 = vmatprep.subr.mxu0 0.0
  %1736 = vmatpush1.msra.mxu0 %v501
  %1737 = vmatprep.subr.mxu0 0.0
  %1738 = vmatpush1.msra.mxu0 0.0
  %1739 = vmatprep.subr.mxu0 0.0
  %1740 = vmatpush1.msra.mxu0 0.0
  %1741 = vmatprep.subr.mxu0 0.0
  %1742 = vmatpush1.msra.mxu0 0.0
  %1743 = vmatprep.subr.mxu0 0.0
  %1744 = vmatpush1.msra.mxu0 0.0
  %1745 = vmatprep.subr.mxu0 0.0
  %1746 = vmatpush1.msra.mxu0 0.0
  %1747 = vmatprep.subr.mxu0 0.0
  %1748 = vmatpush1.msra.mxu0 0.0
  %1749 = vmatprep.subr.mxu0 0.0
  %1750 = vmatpush1.msra.mxu0 0.0
  %1751 = vmatprep.subr.mxu0 0.0
  %1752 = vmatpush1.msra.mxu0 0.0
  %1753 = vmatprep.subr.mxu0 0.0
  %1754 = vmatpush1.msra.mxu0 0.0
  %1755 = vmatprep.subr.mxu0 0.0
  %1756 = vmatpush1.msra.mxu0 0.0
  %1757 = vmatprep.subr.mxu0 0.0
  %1758 = vmatpush1.msra.mxu0 0.0
  %1759 = vmatprep.subr.mxu0 0.0
  %1760 = vmatpush1.msra.mxu0 0.0
  %1761 = vmatprep.subr.mxu0 0.0
  %1762 = vmatpush1.msra.mxu0 0.0
  %1763 = vmatprep.subr.mxu0 0.0
  %1764 = vmatpush1.msra.mxu0 0.0
  %1765 = vmatprep.subr.mxu0 0.0
  %1766 = vmatpush1.msra.mxu0 0.0
  %1767 = vmatprep.subr.mxu0 0.0
  %1768 = vmatpush1.msra.mxu0 0.0
  %1769 = vmatprep.mubr.f32.mxu0 0.0
  %1770 = vmatmul.mubr.f32.gmra.mrb[0].mxu0 %v1704
  %v1771 = vpop.f32.mrb[0].mxu0
  %v1772 = vadd.f32 0.0, %v1771
  %v1773 = vpop.f32.mrb[0].mxu0
  %1774 = vdwg.mxu0
  %v1775 = vld [vmem:[%s0 + $0x10] sm:$0xff]
  %v1776 = vld [vmem:[%s0 + $0x38] sm:$0xff]
  %1778 = vrot.lane.b32.xlu0 %v1776, 32
  %v1779 = vpop.permute.xlu0 %1778
  %v1781 = vsel %vm50, %v1775, %v1779
  %1782 = vmatprep.subr.mxu0 0.0
  %1783 = vmatpush1.msra.mxu0 %v1781
  %1784 = vmatprep.subr.mxu0 0.0
  %1785 = vmatpush1.msra.mxu0 0.0
  %1786 = vmatprep.subr.mxu0 0.0
  %1787 = vmatpush1.msra.mxu0 0.0
  %1788 = vmatprep.subr.mxu0 0.0
  %1789 = vmatpush1.msra.mxu0 0.0
  %1790 = vmatprep.subr.mxu0 0.0
  %1791 = vmatpush1.msra.mxu0 0.0
  %1792 = vmatprep.subr.mxu0 0.0
  %1793 = vmatpush1.msra.mxu0 0.0
  %1794 = vmatprep.subr.mxu0 0.0
  %1795 = vmatpush1.msra.mxu0 0.0
  %1796 = vmatprep.subr.mxu0 0.0
  %1797 = vmatpush1.msra.mxu0 0.0
  %1798 = vmatprep.subr.mxu0 0.0
  %1799 = vmatpush1.msra.mxu0 0.0
  %1800 = vmatprep.subr.mxu0 0.0
  %1801 = vmatpush1.msra.mxu0 0.0
  %1802 = vmatprep.subr.mxu0 0.0
  %1803 = vmatpush1.msra.mxu0 0.0
  %1804 = vmatprep.subr.mxu0 0.0
  %1805 = vmatpush1.msra.mxu0 0.0
  %1806 = vmatprep.subr.mxu0 0.0
  %1807 = vmatpush1.msra.mxu0 0.0
  %1808 = vmatprep.subr.mxu0 0.0
  %1809 = vmatpush1.msra.mxu0 0.0
  %1810 = vmatprep.subr.mxu0 0.0
  %1811 = vmatpush1.msra.mxu0 0.0
  %1812 = vmatprep.subr.mxu0 0.0
  %1813 = vmatpush1.msra.mxu0 0.0
  %1814 = vmatprep.subr.mxu0 0.0
  %1815 = vmatpush1.msra.mxu0 0.0
  %1816 = vmatprep.subr.mxu0 0.0
  %1817 = vmatpush1.msra.mxu0 0.0
  %1818 = vmatprep.subr.mxu0 0.0
  %1819 = vmatpush1.msra.mxu0 0.0
  %1820 = vmatprep.subr.mxu0 0.0
  %1821 = vmatpush1.msra.mxu0 0.0
  %1822 = vmatprep.subr.mxu0 0.0
  %1823 = vmatpush1.msra.mxu0 0.0
  %1824 = vmatprep.subr.mxu0 0.0
  %1825 = vmatpush1.msra.mxu0 0.0
  %1826 = vmatprep.subr.mxu0 0.0
  %1827 = vmatpush1.msra.mxu0 0.0
  %1828 = vmatprep.subr.mxu0 0.0
  %1829 = vmatpush1.msra.mxu0 0.0
  %1830 = vmatprep.subr.mxu0 0.0
  %1831 = vmatpush1.msra.mxu0 0.0
  %1832 = vmatprep.subr.mxu0 0.0
  %1833 = vmatpush1.msra.mxu0 0.0
  %1834 = vmatprep.subr.mxu0 0.0
  %1835 = vmatpush1.msra.mxu0 0.0
  %1836 = vmatprep.subr.mxu0 0.0
  %1837 = vmatpush1.msra.mxu0 0.0
  %1838 = vmatprep.subr.mxu0 0.0
  %1839 = vmatpush1.msra.mxu0 0.0
  %1840 = vmatprep.subr.mxu0 0.0
  %1841 = vmatpush1.msra.mxu0 0.0
  %1842 = vmatprep.subr.mxu0 0.0
  %1843 = vmatpush1.msra.mxu0 0.0
  %1844 = vmatprep.subr.mxu0 0.0
  %1845 = vmatpush1.msra.mxu0 0.0
  %1846 = vmatprep.mubr.f32.mxu0 0.0
  %1847 = vmatmul.mubr.f32.gmra.mrb[0].mxu0 %v74
  %v1848 = vpop.f32.mrb[0].mxu0
  %v1849 = vadd.f32 0.0, %v1848
  %v1850 = vpop.f32.mrb[0].mxu0
  %1851 = vmatprep.mubr.f32.mxu0 0.0
  %1852 = vmatmul.mubr.f32.gmra.mrb[0].mxu0 %v77
  %v1853 = vpop.f32.mrb[0].mxu0
  %v1854 = vadd.f32 0.0, %v1853
  %v1855 = vpop.f32.mrb[0].mxu0
  %1856 = vmatprep.mubr.f32.mxu0 0.0
  %1857 = vmatmul.mubr.f32.gmra.mrb[0].mxu0 %v80
  %v1858 = vpop.f32.mrb[0].mxu0
  %v1859 = vadd.f32 0.0, %v1858
  %v1860 = vpop.f32.mrb[0].mxu0
  %1861 = vmatprep.mubr.f32.mxu0 0.0
  %1862 = vmatmul.mubr.f32.gmra.mrb[0].mxu0 %v83
  %v1863 = vpop.f32.mrb[0].mxu0
  %v1864 = vadd.f32 0.0, %v1863
  %v1865 = vpop.f32.mrb[0].mxu0
  %1866 = vmatprep.mubr.f32.mxu0 0.0
  %1867 = vmatmul.mubr.f32.gmra.mrb[0].mxu0 %v86
  %v1868 = vpop.f32.mrb[0].mxu0
  %v1869 = vadd.f32 0.0, %v1868
  %v1870 = vpop.f32.mrb[0].mxu0
  %1871 = vmatprep.mubr.f32.mxu0 0.0
  %1872 = vmatmul.mubr.f32.gmra.mrb[0].mxu0 %v89
  %v1873 = vpop.f32.mrb[0].mxu0
  %v1874 = vadd.f32 0.0, %v1873
  %v1875 = vpop.f32.mrb[0].mxu0
  %1876 = vmatprep.mubr.f32.mxu0 0.0
  %1877 = vmatmul.mubr.f32.gmra.mrb[0].mxu0 %v92
  %v1878 = vpop.f32.mrb[0].mxu0
  %v1879 = vadd.f32 0.0, %v1878
  %v1880 = vpop.f32.mrb[0].mxu0
  %1881 = vmatprep.mubr.f32.mxu0 0.0
  %1882 = vmatmul.mubr.f32.gmra.mrb[0].mxu0 %v95
  %v1883 = vpop.f32.mrb[0].mxu0
  %v1884 = vadd.f32 0.0, %v1883
  %v1885 = vpop.f32.mrb[0].mxu0
  %1886 = vmatprep.mubr.f32.mxu0 0.0
  %1887 = vmatmul.mubr.f32.gmra.mrb[0].mxu0 %v98
  %v1888 = vpop.f32.mrb[0].mxu0
  %v1889 = vadd.f32 0.0, %v1888
  %v1890 = vpop.f32.mrb[0].mxu0
  %1891 = vmatprep.mubr.f32.mxu0 0.0
  %1892 = vmatmul.mubr.f32.gmra.mrb[0].mxu0 %v101
  %v1893 = vpop.f32.mrb[0].mxu0
  %v1894 = vadd.f32 0.0, %v1893
  %v1895 = vpop.f32.mrb[0].mxu0
  %1896 = vmatprep.mubr.f32.mxu0 0.0
  %1897 = vmatmul.mubr.f32.gmra.mrb[0].mxu0 %v104
  %v1898 = vpop.f32.mrb[0].mxu0
  %v1899 = vadd.f32 0.0, %v1898
  %v1900 = vpop.f32.mrb[0].mxu0
  %1901 = vmatprep.mubr.f32.mxu0 0.0
  %1902 = vmatmul.mubr.f32.gmra.mrb[0].mxu0 %v107
  %v1903 = vpop.f32.mrb[0].mxu0
  %v1904 = vadd.f32 0.0, %v1903
  %v1905 = vpop.f32.mrb[0].mxu0
  %1906 = vmatprep.mubr.f32.mxu0 0.0
  %1907 = vmatmul.mubr.f32.gmra.mrb[0].mxu0 %v110
  %v1908 = vpop.f32.mrb[0].mxu0
  %v1909 = vadd.f32 0.0, %v1908
  %v1910 = vpop.f32.mrb[0].mxu0
  %1911 = vmatprep.mubr.f32.mxu0 0.0
  %1912 = vmatmul.mubr.f32.gmra.mrb[0].mxu0 %v113
  %v1913 = vpop.f32.mrb[0].mxu0
  %v1914 = vadd.f32 0.0, %v1913
  %v1915 = vpop.f32.mrb[0].mxu0
  %1916 = vmatprep.mubr.f32.mxu0 0.0
  %1917 = vmatmul.mubr.f32.gmra.mrb[0].mxu0 %v116
  %v1918 = vpop.f32.mrb[0].mxu0
  %v1919 = vadd.f32 0.0, %v1918
  %v1920 = vpop.f32.mrb[0].mxu0
  %1921 = vmatprep.mubr.f32.mxu0 0.0
  %1922 = vmatmul.mubr.f32.gmra.mrb[0].mxu0 %v119
  %v1923 = vpop.f32.mrb[0].mxu0
  %v1924 = vadd.f32 0.0, %v1923
  %v1925 = vpop.f32.mrb[0].mxu0
  %1926 = vmatprep.mubr.f32.mxu0 0.0
  %1927 = vmatmul.mubr.f32.gmra.mrb[0].mxu0 %v122
  %v1928 = vpop.f32.mrb[0].mxu0
  %v1929 = vadd.f32 0.0, %v1928
  %v1930 = vpop.f32.mrb[0].mxu0
  %1931 = vmatprep.mubr.f32.mxu0 0.0
  %1932 = vmatmul.mubr.f32.gmra.mrb[0].mxu0 %v125
  %v1933 = vpop.f32.mrb[0].mxu0
  %v1934 = vadd.f32 0.0, %v1933
  %v1935 = vpop.f32.mrb[0].mxu0
  %1936 = vmatprep.mubr.f32.mxu0 0.0
  %1937 = vmatmul.mubr.f32.gmra.mrb[0].mxu0 %v128
  %v1938 = vpop.f32.mrb[0].mxu0
  %v1939 = vadd.f32 0.0, %v1938
  %v1940 = vpop.f32.mrb[0].mxu0
  %1941 = vmatprep.mubr.f32.mxu0 0.0
  %1942 = vmatmul.mubr.f32.gmra.mrb[0].mxu0 %v131
  %v1943 = vpop.f32.mrb[0].mxu0
  %v1944 = vadd.f32 0.0, %v1943
  %v1945 = vpop.f32.mrb[0].mxu0
  %1946 = vdwg.mxu0
  %1951 = vrot.lane.b32.xlu0 %v1869, 127
  %v1952 = vpop.permute.xlu0 %1951
  %1953 = vrot.lane.b32.xlu0 %v1874, 127
  %v1954 = vpop.permute.xlu0 %1953
  %1955 = vrot.lane.b32.xlu0 %v1879, 127
  %v1956 = vpop.permute.xlu0 %1955
  %1957 = vrot.lane.b32.xlu0 %v1884, 127
  %v1958 = vpop.permute.xlu0 %1957
  %1963 = vrot.lane.b32.xlu0 %v1869, 63
  %v1964 = vpop.permute.xlu0 %1963
  %1965 = vrot.lane.b32.xlu0 %v1874, 63
  %v1966 = vpop.permute.xlu0 %1965
  %1967 = vrot.lane.b32.xlu0 %v1879, 63
  %v1968 = vpop.permute.xlu0 %1967
  %1969 = vrot.lane.b32.xlu0 %v1884, 63
  %v1970 = vpop.permute.xlu0 %1969
  %v1975 = vsel %vm326, %v1952, %v1964
  %v1976 = vsel %vm326, %v1954, %v1966
  %v1977 = vsel %vm326, %v1956, %v1968
  %v1978 = vsel %vm326, %v1958, %v1970
  %v1979 = vadd.f32 %v1849, %v1975
  %v1980 = vadd.f32 %v1854, %v1976
  %v1981 = vadd.f32 %v1859, %v1977
  %v1982 = vadd.f32 %v1864, %v1978
  %1987 = vrot.lane.b32.xlu0 %v1889, 126
  %v1988 = vpop.permute.xlu0 %1987
  %1989 = vrot.lane.b32.xlu0 %v1894, 126
  %v1990 = vpop.permute.xlu0 %1989
  %1991 = vrot.lane.b32.xlu0 %v1899, 126
  %v1992 = vpop.permute.xlu0 %1991
  %1993 = vrot.lane.b32.xlu0 %v1904, 126
  %v1994 = vpop.permute.xlu0 %1993
  %1999 = vrot.lane.b32.xlu0 %v1889, 62
  %v2000 = vpop.permute.xlu0 %1999
  %2001 = vrot.lane.b32.xlu0 %v1894, 62
  %v2002 = vpop.permute.xlu0 %2001
  %2003 = vrot.lane.b32.xlu0 %v1899, 62
  %v2004 = vpop.permute.xlu0 %2003
  %2005 = vrot.lane.b32.xlu0 %v1904, 62
  %v2006 = vpop.permute.xlu0 %2005
  %v2011 = vsel %vm363, %v1988, %v2000
  %v2012 = vsel %vm363, %v1990, %v2002
  %v2013 = vsel %vm363, %v1992, %v2004
  %v2014 = vsel %vm363, %v1994, %v2006
  %v2015 = vadd.f32 %v1979, %v2011
  %v2016 = vadd.f32 %v1980, %v2012
  %v2017 = vadd.f32 %v1981, %v2013
  %v2018 = vadd.f32 %v1982, %v2014
  %2023 = vrot.lane.b32.xlu0 %v1909, 125
  %v2024 = vpop.permute.xlu0 %2023
  %2025 = vrot.lane.b32.xlu0 %v1914, 125
  %v2026 = vpop.permute.xlu0 %2025
  %2027 = vrot.lane.b32.xlu0 %v1919, 125
  %v2028 = vpop.permute.xlu0 %2027
  %2029 = vrot.lane.b32.xlu0 %v1924, 125
  %v2030 = vpop.permute.xlu0 %2029
  %2035 = vrot.lane.b32.xlu0 %v1909, 61
  %v2036 = vpop.permute.xlu0 %2035
  %2037 = vrot.lane.b32.xlu0 %v1914, 61
  %v2038 = vpop.permute.xlu0 %2037
  %2039 = vrot.lane.b32.xlu0 %v1919, 61
  %v2040 = vpop.permute.xlu0 %2039
  %2041 = vrot.lane.b32.xlu0 %v1924, 61
  %v2042 = vpop.permute.xlu0 %2041
  %v2047 = vsel %vm400, %v2024, %v2036
  %v2048 = vsel %vm400, %v2026, %v2038
  %v2049 = vsel %vm400, %v2028, %v2040
  %v2050 = vsel %vm400, %v2030, %v2042
  %v2051 = vadd.f32 %v2015, %v2047
  %v2052 = vadd.f32 %v2016, %v2048
  %v2053 = vadd.f32 %v2017, %v2049
  %v2054 = vadd.f32 %v2018, %v2050
  %2059 = vrot.lane.b32.xlu0 %v1929, 124
  %v2060 = vpop.permute.xlu0 %2059
  %2061 = vrot.lane.b32.xlu0 %v1934, 124
  %v2062 = vpop.permute.xlu0 %2061
  %2063 = vrot.lane.b32.xlu0 %v1939, 124
  %v2064 = vpop.permute.xlu0 %2063
  %2065 = vrot.lane.b32.xlu0 %v1944, 124
  %v2066 = vpop.permute.xlu0 %2065
  %2071 = vrot.lane.b32.xlu0 %v1929, 60
  %v2072 = vpop.permute.xlu0 %2071
  %2073 = vrot.lane.b32.xlu0 %v1934, 60
  %v2074 = vpop.permute.xlu0 %2073
  %2075 = vrot.lane.b32.xlu0 %v1939, 60
  %v2076 = vpop.permute.xlu0 %2075
  %2077 = vrot.lane.b32.xlu0 %v1944, 60
  %v2078 = vpop.permute.xlu0 %2077
  %v2083 = vsel %vm437, %v2060, %v2072
  %v2084 = vsel %vm437, %v2062, %v2074
  %v2085 = vsel %vm437, %v2064, %v2076
  %v2086 = vsel %vm437, %v2066, %v2078
  %v2087 = vadd.f32 %v2051, %v2083
  %v2088 = vadd.f32 %v2052, %v2084
  %v2089 = vadd.f32 %v2053, %v2085
  %v2090 = vadd.f32 %v2054, %v2086
  %v2091 = vadd.f32 %v2087, %v453
  %v2092 = vadd.f32 %v2088, %v458
  %v2093 = vadd.f32 %v2089, %v463
  %v2094 = vadd.f32 %v2090, %v468
  %v2095 = vmax.f32 %v2091, 0.0
  %v2096 = vmax.f32 %v2092, 0.0
  %v2097 = vmax.f32 %v2093, 0.0
  %v2098 = vmax.f32 %v2094, 0.0
  %v2099 = vadd.f32 %v2095, %v2096
  %v2100 = vadd.f32 %v2097, %v2098
  %2102 = vrot.lane.b32.xlu0 %v2100, 64
  %v2103 = vpop.permute.xlu0 %2102
  %v2105 = vsel %vm484, %v2099, %v2103
  %2106 = vmatprep.subr.mxu0 0.0
  %2107 = vmatpush1.msra.mxu0 %v486
  %2108 = vmatprep.subr.mxu0 0.0
  %2109 = vmatpush1.msra.mxu0 %v487
  %2110 = vmatprep.subr.mxu0 0.0
  %2111 = vmatpush1.msra.mxu0 %v488
  %2112 = vmatprep.subr.mxu0 0.0
  %2113 = vmatpush1.msra.mxu0 %v489
  %2114 = vmatprep.subr.mxu0 0.0
  %2115 = vmatpush1.msra.mxu0 %v490
  %2116 = vmatprep.subr.mxu0 0.0
  %2117 = vmatpush1.msra.mxu0 %v491
  %2118 = vmatprep.subr.mxu0 0.0
  %2119 = vmatpush1.msra.mxu0 %v492
  %2120 = vmatprep.subr.mxu0 0.0
  %2121 = vmatpush1.msra.mxu0 %v493
  %2122 = vmatprep.subr.mxu0 0.0
  %2123 = vmatpush1.msra.mxu0 %v494
  %2124 = vmatprep.subr.mxu0 0.0
  %2125 = vmatpush1.msra.mxu0 %v495
  %2126 = vmatprep.subr.mxu0 0.0
  %2127 = vmatpush1.msra.mxu0 %v496
  %2128 = vmatprep.subr.mxu0 0.0
  %2129 = vmatpush1.msra.mxu0 %v497
  %2130 = vmatprep.subr.mxu0 0.0
  %2131 = vmatpush1.msra.mxu0 %v498
  %2132 = vmatprep.subr.mxu0 0.0
  %2133 = vmatpush1.msra.mxu0 %v499
  %2134 = vmatprep.subr.mxu0 0.0
  %2135 = vmatpush1.msra.mxu0 %v500
  %2136 = vmatprep.subr.mxu0 0.0
  %2137 = vmatpush1.msra.mxu0 %v501
  %2138 = vmatprep.subr.mxu0 0.0
  %2139 = vmatpush1.msra.mxu0 0.0
  %2140 = vmatprep.subr.mxu0 0.0
  %2141 = vmatpush1.msra.mxu0 0.0
  %2142 = vmatprep.subr.mxu0 0.0
  %2143 = vmatpush1.msra.mxu0 0.0
  %2144 = vmatprep.subr.mxu0 0.0
  %2145 = vmatpush1.msra.mxu0 0.0
  %2146 = vmatprep.subr.mxu0 0.0
  %2147 = vmatpush1.msra.mxu0 0.0
  %2148 = vmatprep.subr.mxu0 0.0
  %2149 = vmatpush1.msra.mxu0 0.0
  %2150 = vmatprep.subr.mxu0 0.0
  %2151 = vmatpush1.msra.mxu0 0.0
  %2152 = vmatprep.subr.mxu0 0.0
  %2153 = vmatpush1.msra.mxu0 0.0
  %2154 = vmatprep.subr.mxu0 0.0
  %2155 = vmatpush1.msra.mxu0 0.0
  %2156 = vmatprep.subr.mxu0 0.0
  %2157 = vmatpush1.msra.mxu0 0.0
  %2158 = vmatprep.subr.mxu0 0.0
  %2159 = vmatpush1.msra.mxu0 0.0
  %2160 = vmatprep.subr.mxu0 0.0
  %2161 = vmatpush1.msra.mxu0 0.0
  %2162 = vmatprep.subr.mxu0 0.0
  %2163 = vmatpush1.msra.mxu0 0.0
  %2164 = vmatprep.subr.mxu0 0.0
  %2165 = vmatpush1.msra.mxu0 0.0
  %2166 = vmatprep.subr.mxu0 0.0
  %2167 = vmatpush1.msra.mxu0 0.0
  %2168 = vmatprep.subr.mxu0 0.0
  %2169 = vmatpush1.msra.mxu0 0.0
  %2170 = vmatprep.mubr.f32.mxu0 0.0
  %2171 = vmatmul.mubr.f32.gmra.mrb[0].mxu0 %v2105
  %v2172 = vpop.f32.mrb[0].mxu0
  %v2173 = vadd.f32 0.0, %v2172
  %v2174 = vpop.f32.mrb[0].mxu0
  %2175 = vdwg.mxu0
  %v2176 = vld [vmem:[%s0 + $0x14] sm:$0xff]
  %v2177 = vld [vmem:[%s0 + $0x3c] sm:$0xff]
  %2179 = vrot.lane.b32.xlu0 %v2177, 32
  %v2180 = vpop.permute.xlu0 %2179
  %v2182 = vsel %vm50, %v2176, %v2180
  %2183 = vmatprep.subr.mxu0 0.0
  %2184 = vmatpush1.msra.mxu0 %v2182
  %2185 = vmatprep.subr.mxu0 0.0
  %2186 = vmatpush1.msra.mxu0 0.0
  %2187 = vmatprep.subr.mxu0 0.0
  %2188 = vmatpush1.msra.mxu0 0.0
  %2189 = vmatprep.subr.mxu0 0.0
  %2190 = vmatpush1.msra.mxu0 0.0
  %2191 = vmatprep.subr.mxu0 0.0
  %2192 = vmatpush1.msra.mxu0 0.0
  %2193 = vmatprep.subr.mxu0 0.0
  %2194 = vmatpush1.msra.mxu0 0.0
  %2195 = vmatprep.subr.mxu0 0.0
  %2196 = vmatpush1.msra.mxu0 0.0
  %2197 = vmatprep.subr.mxu0 0.0
  %2198 = vmatpush1.msra.mxu0 0.0
  %2199 = vmatprep.subr.mxu0 0.0
  %2200 = vmatpush1.msra.mxu0 0.0
  %2201 = vmatprep.subr.mxu0 0.0
  %2202 = vmatpush1.msra.mxu0 0.0
  %2203 = vmatprep.subr.mxu0 0.0
  %2204 = vmatpush1.msra.mxu0 0.0
  %2205 = vmatprep.subr.mxu0 0.0
  %2206 = vmatpush1.msra.mxu0 0.0
  %2207 = vmatprep.subr.mxu0 0.0
  %2208 = vmatpush1.msra.mxu0 0.0
  %2209 = vmatprep.subr.mxu0 0.0
  %2210 = vmatpush1.msra.mxu0 0.0
  %2211 = vmatprep.subr.mxu0 0.0
  %2212 = vmatpush1.msra.mxu0 0.0
  %2213 = vmatprep.subr.mxu0 0.0
  %2214 = vmatpush1.msra.mxu0 0.0
  %2215 = vmatprep.subr.mxu0 0.0
  %2216 = vmatpush1.msra.mxu0 0.0
  %2217 = vmatprep.subr.mxu0 0.0
  %2218 = vmatpush1.msra.mxu0 0.0
  %2219 = vmatprep.subr.mxu0 0.0
  %2220 = vmatpush1.msra.mxu0 0.0
  %2221 = vmatprep.subr.mxu0 0.0
  %2222 = vmatpush1.msra.mxu0 0.0
  %2223 = vmatprep.subr.mxu0 0.0
  %2224 = vmatpush1.msra.mxu0 0.0
  %2225 = vmatprep.subr.mxu0 0.0
  %2226 = vmatpush1.msra.mxu0 0.0
  %2227 = vmatprep.subr.mxu0 0.0
  %2228 = vmatpush1.msra.mxu0 0.0
  %2229 = vmatprep.subr.mxu0 0.0
  %2230 = vmatpush1.msra.mxu0 0.0
  %2231 = vmatprep.subr.mxu0 0.0
  %2232 = vmatpush1.msra.mxu0 0.0
  %2233 = vmatprep.subr.mxu0 0.0
  %2234 = vmatpush1.msra.mxu0 0.0
  %2235 = vmatprep.subr.mxu0 0.0
  %2236 = vmatpush1.msra.mxu0 0.0
  %2237 = vmatprep.subr.mxu0 0.0
  %2238 = vmatpush1.msra.mxu0 0.0
  %2239 = vmatprep.subr.mxu0 0.0
  %2240 = vmatpush1.msra.mxu0 0.0
  %2241 = vmatprep.subr.mxu0 0.0
  %2242 = vmatpush1.msra.mxu0 0.0
  %2243 = vmatprep.subr.mxu0 0.0
  %2244 = vmatpush1.msra.mxu0 0.0
  %2245 = vmatprep.subr.mxu0 0.0
  %2246 = vmatpush1.msra.mxu0 0.0
  %2247 = vmatprep.mubr.f32.mxu0 0.0
  %2248 = vmatmul.mubr.f32.gmra.mrb[0].mxu0 %v74
  %v2249 = vpop.f32.mrb[0].mxu0
  %v2250 = vadd.f32 0.0, %v2249
  %v2251 = vpop.f32.mrb[0].mxu0
  %2252 = vmatprep.mubr.f32.mxu0 0.0
  %2253 = vmatmul.mubr.f32.gmra.mrb[0].mxu0 %v77
  %v2254 = vpop.f32.mrb[0].mxu0
  %v2255 = vadd.f32 0.0, %v2254
  %v2256 = vpop.f32.mrb[0].mxu0
  %2257 = vmatprep.mubr.f32.mxu0 0.0
  %2258 = vmatmul.mubr.f32.gmra.mrb[0].mxu0 %v80
  %v2259 = vpop.f32.mrb[0].mxu0
  %v2260 = vadd.f32 0.0, %v2259
  %v2261 = vpop.f32.mrb[0].mxu0
  %2262 = vmatprep.mubr.f32.mxu0 0.0
  %2263 = vmatmul.mubr.f32.gmra.mrb[0].mxu0 %v83
  %v2264 = vpop.f32.mrb[0].mxu0
  %v2265 = vadd.f32 0.0, %v2264
  %v2266 = vpop.f32.mrb[0].mxu0
  %2267 = vmatprep.mubr.f32.mxu0 0.0
  %2268 = vmatmul.mubr.f32.gmra.mrb[0].mxu0 %v86
  %v2269 = vpop.f32.mrb[0].mxu0
  %v2270 = vadd.f32 0.0, %v2269
  %v2271 = vpop.f32.mrb[0].mxu0
  %2272 = vmatprep.mubr.f32.mxu0 0.0
  %2273 = vmatmul.mubr.f32.gmra.mrb[0].mxu0 %v89
  %v2274 = vpop.f32.mrb[0].mxu0
  %v2275 = vadd.f32 0.0, %v2274
  %v2276 = vpop.f32.mrb[0].mxu0
  %2277 = vmatprep.mubr.f32.mxu0 0.0
  %2278 = vmatmul.mubr.f32.gmra.mrb[0].mxu0 %v92
  %v2279 = vpop.f32.mrb[0].mxu0
  %v2280 = vadd.f32 0.0, %v2279
  %v2281 = vpop.f32.mrb[0].mxu0
  %2282 = vmatprep.mubr.f32.mxu0 0.0
  %2283 = vmatmul.mubr.f32.gmra.mrb[0].mxu0 %v95
  %v2284 = vpop.f32.mrb[0].mxu0
  %v2285 = vadd.f32 0.0, %v2284
  %v2286 = vpop.f32.mrb[0].mxu0
  %2287 = vmatprep.mubr.f32.mxu0 0.0
  %2288 = vmatmul.mubr.f32.gmra.mrb[0].mxu0 %v98
  %v2289 = vpop.f32.mrb[0].mxu0
  %v2290 = vadd.f32 0.0, %v2289
  %v2291 = vpop.f32.mrb[0].mxu0
  %2292 = vmatprep.mubr.f32.mxu0 0.0
  %2293 = vmatmul.mubr.f32.gmra.mrb[0].mxu0 %v101
  %v2294 = vpop.f32.mrb[0].mxu0
  %v2295 = vadd.f32 0.0, %v2294
  %v2296 = vpop.f32.mrb[0].mxu0
  %2297 = vmatprep.mubr.f32.mxu0 0.0
  %2298 = vmatmul.mubr.f32.gmra.mrb[0].mxu0 %v104
  %v2299 = vpop.f32.mrb[0].mxu0
  %v2300 = vadd.f32 0.0, %v2299
  %v2301 = vpop.f32.mrb[0].mxu0
  %2302 = vmatprep.mubr.f32.mxu0 0.0
  %2303 = vmatmul.mubr.f32.gmra.mrb[0].mxu0 %v107
  %v2304 = vpop.f32.mrb[0].mxu0
  %v2305 = vadd.f32 0.0, %v2304
  %v2306 = vpop.f32.mrb[0].mxu0
  %2307 = vmatprep.mubr.f32.mxu0 0.0
  %2308 = vmatmul.mubr.f32.gmra.mrb[0].mxu0 %v110
  %v2309 = vpop.f32.mrb[0].mxu0
  %v2310 = vadd.f32 0.0, %v2309
  %v2311 = vpop.f32.mrb[0].mxu0
  %2312 = vmatprep.mubr.f32.mxu0 0.0
  %2313 = vmatmul.mubr.f32.gmra.mrb[0].mxu0 %v113
  %v2314 = vpop.f32.mrb[0].mxu0
  %v2315 = vadd.f32 0.0, %v2314
  %v2316 = vpop.f32.mrb[0].mxu0
  %2317 = vmatprep.mubr.f32.mxu0 0.0
  %2318 = vmatmul.mubr.f32.gmra.mrb[0].mxu0 %v116
  %v2319 = vpop.f32.mrb[0].mxu0
  %v2320 = vadd.f32 0.0, %v2319
  %v2321 = vpop.f32.mrb[0].mxu0
  %2322 = vmatprep.mubr.f32.mxu0 0.0
  %2323 = vmatmul.mubr.f32.gmra.mrb[0].mxu0 %v119
  %v2324 = vpop.f32.mrb[0].mxu0
  %v2325 = vadd.f32 0.0, %v2324
  %v2326 = vpop.f32.mrb[0].mxu0
  %2327 = vmatprep.mubr.f32.mxu0 0.0
  %2328 = vmatmul.mubr.f32.gmra.mrb[0].mxu0 %v122
  %v2329 = vpop.f32.mrb[0].mxu0
  %v2330 = vadd.f32 0.0, %v2329
  %v2331 = vpop.f32.mrb[0].mxu0
  %2332 = vmatprep.mubr.f32.mxu0 0.0
  %2333 = vmatmul.mubr.f32.gmra.mrb[0].mxu0 %v125
  %v2334 = vpop.f32.mrb[0].mxu0
  %v2335 = vadd.f32 0.0, %v2334
  %v2336 = vpop.f32.mrb[0].mxu0
  %2337 = vmatprep.mubr.f32.mxu0 0.0
  %2338 = vmatmul.mubr.f32.gmra.mrb[0].mxu0 %v128
  %v2339 = vpop.f32.mrb[0].mxu0
  %v2340 = vadd.f32 0.0, %v2339
  %v2341 = vpop.f32.mrb[0].mxu0
  %2342 = vmatprep.mubr.f32.mxu0 0.0
  %2343 = vmatmul.mubr.f32.gmra.mrb[0].mxu0 %v131
  %v2344 = vpop.f32.mrb[0].mxu0
  %v2345 = vadd.f32 0.0, %v2344
  %v2346 = vpop.f32.mrb[0].mxu0
  %2347 = vdwg.mxu0
  %2352 = vrot.lane.b32.xlu0 %v2270, 127
  %v2353 = vpop.permute.xlu0 %2352
  %2354 = vrot.lane.b32.xlu0 %v2275, 127
  %v2355 = vpop.permute.xlu0 %2354
  %2356 = vrot.lane.b32.xlu0 %v2280, 127
  %v2357 = vpop.permute.xlu0 %2356
  %2358 = vrot.lane.b32.xlu0 %v2285, 127
  %v2359 = vpop.permute.xlu0 %2358
  %2364 = vrot.lane.b32.xlu0 %v2270, 63
  %v2365 = vpop.permute.xlu0 %2364
  %2366 = vrot.lane.b32.xlu0 %v2275, 63
  %v2367 = vpop.permute.xlu0 %2366
  %2368 = vrot.lane.b32.xlu0 %v2280, 63
  %v2369 = vpop.permute.xlu0 %2368
  %2370 = vrot.lane.b32.xlu0 %v2285, 63
  %v2371 = vpop.permute.xlu0 %2370
  %v2376 = vsel %vm326, %v2353, %v2365
  %v2377 = vsel %vm326, %v2355, %v2367
  %v2378 = vsel %vm326, %v2357, %v2369
  %v2379 = vsel %vm326, %v2359, %v2371
  %v2380 = vadd.f32 %v2250, %v2376
  %v2381 = vadd.f32 %v2255, %v2377
  %v2382 = vadd.f32 %v2260, %v2378
  %v2383 = vadd.f32 %v2265, %v2379
  %2388 = vrot.lane.b32.xlu0 %v2290, 126
  %v2389 = vpop.permute.xlu0 %2388
  %2390 = vrot.lane.b32.xlu0 %v2295, 126
  %v2391 = vpop.permute.xlu0 %2390
  %2392 = vrot.lane.b32.xlu0 %v2300, 126
  %v2393 = vpop.permute.xlu0 %2392
  %2394 = vrot.lane.b32.xlu0 %v2305, 126
  %v2395 = vpop.permute.xlu0 %2394
  %2400 = vrot.lane.b32.xlu0 %v2290, 62
  %v2401 = vpop.permute.xlu0 %2400
  %2402 = vrot.lane.b32.xlu0 %v2295, 62
  %v2403 = vpop.permute.xlu0 %2402
  %2404 = vrot.lane.b32.xlu0 %v2300, 62
  %v2405 = vpop.permute.xlu0 %2404
  %2406 = vrot.lane.b32.xlu0 %v2305, 62
  %v2407 = vpop.permute.xlu0 %2406
  %v2412 = vsel %vm363, %v2389, %v2401
  %v2413 = vsel %vm363, %v2391, %v2403
  %v2414 = vsel %vm363, %v2393, %v2405
  %v2415 = vsel %vm363, %v2395, %v2407
  %v2416 = vadd.f32 %v2380, %v2412
  %v2417 = vadd.f32 %v2381, %v2413
  %v2418 = vadd.f32 %v2382, %v2414
  %v2419 = vadd.f32 %v2383, %v2415
  %2424 = vrot.lane.b32.xlu0 %v2310, 125
  %v2425 = vpop.permute.xlu0 %2424
  %2426 = vrot.lane.b32.xlu0 %v2315, 125
  %v2427 = vpop.permute.xlu0 %2426
  %2428 = vrot.lane.b32.xlu0 %v2320, 125
  %v2429 = vpop.permute.xlu0 %2428
  %2430 = vrot.lane.b32.xlu0 %v2325, 125
  %v2431 = vpop.permute.xlu0 %2430
  %2436 = vrot.lane.b32.xlu0 %v2310, 61
  %v2437 = vpop.permute.xlu0 %2436
  %2438 = vrot.lane.b32.xlu0 %v2315, 61
  %v2439 = vpop.permute.xlu0 %2438
  %2440 = vrot.lane.b32.xlu0 %v2320, 61
  %v2441 = vpop.permute.xlu0 %2440
  %2442 = vrot.lane.b32.xlu0 %v2325, 61
  %v2443 = vpop.permute.xlu0 %2442
  %v2448 = vsel %vm400, %v2425, %v2437
  %v2449 = vsel %vm400, %v2427, %v2439
  %v2450 = vsel %vm400, %v2429, %v2441
  %v2451 = vsel %vm400, %v2431, %v2443
  %v2452 = vadd.f32 %v2416, %v2448
  %v2453 = vadd.f32 %v2417, %v2449
  %v2454 = vadd.f32 %v2418, %v2450
  %v2455 = vadd.f32 %v2419, %v2451
  %2460 = vrot.lane.b32.xlu0 %v2330, 124
  %v2461 = vpop.permute.xlu0 %2460
  %2462 = vrot.lane.b32.xlu0 %v2335, 124
  %v2463 = vpop.permute.xlu0 %2462
  %2464 = vrot.lane.b32.xlu0 %v2340, 124
  %v2465 = vpop.permute.xlu0 %2464
  %2466 = vrot.lane.b32.xlu0 %v2345, 124
  %v2467 = vpop.permute.xlu0 %2466
  %2472 = vrot.lane.b32.xlu0 %v2330, 60
  %v2473 = vpop.permute.xlu0 %2472
  %2474 = vrot.lane.b32.xlu0 %v2335, 60
  %v2475 = vpop.permute.xlu0 %2474
  %2476 = vrot.lane.b32.xlu0 %v2340, 60
  %v2477 = vpop.permute.xlu0 %2476
  %2478 = vrot.lane.b32.xlu0 %v2345, 60
  %v2479 = vpop.permute.xlu0 %2478
  %v2484 = vsel %vm437, %v2461, %v2473
  %v2485 = vsel %vm437, %v2463, %v2475
  %v2486 = vsel %vm437, %v2465, %v2477
  %v2487 = vsel %vm437, %v2467, %v2479
  %v2488 = vadd.f32 %v2452, %v2484
  %v2489 = vadd.f32 %v2453, %v2485
  %v2490 = vadd.f32 %v2454, %v2486
  %v2491 = vadd.f32 %v2455, %v2487
  %v2492 = vadd.f32 %v2488, %v453
  %v2493 = vadd.f32 %v2489, %v458
  %v2494 = vadd.f32 %v2490, %v463
  %v2495 = vadd.f32 %v2491, %v468
  %v2496 = vmax.f32 %v2492, 0.0
  %v2497 = vmax.f32 %v2493, 0.0
  %v2498 = vmax.f32 %v2494, 0.0
  %v2499 = vmax.f32 %v2495, 0.0
  %v2500 = vadd.f32 %v2496, %v2497
  %v2501 = vadd.f32 %v2498, %v2499
  %2503 = vrot.lane.b32.xlu0 %v2501, 64
  %v2504 = vpop.permute.xlu0 %2503
  %v2506 = vsel %vm484, %v2500, %v2504
  %2507 = vmatprep.subr.mxu0 0.0
  %2508 = vmatpush1.msra.mxu0 %v486
  %2509 = vmatprep.subr.mxu0 0.0
  %2510 = vmatpush1.msra.mxu0 %v487
  %2511 = vmatprep.subr.mxu0 0.0
  %2512 = vmatpush1.msra.mxu0 %v488
  %2513 = vmatprep.subr.mxu0 0.0
  %2514 = vmatpush1.msra.mxu0 %v489
  %2515 = vmatprep.subr.mxu0 0.0
  %2516 = vmatpush1.msra.mxu0 %v490
  %2517 = vmatprep.subr.mxu0 0.0
  %2518 = vmatpush1.msra.mxu0 %v491
  %2519 = vmatprep.subr.mxu0 0.0
  %2520 = vmatpush1.msra.mxu0 %v492
  %2521 = vmatprep.subr.mxu0 0.0
  %2522 = vmatpush1.msra.mxu0 %v493
  %2523 = vmatprep.subr.mxu0 0.0
  %2524 = vmatpush1.msra.mxu0 %v494
  %2525 = vmatprep.subr.mxu0 0.0
  %2526 = vmatpush1.msra.mxu0 %v495
  %2527 = vmatprep.subr.mxu0 0.0
  %2528 = vmatpush1.msra.mxu0 %v496
  %2529 = vmatprep.subr.mxu0 0.0
  %2530 = vmatpush1.msra.mxu0 %v497
  %2531 = vmatprep.subr.mxu0 0.0
  %2532 = vmatpush1.msra.mxu0 %v498
  %2533 = vmatprep.subr.mxu0 0.0
  %2534 = vmatpush1.msra.mxu0 %v499
  %2535 = vmatprep.subr.mxu0 0.0
  %2536 = vmatpush1.msra.mxu0 %v500
  %2537 = vmatprep.subr.mxu0 0.0
  %2538 = vmatpush1.msra.mxu0 %v501
  %2539 = vmatprep.subr.mxu0 0.0
  %2540 = vmatpush1.msra.mxu0 0.0
  %2541 = vmatprep.subr.mxu0 0.0
  %2542 = vmatpush1.msra.mxu0 0.0
  %2543 = vmatprep.subr.mxu0 0.0
  %2544 = vmatpush1.msra.mxu0 0.0
  %2545 = vmatprep.subr.mxu0 0.0
  %2546 = vmatpush1.msra.mxu0 0.0
  %2547 = vmatprep.subr.mxu0 0.0
  %2548 = vmatpush1.msra.mxu0 0.0
  %2549 = vmatprep.subr.mxu0 0.0
  %2550 = vmatpush1.msra.mxu0 0.0
  %2551 = vmatprep.subr.mxu0 0.0
  %2552 = vmatpush1.msra.mxu0 0.0
  %2553 = vmatprep.subr.mxu0 0.0
  %2554 = vmatpush1.msra.mxu0 0.0
  %2555 = vmatprep.subr.mxu0 0.0
  %2556 = vmatpush1.msra.mxu0 0.0
  %2557 = vmatprep.subr.mxu0 0.0
  %2558 = vmatpush1.msra.mxu0 0.0
  %2559 = vmatprep.subr.mxu0 0.0
  %2560 = vmatpush1.msra.mxu0 0.0
  %2561 = vmatprep.subr.mxu0 0.0
  %2562 = vmatpush1.msra.mxu0 0.0
  %2563 = vmatprep.subr.mxu0 0.0
  %2564 = vmatpush1.msra.mxu0 0.0
  %2565 = vmatprep.subr.mxu0 0.0
  %2566 = vmatpush1.msra.mxu0 0.0
  %2567 = vmatprep.subr.mxu0 0.0
  %2568 = vmatpush1.msra.mxu0 0.0
  %2569 = vmatprep.subr.mxu0 0.0
  %2570 = vmatpush1.msra.mxu0 0.0
  %2571 = vmatprep.mubr.f32.mxu0 0.0
  %2572 = vmatmul.mubr.f32.gmra.mrb[0].mxu0 %v2506
  %v2573 = vpop.f32.mrb[0].mxu0
  %v2574 = vadd.f32 0.0, %v2573
  %v2575 = vpop.f32.mrb[0].mxu0
  %2576 = vdwg.mxu0
  %v2577 = vld [vmem:[%s0 + $0x18] sm:$0xff]
  %v2578 = vld [vmem:[%s0 + $0x40] sm:$0xff]
  %2580 = vrot.lane.b32.xlu0 %v2578, 32
  %v2581 = vpop.permute.xlu0 %2580
  %v2583 = vsel %vm50, %v2577, %v2581
  %2584 = vmatprep.subr.mxu0 0.0
  %2585 = vmatpush1.msra.mxu0 %v2583
  %2586 = vmatprep.subr.mxu0 0.0
  %2587 = vmatpush1.msra.mxu0 0.0
  %2588 = vmatprep.subr.mxu0 0.0
  %2589 = vmatpush1.msra.mxu0 0.0
  %2590 = vmatprep.subr.mxu0 0.0
  %2591 = vmatpush1.msra.mxu0 0.0
  %2592 = vmatprep.subr.mxu0 0.0
  %2593 = vmatpush1.msra.mxu0 0.0
  %2594 = vmatprep.subr.mxu0 0.0
  %2595 = vmatpush1.msra.mxu0 0.0
  %2596 = vmatprep.subr.mxu0 0.0
  %2597 = vmatpush1.msra.mxu0 0.0
  %2598 = vmatprep.subr.mxu0 0.0
  %2599 = vmatpush1.msra.mxu0 0.0
  %2600 = vmatprep.subr.mxu0 0.0
  %2601 = vmatpush1.msra.mxu0 0.0
  %2602 = vmatprep.subr.mxu0 0.0
  %2603 = vmatpush1.msra.mxu0 0.0
  %2604 = vmatprep.subr.mxu0 0.0
  %2605 = vmatpush1.msra.mxu0 0.0
  %2606 = vmatprep.subr.mxu0 0.0
  %2607 = vmatpush1.msra.mxu0 0.0
  %2608 = vmatprep.subr.mxu0 0.0
  %2609 = vmatpush1.msra.mxu0 0.0
  %2610 = vmatprep.subr.mxu0 0.0
  %2611 = vmatpush1.msra.mxu0 0.0
  %2612 = vmatprep.subr.mxu0 0.0
  %2613 = vmatpush1.msra.mxu0 0.0
  %2614 = vmatprep.subr.mxu0 0.0
  %2615 = vmatpush1.msra.mxu0 0.0
  %2616 = vmatprep.subr.mxu0 0.0
  %2617 = vmatpush1.msra.mxu0 0.0
  %2618 = vmatprep.subr.mxu0 0.0
  %2619 = vmatpush1.msra.mxu0 0.0
  %2620 = vmatprep.subr.mxu0 0.0
  %2621 = vmatpush1.msra.mxu0 0.0
  %2622 = vmatprep.subr.mxu0 0.0
  %2623 = vmatpush1.msra.mxu0 0.0
  %2624 = vmatprep.subr.mxu0 0.0
  %2625 = vmatpush1.msra.mxu0 0.0
  %2626 = vmatprep.subr.mxu0 0.0
  %2627 = vmatpush1.msra.mxu0 0.0
  %2628 = vmatprep.subr.mxu0 0.0
  %2629 = vmatpush1.msra.mxu0 0.0
  %2630 = vmatprep.subr.mxu0 0.0
  %2631 = vmatpush1.msra.mxu0 0.0
  %2632 = vmatprep.subr.mxu0 0.0
  %2633 = vmatpush1.msra.mxu0 0.0
  %2634 = vmatprep.subr.mxu0 0.0
  %2635 = vmatpush1.msra.mxu0 0.0
  %2636 = vmatprep.subr.mxu0 0.0
  %2637 = vmatpush1.msra.mxu0 0.0
  %2638 = vmatprep.subr.mxu0 0.0
  %2639 = vmatpush1.msra.mxu0 0.0
  %2640 = vmatprep.subr.mxu0 0.0
  %2641 = vmatpush1.msra.mxu0 0.0
  %2642 = vmatprep.subr.mxu0 0.0
  %2643 = vmatpush1.msra.mxu0 0.0
  %2644 = vmatprep.subr.mxu0 0.0
  %2645 = vmatpush1.msra.mxu0 0.0
  %2646 = vmatprep.subr.mxu0 0.0
  %2647 = vmatpush1.msra.mxu0 0.0
  %2648 = vmatprep.mubr.f32.mxu0 0.0
  %2649 = vmatmul.mubr.f32.gmra.mrb[0].mxu0 %v74
  %v2650 = vpop.f32.mrb[0].mxu0
  %v2651 = vadd.f32 0.0, %v2650
  %v2652 = vpop.f32.mrb[0].mxu0
  %2653 = vmatprep.mubr.f32.mxu0 0.0
  %2654 = vmatmul.mubr.f32.gmra.mrb[0].mxu0 %v77
  %v2655 = vpop.f32.mrb[0].mxu0
  %v2656 = vadd.f32 0.0, %v2655
  %v2657 = vpop.f32.mrb[0].mxu0
  %2658 = vmatprep.mubr.f32.mxu0 0.0
  %2659 = vmatmul.mubr.f32.gmra.mrb[0].mxu0 %v80
  %v2660 = vpop.f32.mrb[0].mxu0
  %v2661 = vadd.f32 0.0, %v2660
  %v2662 = vpop.f32.mrb[0].mxu0
  %2663 = vmatprep.mubr.f32.mxu0 0.0
  %2664 = vmatmul.mubr.f32.gmra.mrb[0].mxu0 %v83
  %v2665 = vpop.f32.mrb[0].mxu0
  %v2666 = vadd.f32 0.0, %v2665
  %v2667 = vpop.f32.mrb[0].mxu0
  %2668 = vmatprep.mubr.f32.mxu0 0.0
  %2669 = vmatmul.mubr.f32.gmra.mrb[0].mxu0 %v86
  %v2670 = vpop.f32.mrb[0].mxu0
  %v2671 = vadd.f32 0.0, %v2670
  %v2672 = vpop.f32.mrb[0].mxu0
  %2673 = vmatprep.mubr.f32.mxu0 0.0
  %2674 = vmatmul.mubr.f32.gmra.mrb[0].mxu0 %v89
  %v2675 = vpop.f32.mrb[0].mxu0
  %v2676 = vadd.f32 0.0, %v2675
  %v2677 = vpop.f32.mrb[0].mxu0
  %2678 = vmatprep.mubr.f32.mxu0 0.0
  %2679 = vmatmul.mubr.f32.gmra.mrb[0].mxu0 %v92
  %v2680 = vpop.f32.mrb[0].mxu0
  %v2681 = vadd.f32 0.0, %v2680
  %v2682 = vpop.f32.mrb[0].mxu0
  %2683 = vmatprep.mubr.f32.mxu0 0.0
  %2684 = vmatmul.mubr.f32.gmra.mrb[0].mxu0 %v95
  %v2685 = vpop.f32.mrb[0].mxu0
  %v2686 = vadd.f32 0.0, %v2685
  %v2687 = vpop.f32.mrb[0].mxu0
  %2688 = vmatprep.mubr.f32.mxu0 0.0
  %2689 = vmatmul.mubr.f32.gmra.mrb[0].mxu0 %v98
  %v2690 = vpop.f32.mrb[0].mxu0
  %v2691 = vadd.f32 0.0, %v2690
  %v2692 = vpop.f32.mrb[0].mxu0
  %2693 = vmatprep.mubr.f32.mxu0 0.0
  %2694 = vmatmul.mubr.f32.gmra.mrb[0].mxu0 %v101
  %v2695 = vpop.f32.mrb[0].mxu0
  %v2696 = vadd.f32 0.0, %v2695
  %v2697 = vpop.f32.mrb[0].mxu0
  %2698 = vmatprep.mubr.f32.mxu0 0.0
  %2699 = vmatmul.mubr.f32.gmra.mrb[0].mxu0 %v104
  %v2700 = vpop.f32.mrb[0].mxu0
  %v2701 = vadd.f32 0.0, %v2700
  %v2702 = vpop.f32.mrb[0].mxu0
  %2703 = vmatprep.mubr.f32.mxu0 0.0
  %2704 = vmatmul.mubr.f32.gmra.mrb[0].mxu0 %v107
  %v2705 = vpop.f32.mrb[0].mxu0
  %v2706 = vadd.f32 0.0, %v2705
  %v2707 = vpop.f32.mrb[0].mxu0
  %2708 = vmatprep.mubr.f32.mxu0 0.0
  %2709 = vmatmul.mubr.f32.gmra.mrb[0].mxu0 %v110
  %v2710 = vpop.f32.mrb[0].mxu0
  %v2711 = vadd.f32 0.0, %v2710
  %v2712 = vpop.f32.mrb[0].mxu0
  %2713 = vmatprep.mubr.f32.mxu0 0.0
  %2714 = vmatmul.mubr.f32.gmra.mrb[0].mxu0 %v113
  %v2715 = vpop.f32.mrb[0].mxu0
  %v2716 = vadd.f32 0.0, %v2715
  %v2717 = vpop.f32.mrb[0].mxu0
  %2718 = vmatprep.mubr.f32.mxu0 0.0
  %2719 = vmatmul.mubr.f32.gmra.mrb[0].mxu0 %v116
  %v2720 = vpop.f32.mrb[0].mxu0
  %v2721 = vadd.f32 0.0, %v2720
  %v2722 = vpop.f32.mrb[0].mxu0
  %2723 = vmatprep.mubr.f32.mxu0 0.0
  %2724 = vmatmul.mubr.f32.gmra.mrb[0].mxu0 %v119
  %v2725 = vpop.f32.mrb[0].mxu0
  %v2726 = vadd.f32 0.0, %v2725
  %v2727 = vpop.f32.mrb[0].mxu0
  %2728 = vmatprep.mubr.f32.mxu0 0.0
  %2729 = vmatmul.mubr.f32.gmra.mrb[0].mxu0 %v122
  %v2730 = vpop.f32.mrb[0].mxu0
  %v2731 = vadd.f32 0.0, %v2730
  %v2732 = vpop.f32.mrb[0].mxu0
  %2733 = vmatprep.mubr.f32.mxu0 0.0
  %2734 = vmatmul.mubr.f32.gmra.mrb[0].mxu0 %v125
  %v2735 = vpop.f32.mrb[0].mxu0
  %v2736 = vadd.f32 0.0, %v2735
  %v2737 = vpop.f32.mrb[0].mxu0
  %2738 = vmatprep.mubr.f32.mxu0 0.0
  %2739 = vmatmul.mubr.f32.gmra.mrb[0].mxu0 %v128
  %v2740 = vpop.f32.mrb[0].mxu0
  %v2741 = vadd.f32 0.0, %v2740
  %v2742 = vpop.f32.mrb[0].mxu0
  %2743 = vmatprep.mubr.f32.mxu0 0.0
  %2744 = vmatmul.mubr.f32.gmra.mrb[0].mxu0 %v131
  %v2745 = vpop.f32.mrb[0].mxu0
  %v2746 = vadd.f32 0.0, %v2745
  %v2747 = vpop.f32.mrb[0].mxu0
  %2748 = vdwg.mxu0
  %2753 = vrot.lane.b32.xlu0 %v2671, 127
  %v2754 = vpop.permute.xlu0 %2753
  %2755 = vrot.lane.b32.xlu0 %v2676, 127
  %v2756 = vpop.permute.xlu0 %2755
  %2757 = vrot.lane.b32.xlu0 %v2681, 127
  %v2758 = vpop.permute.xlu0 %2757
  %2759 = vrot.lane.b32.xlu0 %v2686, 127
  %v2760 = vpop.permute.xlu0 %2759
  %2765 = vrot.lane.b32.xlu0 %v2671, 63
  %v2766 = vpop.permute.xlu0 %2765
  %2767 = vrot.lane.b32.xlu0 %v2676, 63
  %v2768 = vpop.permute.xlu0 %2767
  %2769 = vrot.lane.b32.xlu0 %v2681, 63
  %v2770 = vpop.permute.xlu0 %2769
  %2771 = vrot.lane.b32.xlu0 %v2686, 63
  %v2772 = vpop.permute.xlu0 %2771
  %v2777 = vsel %vm326, %v2754, %v2766
  %v2778 = vsel %vm326, %v2756, %v2768
  %v2779 = vsel %vm326, %v2758, %v2770
  %v2780 = vsel %vm326, %v2760, %v2772
  %v2781 = vadd.f32 %v2651, %v2777
  %v2782 = vadd.f32 %v2656, %v2778
  %v2783 = vadd.f32 %v2661, %v2779
  %v2784 = vadd.f32 %v2666, %v2780
  %2789 = vrot.lane.b32.xlu0 %v2691, 126
  %v2790 = vpop.permute.xlu0 %2789
  %2791 = vrot.lane.b32.xlu0 %v2696, 126
  %v2792 = vpop.permute.xlu0 %2791
  %2793 = vrot.lane.b32.xlu0 %v2701, 126
  %v2794 = vpop.permute.xlu0 %2793
  %2795 = vrot.lane.b32.xlu0 %v2706, 126
  %v2796 = vpop.permute.xlu0 %2795
  %2801 = vrot.lane.b32.xlu0 %v2691, 62
  %v2802 = vpop.permute.xlu0 %2801
  %2803 = vrot.lane.b32.xlu0 %v2696, 62
  %v2804 = vpop.permute.xlu0 %2803
  %2805 = vrot.lane.b32.xlu0 %v2701, 62
  %v2806 = vpop.permute.xlu0 %2805
  %2807 = vrot.lane.b32.xlu0 %v2706, 62
  %v2808 = vpop.permute.xlu0 %2807
  %v2813 = vsel %vm363, %v2790, %v2802
  %v2814 = vsel %vm363, %v2792, %v2804
  %v2815 = vsel %vm363, %v2794, %v2806
  %v2816 = vsel %vm363, %v2796, %v2808
  %v2817 = vadd.f32 %v2781, %v2813
  %v2818 = vadd.f32 %v2782, %v2814
  %v2819 = vadd.f32 %v2783, %v2815
  %v2820 = vadd.f32 %v2784, %v2816
  %2825 = vrot.lane.b32.xlu0 %v2711, 125
  %v2826 = vpop.permute.xlu0 %2825
  %2827 = vrot.lane.b32.xlu0 %v2716, 125
  %v2828 = vpop.permute.xlu0 %2827
  %2829 = vrot.lane.b32.xlu0 %v2721, 125
  %v2830 = vpop.permute.xlu0 %2829
  %2831 = vrot.lane.b32.xlu0 %v2726, 125
  %v2832 = vpop.permute.xlu0 %2831
  %2837 = vrot.lane.b32.xlu0 %v2711, 61
  %v2838 = vpop.permute.xlu0 %2837
  %2839 = vrot.lane.b32.xlu0 %v2716, 61
  %v2840 = vpop.permute.xlu0 %2839
  %2841 = vrot.lane.b32.xlu0 %v2721, 61
  %v2842 = vpop.permute.xlu0 %2841
  %2843 = vrot.lane.b32.xlu0 %v2726, 61
  %v2844 = vpop.permute.xlu0 %2843
  %v2849 = vsel %vm400, %v2826, %v2838
  %v2850 = vsel %vm400, %v2828, %v2840
  %v2851 = vsel %vm400, %v2830, %v2842
  %v2852 = vsel %vm400, %v2832, %v2844
  %v2853 = vadd.f32 %v2817, %v2849
  %v2854 = vadd.f32 %v2818, %v2850
  %v2855 = vadd.f32 %v2819, %v2851
  %v2856 = vadd.f32 %v2820, %v2852
  %2861 = vrot.lane.b32.xlu0 %v2731, 124
  %v2862 = vpop.permute.xlu0 %2861
  %2863 = vrot.lane.b32.xlu0 %v2736, 124
  %v2864 = vpop.permute.xlu0 %2863
  %2865 = vrot.lane.b32.xlu0 %v2741, 124
  %v2866 = vpop.permute.xlu0 %2865
  %2867 = vrot.lane.b32.xlu0 %v2746, 124
  %v2868 = vpop.permute.xlu0 %2867
  %2873 = vrot.lane.b32.xlu0 %v2731, 60
  %v2874 = vpop.permute.xlu0 %2873
  %2875 = vrot.lane.b32.xlu0 %v2736, 60
  %v2876 = vpop.permute.xlu0 %2875
  %2877 = vrot.lane.b32.xlu0 %v2741, 60
  %v2878 = vpop.permute.xlu0 %2877
  %2879 = vrot.lane.b32.xlu0 %v2746, 60
  %v2880 = vpop.permute.xlu0 %2879
  %v2885 = vsel %vm437, %v2862, %v2874
  %v2886 = vsel %vm437, %v2864, %v2876
  %v2887 = vsel %vm437, %v2866, %v2878
  %v2888 = vsel %vm437, %v2868, %v2880
  %v2889 = vadd.f32 %v2853, %v2885
  %v2890 = vadd.f32 %v2854, %v2886
  %v2891 = vadd.f32 %v2855, %v2887
  %v2892 = vadd.f32 %v2856, %v2888
  %v2893 = vadd.f32 %v2889, %v453
  %v2894 = vadd.f32 %v2890, %v458
  %v2895 = vadd.f32 %v2891, %v463
  %v2896 = vadd.f32 %v2892, %v468
  %v2897 = vmax.f32 %v2893, 0.0
  %v2898 = vmax.f32 %v2894, 0.0
  %v2899 = vmax.f32 %v2895, 0.0
  %v2900 = vmax.f32 %v2896, 0.0
  %v2901 = vadd.f32 %v2897, %v2898
  %v2902 = vadd.f32 %v2899, %v2900
  %2904 = vrot.lane.b32.xlu0 %v2902, 64
  %v2905 = vpop.permute.xlu0 %2904
  %v2907 = vsel %vm484, %v2901, %v2905
  %2908 = vmatprep.subr.mxu0 0.0
  %2909 = vmatpush1.msra.mxu0 %v486
  %2910 = vmatprep.subr.mxu0 0.0
  %2911 = vmatpush1.msra.mxu0 %v487
  %2912 = vmatprep.subr.mxu0 0.0
  %2913 = vmatpush1.msra.mxu0 %v488
  %2914 = vmatprep.subr.mxu0 0.0
  %2915 = vmatpush1.msra.mxu0 %v489
  %2916 = vmatprep.subr.mxu0 0.0
  %2917 = vmatpush1.msra.mxu0 %v490
  %2918 = vmatprep.subr.mxu0 0.0
  %2919 = vmatpush1.msra.mxu0 %v491
  %2920 = vmatprep.subr.mxu0 0.0
  %2921 = vmatpush1.msra.mxu0 %v492
  %2922 = vmatprep.subr.mxu0 0.0
  %2923 = vmatpush1.msra.mxu0 %v493
  %2924 = vmatprep.subr.mxu0 0.0
  %2925 = vmatpush1.msra.mxu0 %v494
  %2926 = vmatprep.subr.mxu0 0.0
  %2927 = vmatpush1.msra.mxu0 %v495
  %2928 = vmatprep.subr.mxu0 0.0
  %2929 = vmatpush1.msra.mxu0 %v496
  %2930 = vmatprep.subr.mxu0 0.0
  %2931 = vmatpush1.msra.mxu0 %v497
  %2932 = vmatprep.subr.mxu0 0.0
  %2933 = vmatpush1.msra.mxu0 %v498
  %2934 = vmatprep.subr.mxu0 0.0
  %2935 = vmatpush1.msra.mxu0 %v499
  %2936 = vmatprep.subr.mxu0 0.0
  %2937 = vmatpush1.msra.mxu0 %v500
  %2938 = vmatprep.subr.mxu0 0.0
  %2939 = vmatpush1.msra.mxu0 %v501
  %2940 = vmatprep.subr.mxu0 0.0
  %2941 = vmatpush1.msra.mxu0 0.0
  %2942 = vmatprep.subr.mxu0 0.0
  %2943 = vmatpush1.msra.mxu0 0.0
  %2944 = vmatprep.subr.mxu0 0.0
  %2945 = vmatpush1.msra.mxu0 0.0
  %2946 = vmatprep.subr.mxu0 0.0
  %2947 = vmatpush1.msra.mxu0 0.0
  %2948 = vmatprep.subr.mxu0 0.0
  %2949 = vmatpush1.msra.mxu0 0.0
  %2950 = vmatprep.subr.mxu0 0.0
  %2951 = vmatpush1.msra.mxu0 0.0
  %2952 = vmatprep.subr.mxu0 0.0
  %2953 = vmatpush1.msra.mxu0 0.0
  %2954 = vmatprep.subr.mxu0 0.0
  %2955 = vmatpush1.msra.mxu0 0.0
  %2956 = vmatprep.subr.mxu0 0.0
  %2957 = vmatpush1.msra.mxu0 0.0
  %2958 = vmatprep.subr.mxu0 0.0
  %2959 = vmatpush1.msra.mxu0 0.0
  %2960 = vmatprep.subr.mxu0 0.0
  %2961 = vmatpush1.msra.mxu0 0.0
  %2962 = vmatprep.subr.mxu0 0.0
  %2963 = vmatpush1.msra.mxu0 0.0
  %2964 = vmatprep.subr.mxu0 0.0
  %2965 = vmatpush1.msra.mxu0 0.0
  %2966 = vmatprep.subr.mxu0 0.0
  %2967 = vmatpush1.msra.mxu0 0.0
  %2968 = vmatprep.subr.mxu0 0.0
  %2969 = vmatpush1.msra.mxu0 0.0
  %2970 = vmatprep.subr.mxu0 0.0
  %2971 = vmatpush1.msra.mxu0 0.0
  %2972 = vmatprep.mubr.f32.mxu0 0.0
  %2973 = vmatmul.mubr.f32.gmra.mrb[0].mxu0 %v2907
  %v2974 = vpop.f32.mrb[0].mxu0
  %v2975 = vadd.f32 0.0, %v2974
  %v2976 = vpop.f32.mrb[0].mxu0
  %2977 = vdwg.mxu0
  %2979 = vrot.lane.b32.xlu0 %v970, 56
  %v2980 = vpop.permute.xlu0 %2979
  %2983 = vrot.lane.b32.xlu0 %v1371, 112
  %v2984 = vpop.permute.xlu0 %2983
  %2987 = vrot.lane.b32.xlu0 %v1772, 40
  %v2988 = vpop.permute.xlu0 %2987
  %2991 = vrot.lane.b32.xlu0 %v2173, 96
  %v2992 = vpop.permute.xlu0 %2991
  %2995 = vrot.lane.b32.xlu0 %v2574, 24
  %v2996 = vpop.permute.xlu0 %2995
  %2999 = vrot.lane.b32.xlu0 %v2975, 80
  %v3000 = vpop.permute.xlu0 %2999
  %vm3002 = vcmask 457728
  %v3003 = vsel %vm3002, %v569, %v2980
  %vm3004 = vcmask 916480
  %v3005 = vsel %vm3004, %v3003, %v2984
  %vm3006 = vcmask 326656
  %v3007 = vsel %vm3006, %v2984, %v2988
  %vm3008 = vcmask 785408
  %v3009 = vsel %vm3008, %v3007, %v2992
  %vm3010 = vcmask 195584
  %v3011 = vsel %vm3010, %v2992, %v2996
  %vm3012 = vcmask 654336
  %v3013 = vsel %vm3012, %v3011, %v3000
  %3015 = vrot.lane.b32.xlu0 %v3005, 100
  %v3016 = vpop.permute.xlu0 %3015
  %3019 = vrot.lane.b32.xlu0 %v3005, 72
  %v3020 = vpop.permute.xlu0 %3019
  %3021 = vrot.lane.b32.xlu0 %v3009, 72
  %v3022 = vpop.permute.xlu0 %3021
  %vm3023 = vcmask 588800
  %v3024 = vsel %vm3023, %v3020, %v3022
  %3026 = vrot.lane.b32.xlu0 %v3009, 44
  %v3027 = vpop.permute.xlu0 %3026
  %3029 = vrot.lane.b32.xlu0 %v3009, 16
  %v3030 = vpop.permute.xlu0 %3029
  %vm3032 = vcmask 228352
  %v3033 = vsel %vm3032, %v3005, %v3016
  %v3034 = vsel %vm3002, %v3033, %v3024
  %vm3035 = vcmask 687104
  %v3036 = vsel %vm3035, %v3034, %v3027
  %v3037 = vsel %vm3004, %v3036, %v3030
  %3040 = vrot.lane.b32.xlu0 %v3009, 116
  %v3041 = vpop.permute.xlu0 %3040
  %3042 = vrot.lane.b32.xlu0 %v3013, 116
  %v3043 = vpop.permute.xlu0 %3042
  %vm3044 = vcmask 949248
  %v3045 = vsel %vm3044, %v3041, %v3043
  %v3048 = vsel %vm3032, %v3016, %v3020
  %v3049 = vsel %vm3002, %v3048, %v3027
  %v3050 = vsel %vm3035, %v3049, %v3030
  %v3051 = vsel %vm3004, %v3050, %v3045
  %3052 = vrot.lane.b32.xlu0 %v3005, 44
  %v3053 = vpop.permute.xlu0 %3052
  %vm3054 = vcmask 359424
  %v3055 = vsel %vm3054, %v3053, %v3027
  %3058 = vrot.lane.b32.xlu0 %v3013, 88
  %v3059 = vpop.permute.xlu0 %3058
  %v3061 = vsel %vm3032, %v3020, %v3055
  %v3062 = vsel %vm3002, %v3061, %v3030
  %v3063 = vsel %vm3035, %v3062, %v3041
  %v3064 = vsel %vm3004, %v3063, %v3059
  %3066 = vrot.lane.b32.xlu0 %v3009, 88
  %v3067 = vpop.permute.xlu0 %3066
  %vm3068 = vcmask 719872
  %v3069 = vsel %vm3068, %v3067, %v3059
  %3071 = vrot.lane.b32.xlu0 %v3013, 60
  %v3072 = vpop.permute.xlu0 %3071
  %v3074 = vsel %vm3032, %v3053, %v3030
  %v3075 = vsel %vm3002, %v3074, %v3041
  %v3076 = vsel %vm3035, %v3075, %v3069
  %v3077 = vsel %vm3004, %v3076, %v3072
  %3078 = vrot.lane.b32.xlu0 %v3005, 16
  %v3079 = vpop.permute.xlu0 %3078
  %vm3080 = vcmask 130048
  %v3081 = vsel %vm3080, %v3079, %v3030
  %3084 = vrot.lane.b32.xlu0 %v3013, 32
  %v3085 = vpop.permute.xlu0 %3084
  %v3087 = vsel %vm3032, %v3081, %v3041
  %v3088 = vsel %vm3002, %v3087, %v3067
  %v3089 = vsel %vm3035, %v3088, %v3072
  %v3090 = vsel %vm3004, %v3089, %v3085
  %3091 = vrot.lane.b32.xlu0 %v3009, 60
  %v3092 = vpop.permute.xlu0 %3091
  %v3093 = vsel %vm437, %v3092, %v3072
  %3095 = vrot.lane.b32.xlu0 %v3013, 4
  %v3096 = vpop.permute.xlu0 %3095
  %3097 = vrot.lane.b32.xlu0 %v3000, 4
  %v3098 = vpop.permute.xlu0 %3097
  %vm3099 = vcmask 31744
  %v3100 = vsel %vm3099, %v3096, %v3098
  %v3103 = vsel %vm3032, %v3041, %v3067
  %v3104 = vsel %vm3002, %v3103, %v3093
  %v3105 = vsel %vm3035, %v3104, %v3085
  %v3106 = vsel %vm3004, %v3105, %v3096
  %v3107 = vld [vmem:[%s4] sm:$0xff]
  %v3108 = vld [vmem:[%s4 + $0x8] sm:$0xff]
  %v3109 = vld [vmem:[%s4 + $0x10] sm:$0xff]
  %v3110 = vld [vmem:[%s4 + $0x18] sm:$0xff]
  %v3111 = vld [vmem:[%s4 + $0x20] sm:$0xff]
  %v3112 = vld [vmem:[%s4 + $0x28] sm:$0xff]
  %v3113 = vld [vmem:[%s4 + $0x30] sm:$0xff]
  %v3114 = vld [vmem:[%s4 + $0x38] sm:$0xff]
  %v3115 = vld [vmem:[%s4 + $0x40] sm:$0xff]
  %v3116 = vld [vmem:[%s4 + $0x48] sm:$0xff]
  %v3117 = vld [vmem:[%s4 + $0x50] sm:$0xff]
  %v3118 = vld [vmem:[%s4 + $0x58] sm:$0xff]
  %v3119 = vld [vmem:[%s4 + $0x60] sm:$0xff]
  %v3120 = vld [vmem:[%s4 + $0x68] sm:$0xff]
  %v3121 = vld [vmem:[%s4 + $0x70] sm:$0xff]
  %v3122 = vld [vmem:[%s4 + $0x78] sm:$0xff]
  %v3123 = vld [vmem:[%s4 + $0x80] sm:$0xff]
  %v3124 = vld [vmem:[%s4 + $0x88] sm:$0xff]
  %v3125 = vld [vmem:[%s4 + $0x90] sm:$0xff]
  %v3126 = vld [vmem:[%s4 + $0x98] sm:$0xff]
  %vm3127 = vcmask 392192
  %v3129 = vsel %vm3127, %v3107, 0
  %v3132 = vsel %vm3127, %v3108, 0
  %v3135 = vsel %vm3127, %v3109, 0
  %v3138 = vsel %vm3127, %v3110, 0
  %v3141 = vsel %vm3127, %v3111, 0
  %v3144 = vsel %vm3127, %v3112, 0
  %v3147 = vsel %vm3127, %v3113, 0
  %v3150 = vsel %vm3127, %v3114, 0
  %v3153 = vsel %vm3127, %v3115, 0
  %v3156 = vsel %vm3127, %v3116, 0
  %v3159 = vsel %vm3127, %v3117, 0
  %v3162 = vsel %vm3127, %v3118, 0
  %v3165 = vsel %vm3127, %v3119, 0
  %v3168 = vsel %vm3127, %v3120, 0
  %v3171 = vsel %vm3127, %v3121, 0
  %v3174 = vsel %vm3127, %v3122, 0
  %v3177 = vsel %vm3127, %v3123, 0
  %v3180 = vsel %vm3127, %v3124, 0
  %v3183 = vsel %vm3127, %v3125, 0
  %v3186 = vsel %vm3127, %v3126, 0
  %3188 = vmatprep.subr.mxu0 %v3030
  %3189 = vmatpush1.msra.mxu0 %v3037
  %3190 = vmatprep.subr.mxu0 %v3043
  %3191 = vmatpush1.msra.mxu0 %v3051
  %3192 = vmatprep.subr.mxu0 %v3059
  %3193 = vmatpush1.msra.mxu0 %v3064
  %3194 = vmatprep.subr.mxu0 %v3072
  %3195 = vmatpush1.msra.mxu0 %v3077
  %3196 = vmatprep.subr.mxu0 %v3085
  %3197 = vmatpush1.msra.mxu0 %v3090
  %3198 = vmatprep.subr.mxu0 %v3100
  %3199 = vmatpush1.msra.mxu0 %v3106
  %3200 = vmatprep.subr.mxu0 0.0
  %3201 = vmatpush1.msra.mxu0 0.0
  %3202 = vmatprep.subr.mxu0 0.0
  %3203 = vmatpush1.msra.mxu0 0.0
  %3204 = vmatprep.subr.mxu0 0.0
  %3205 = vmatpush1.msra.mxu0 0.0
  %3206 = vmatprep.subr.mxu0 0.0
  %3207 = vmatpush1.msra.mxu0 0.0
  %3208 = vmatprep.subr.mxu0 0.0
  %3209 = vmatpush1.msra.mxu0 0.0
  %3210 = vmatprep.subr.mxu0 0.0
  %3211 = vmatpush1.msra.mxu0 0.0
  %3212 = vmatprep.subr.mxu0 0.0
  %3213 = vmatpush1.msra.mxu0 0.0
  %3214 = vmatprep.subr.mxu0 0.0
  %3215 = vmatpush1.msra.mxu0 0.0
  %3216 = vmatprep.subr.mxu0 0.0
  %3217 = vmatpush1.msra.mxu0 0.0
  %3218 = vmatprep.subr.mxu0 0.0
  %3219 = vmatpush1.msra.mxu0 0.0
  %3220 = vmatprep.subr.mxu0 0.0
  %3221 = vmatpush1.msra.mxu0 0.0
  %3222 = vmatprep.subr.mxu0 0.0
  %3223 = vmatpush1.msra.mxu0 0.0
  %3224 = vmatprep.subr.mxu0 0.0
  %3225 = vmatpush1.msra.mxu0 0.0
  %3226 = vmatprep.subr.mxu0 0.0
  %3227 = vmatpush1.msra.mxu0 0.0
  %3228 = vmatprep.subr.mxu0 0.0
  %3229 = vmatpush1.msra.mxu0 0.0
  %3230 = vmatprep.subr.mxu0 0.0
  %3231 = vmatpush1.msra.mxu0 0.0
  %3232 = vmatprep.subr.mxu0 0.0
  %3233 = vmatpush1.msra.mxu0 0.0
  %3234 = vmatprep.subr.mxu0 0.0
  %3235 = vmatpush1.msra.mxu0 0.0
  %3236 = vmatprep.subr.mxu0 0.0
  %3237 = vmatpush1.msra.mxu0 0.0
  %3238 = vmatprep.subr.mxu0 0.0
  %3239 = vmatpush1.msra.mxu0 0.0
  %3240 = vmatprep.subr.mxu0 0.0
  %3241 = vmatpush1.msra.mxu0 0.0
  %3242 = vmatprep.subr.mxu0 0.0
  %3243 = vmatpush1.msra.mxu0 0.0
  %3244 = vmatprep.subr.mxu0 0.0
  %3245 = vmatpush1.msra.mxu0 0.0
  %3246 = vmatprep.subr.mxu0 0.0
  %3247 = vmatpush1.msra.mxu0 0.0
  %3248 = vmatprep.subr.mxu0 0.0
  %3249 = vmatpush1.msra.mxu0 0.0
  %3250 = vmatprep.subr.mxu0 0.0
  %3251 = vmatpush1.msra.mxu0 0.0
  %3252 = vmatprep.mubr.f32.mxu0 0.0
  %3253 = vmatmul.mubr.f32.gmra.mrb[0].mxu0 %v3129
  %v3254 = vpop.f32.mrb[0].mxu0
  %v3255 = vadd.f32 0.0, %v3254
  %v3256 = vpop.f32.mrb[0].mxu0
  %v3257 = vadd.f32 0.0, %v3256
  %3258 = vmatprep.mubr.f32.mxu0 0.0
  %3259 = vmatmul.mubr.f32.gmra.mrb[0].mxu0 %v3132
  %v3260 = vpop.f32.mrb[0].mxu0
  %v3261 = vadd.f32 0.0, %v3260
  %v3262 = vpop.f32.mrb[0].mxu0
  %v3263 = vadd.f32 0.0, %v3262
  %3264 = vmatprep.mubr.f32.mxu0 0.0
  %3265 = vmatmul.mubr.f32.gmra.mrb[0].mxu0 %v3135
  %v3266 = vpop.f32.mrb[0].mxu0
  %v3267 = vadd.f32 0.0, %v3266
  %v3268 = vpop.f32.mrb[0].mxu0
  %v3269 = vadd.f32 0.0, %v3268
  %3270 = vmatprep.mubr.f32.mxu0 0.0
  %3271 = vmatmul.mubr.f32.gmra.mrb[0].mxu0 %v3138
  %v3272 = vpop.f32.mrb[0].mxu0
  %v3273 = vadd.f32 0.0, %v3272
  %v3274 = vpop.f32.mrb[0].mxu0
  %v3275 = vadd.f32 0.0, %v3274
  %3276 = vmatprep.mubr.f32.mxu0 0.0
  %3277 = vmatmul.mubr.f32.gmra.mrb[0].mxu0 %v3141
  %v3278 = vpop.f32.mrb[0].mxu0
  %v3279 = vadd.f32 0.0, %v3278
  %v3280 = vpop.f32.mrb[0].mxu0
  %v3281 = vadd.f32 0.0, %v3280
  %3282 = vmatprep.mubr.f32.mxu0 0.0
  %3283 = vmatmul.mubr.f32.gmra.mrb[0].mxu0 %v3144
  %v3284 = vpop.f32.mrb[0].mxu0
  %v3285 = vadd.f32 0.0, %v3284
  %v3286 = vpop.f32.mrb[0].mxu0
  %v3287 = vadd.f32 0.0, %v3286
  %3288 = vmatprep.mubr.f32.mxu0 0.0
  %3289 = vmatmul.mubr.f32.gmra.mrb[0].mxu0 %v3147
  %v3290 = vpop.f32.mrb[0].mxu0
  %v3291 = vadd.f32 0.0, %v3290
  %v3292 = vpop.f32.mrb[0].mxu0
  %v3293 = vadd.f32 0.0, %v3292
  %3294 = vmatprep.mubr.f32.mxu0 0.0
  %3295 = vmatmul.mubr.f32.gmra.mrb[0].mxu0 %v3150
  %v3296 = vpop.f32.mrb[0].mxu0
  %v3297 = vadd.f32 0.0, %v3296
  %v3298 = vpop.f32.mrb[0].mxu0
  %v3299 = vadd.f32 0.0, %v3298
  %3300 = vmatprep.mubr.f32.mxu0 0.0
  %3301 = vmatmul.mubr.f32.gmra.mrb[0].mxu0 %v3153
  %v3302 = vpop.f32.mrb[0].mxu0
  %v3303 = vadd.f32 0.0, %v3302
  %v3304 = vpop.f32.mrb[0].mxu0
  %v3305 = vadd.f32 0.0, %v3304
  %3306 = vmatprep.mubr.f32.mxu0 0.0
  %3307 = vmatmul.mubr.f32.gmra.mrb[0].mxu0 %v3156
  %v3308 = vpop.f32.mrb[0].mxu0
  %v3309 = vadd.f32 0.0, %v3308
  %v3310 = vpop.f32.mrb[0].mxu0
  %v3311 = vadd.f32 0.0, %v3310
  %3312 = vmatprep.mubr.f32.mxu0 0.0
  %3313 = vmatmul.mubr.f32.gmra.mrb[0].mxu0 %v3159
  %v3314 = vpop.f32.mrb[0].mxu0
  %v3315 = vadd.f32 0.0, %v3314
  %v3316 = vpop.f32.mrb[0].mxu0
  %v3317 = vadd.f32 0.0, %v3316
  %3318 = vmatprep.mubr.f32.mxu0 0.0
  %3319 = vmatmul.mubr.f32.gmra.mrb[0].mxu0 %v3162
  %v3320 = vpop.f32.mrb[0].mxu0
  %v3321 = vadd.f32 0.0, %v3320
  %v3322 = vpop.f32.mrb[0].mxu0
  %v3323 = vadd.f32 0.0, %v3322
  %3324 = vmatprep.mubr.f32.mxu0 0.0
  %3325 = vmatmul.mubr.f32.gmra.mrb[0].mxu0 %v3165
  %v3326 = vpop.f32.mrb[0].mxu0
  %v3327 = vadd.f32 0.0, %v3326
  %v3328 = vpop.f32.mrb[0].mxu0
  %v3329 = vadd.f32 0.0, %v3328
  %3330 = vmatprep.mubr.f32.mxu0 0.0
  %3331 = vmatmul.mubr.f32.gmra.mrb[0].mxu0 %v3168
  %v3332 = vpop.f32.mrb[0].mxu0
  %v3333 = vadd.f32 0.0, %v3332
  %v3334 = vpop.f32.mrb[0].mxu0
  %v3335 = vadd.f32 0.0, %v3334
  %3336 = vmatprep.mubr.f32.mxu0 0.0
  %3337 = vmatmul.mubr.f32.gmra.mrb[0].mxu0 %v3171
  %v3338 = vpop.f32.mrb[0].mxu0
  %v3339 = vadd.f32 0.0, %v3338
  %v3340 = vpop.f32.mrb[0].mxu0
  %v3341 = vadd.f32 0.0, %v3340
  %3342 = vmatprep.mubr.f32.mxu0 0.0
  %3343 = vmatmul.mubr.f32.gmra.mrb[0].mxu0 %v3174
  %v3344 = vpop.f32.mrb[0].mxu0
  %v3345 = vadd.f32 0.0, %v3344
  %v3346 = vpop.f32.mrb[0].mxu0
  %v3347 = vadd.f32 0.0, %v3346
  %3348 = vmatprep.mubr.f32.mxu0 0.0
  %3349 = vmatmul.mubr.f32.gmra.mrb[0].mxu0 %v3177
  %v3350 = vpop.f32.mrb[0].mxu0
  %v3351 = vadd.f32 0.0, %v3350
  %v3352 = vpop.f32.mrb[0].mxu0
  %v3353 = vadd.f32 0.0, %v3352
  %3354 = vmatprep.mubr.f32.mxu0 0.0
  %3355 = vmatmul.mubr.f32.gmra.mrb[0].mxu0 %v3180
  %v3356 = vpop.f32.mrb[0].mxu0
  %v3357 = vadd.f32 0.0, %v3356
  %v3358 = vpop.f32.mrb[0].mxu0
  %v3359 = vadd.f32 0.0, %v3358
  %3360 = vmatprep.mubr.f32.mxu0 0.0
  %3361 = vmatmul.mubr.f32.gmra.mrb[0].mxu0 %v3183
  %v3362 = vpop.f32.mrb[0].mxu0
  %v3363 = vadd.f32 0.0, %v3362
  %v3364 = vpop.f32.mrb[0].mxu0
  %v3365 = vadd.f32 0.0, %v3364
  %3366 = vmatprep.mubr.f32.mxu0 0.0
  %3367 = vmatmul.mubr.f32.gmra.mrb[0].mxu0 %v3186
  %v3368 = vpop.f32.mrb[0].mxu0
  %v3369 = vadd.f32 0.0, %v3368
  %v3370 = vpop.f32.mrb[0].mxu0
  %v3371 = vadd.f32 0.0, %v3370
  %3372 = vdwg.mxu0
  %3381 = vrot.lane.b32.xlu0 %v3279, 127
  %v3382 = vpop.permute.xlu0 %3381
  %3383 = vrot.lane.b32.xlu0 %v3281, 127
  %v3384 = vpop.permute.xlu0 %3383
  %3385 = vrot.lane.b32.xlu0 %v3285, 127
  %v3386 = vpop.permute.xlu0 %3385
  %3387 = vrot.lane.b32.xlu0 %v3287, 127
  %v3388 = vpop.permute.xlu0 %3387
  %3389 = vrot.lane.b32.xlu0 %v3291, 127
  %v3390 = vpop.permute.xlu0 %3389
  %3391 = vrot.lane.b32.xlu0 %v3293, 127
  %v3392 = vpop.permute.xlu0 %3391
  %3393 = vrot.lane.b32.xlu0 %v3297, 127
  %v3394 = vpop.permute.xlu0 %3393
  %3395 = vrot.lane.b32.xlu0 %v3299, 127
  %v3396 = vpop.permute.xlu0 %3395
  %vm3397 = vcmask 1039360
  %v3398 = vsel %vm3397, %v3382, %v3384
  %v3399 = vsel %vm3397, %v3386, %v3388
  %v3400 = vsel %vm3397, %v3390, %v3392
  %v3401 = vsel %vm3397, %v3394, %v3396
  %3410 = vrot.lane.b32.xlu0 %v3279, 11
  %v3411 = vpop.permute.xlu0 %3410
  %3412 = vrot.lane.b32.xlu0 %v3285, 11
  %v3413 = vpop.permute.xlu0 %3412
  %3414 = vrot.lane.b32.xlu0 %v3291, 11
  %v3415 = vpop.permute.xlu0 %3414
  %3416 = vrot.lane.b32.xlu0 %v3297, 11
  %v3417 = vpop.permute.xlu0 %3416
  %vm3422 = vcmask 89088
  %v3423 = vsel %vm3422, %v3384, %v3411
  %v3424 = vsel %vm3422, %v3388, %v3413
  %v3425 = vsel %vm3422, %v3392, %v3415
  %v3426 = vsel %vm3422, %v3396, %v3417
  %v3427 = vadd.f32 %v3255, %v3398
  %v3428 = vadd.f32 %v3257, %v3423
  %v3429 = vadd.f32 %v3261, %v3399
  %v3430 = vadd.f32 %v3263, %v3424
  %v3431 = vadd.f32 %v3267, %v3400
  %v3432 = vadd.f32 %v3269, %v3425
  %v3433 = vadd.f32 %v3273, %v3401
  %v3434 = vadd.f32 %v3275, %v3426
  %3443 = vrot.lane.b32.xlu0 %v3303, 126
  %v3444 = vpop.permute.xlu0 %3443
  %3445 = vrot.lane.b32.xlu0 %v3305, 126
  %v3446 = vpop.permute.xlu0 %3445
  %3447 = vrot.lane.b32.xlu0 %v3309, 126
  %v3448 = vpop.permute.xlu0 %3447
  %3449 = vrot.lane.b32.xlu0 %v3311, 126
  %v3450 = vpop.permute.xlu0 %3449
  %3451 = vrot.lane.b32.xlu0 %v3315, 126
  %v3452 = vpop.permute.xlu0 %3451
  %3453 = vrot.lane.b32.xlu0 %v3317, 126
  %v3454 = vpop.permute.xlu0 %3453
  %3455 = vrot.lane.b32.xlu0 %v3321, 126
  %v3456 = vpop.permute.xlu0 %3455
  %3457 = vrot.lane.b32.xlu0 %v3323, 126
  %v3458 = vpop.permute.xlu0 %3457
  %vm3459 = vcmask 1031168
  %v3460 = vsel %vm3459, %v3444, %v3446
  %v3461 = vsel %vm3459, %v3448, %v3450
  %v3462 = vsel %vm3459, %v3452, %v3454
  %v3463 = vsel %vm3459, %v3456, %v3458
  %3472 = vrot.lane.b32.xlu0 %v3303, 10
  %v3473 = vpop.permute.xlu0 %3472
  %3474 = vrot.lane.b32.xlu0 %v3309, 10
  %v3475 = vpop.permute.xlu0 %3474
  %3476 = vrot.lane.b32.xlu0 %v3315, 10
  %v3477 = vpop.permute.xlu0 %3476
  %3478 = vrot.lane.b32.xlu0 %v3321, 10
  %v3479 = vpop.permute.xlu0 %3478
  %vm3484 = vcmask 80896
  %v3485 = vsel %vm3484, %v3446, %v3473
  %v3486 = vsel %vm3484, %v3450, %v3475
  %v3487 = vsel %vm3484, %v3454, %v3477
  %v3488 = vsel %vm3484, %v3458, %v3479
  %v3489 = vadd.f32 %v3427, %v3460
  %v3490 = vadd.f32 %v3428, %v3485
  %v3491 = vadd.f32 %v3429, %v3461
  %v3492 = vadd.f32 %v3430, %v3486
  %v3493 = vadd.f32 %v3431, %v3462
  %v3494 = vadd.f32 %v3432, %v3487
  %v3495 = vadd.f32 %v3433, %v3463
  %v3496 = vadd.f32 %v3434, %v3488
  %3505 = vrot.lane.b32.xlu0 %v3327, 125
  %v3506 = vpop.permute.xlu0 %3505
  %3507 = vrot.lane.b32.xlu0 %v3329, 125
  %v3508 = vpop.permute.xlu0 %3507
  %3509 = vrot.lane.b32.xlu0 %v3333, 125
  %v3510 = vpop.permute.xlu0 %3509
  %3511 = vrot.lane.b32.xlu0 %v3335, 125
  %v3512 = vpop.permute.xlu0 %3511
  %3513 = vrot.lane.b32.xlu0 %v3339, 125
  %v3514 = vpop.permute.xlu0 %3513
  %3515 = vrot.lane.b32.xlu0 %v3341, 125
  %v3516 = vpop.permute.xlu0 %3515
  %3517 = vrot.lane.b32.xlu0 %v3345, 125
  %v3518 = vpop.permute.xlu0 %3517
  %3519 = vrot.lane.b32.xlu0 %v3347, 125
  %v3520 = vpop.permute.xlu0 %3519
  %vm3521 = vcmask 1022976
  %v3522 = vsel %vm3521, %v3506, %v3508
  %v3523 = vsel %vm3521, %v3510, %v3512
  %v3524 = vsel %vm3521, %v3514, %v3516
  %v3525 = vsel %vm3521, %v3518, %v3520
  %3534 = vrot.lane.b32.xlu0 %v3327, 9
  %v3535 = vpop.permute.xlu0 %3534
  %3536 = vrot.lane.b32.xlu0 %v3333, 9
  %v3537 = vpop.permute.xlu0 %3536
  %3538 = vrot.lane.b32.xlu0 %v3339, 9
  %v3539 = vpop.permute.xlu0 %3538
  %3540 = vrot.lane.b32.xlu0 %v3345, 9
  %v3541 = vpop.permute.xlu0 %3540
  %vm3546 = vcmask 72704
  %v3547 = vsel %vm3546, %v3508, %v3535
  %v3548 = vsel %vm3546, %v3512, %v3537
  %v3549 = vsel %vm3546, %v3516, %v3539
  %v3550 = vsel %vm3546, %v3520, %v3541
  %v3551 = vadd.f32 %v3489, %v3522
  %v3552 = vadd.f32 %v3490, %v3547
  %v3553 = vadd.f32 %v3491, %v3523
  %v3554 = vadd.f32 %v3492, %v3548
  %v3555 = vadd.f32 %v3493, %v3524
  %v3556 = vadd.f32 %v3494, %v3549
  %v3557 = vadd.f32 %v3495, %v3525
  %v3558 = vadd.f32 %v3496, %v3550
  %3567 = vrot.lane.b32.xlu0 %v3351, 124
  %v3568 = vpop.permute.xlu0 %3567
  %3569 = vrot.lane.b32.xlu0 %v3353, 124
  %v3570 = vpop.permute.xlu0 %3569
  %3571 = vrot.lane.b32.xlu0 %v3357, 124
  %v3572 = vpop.permute.xlu0 %3571
  %3573 = vrot.lane.b32.xlu0 %v3359, 124
  %v3574 = vpop.permute.xlu0 %3573
  %3575 = vrot.lane.b32.xlu0 %v3363, 124
  %v3576 = vpop.permute.xlu0 %3575
  %3577 = vrot.lane.b32.xlu0 %v3365, 124
  %v3578 = vpop.permute.xlu0 %3577
  %3579 = vrot.lane.b32.xlu0 %v3369, 124
  %v3580 = vpop.permute.xlu0 %3579
  %3581 = vrot.lane.b32.xlu0 %v3371, 124
  %v3582 = vpop.permute.xlu0 %3581
  %vm3583 = vcmask 1014784
  %v3584 = vsel %vm3583, %v3568, %v3570
  %v3585 = vsel %vm3583, %v3572, %v3574
  %v3586 = vsel %vm3583, %v3576, %v3578
  %v3587 = vsel %vm3583, %v3580, %v3582
  %3596 = vrot.lane.b32.xlu0 %v3351, 8
  %v3597 = vpop.permute.xlu0 %3596
  %3598 = vrot.lane.b32.xlu0 %v3357, 8
  %v3599 = vpop.permute.xlu0 %3598
  %3600 = vrot.lane.b32.xlu0 %v3363, 8
  %v3601 = vpop.permute.xlu0 %3600
  %3602 = vrot.lane.b32.xlu0 %v3369, 8
  %v3603 = vpop.permute.xlu0 %3602
  %v3608 = vsel %vm72, %v3570, %v3597
  %v3609 = vsel %vm72, %v3574, %v3599
  %v3610 = vsel %vm72, %v3578, %v3601
  %v3611 = vsel %vm72, %v3582, %v3603
  %v3612 = vadd.f32 %v3551, %v3584
  %v3613 = vadd.f32 %v3552, %v3608
  %v3614 = vadd.f32 %v3553, %v3585
  %v3615 = vadd.f32 %v3554, %v3609
  %v3616 = vadd.f32 %v3555, %v3586
  %v3617 = vadd.f32 %v3556, %v3610
  %v3618 = vadd.f32 %v3557, %v3587
  %v3619 = vadd.f32 %v3558, %v3611
  %v3620 = vld [vmem:[%s5] sm:$0xff]
  %v3621 = vld [vmem:[%s5 + $0x8] sm:$0xff]
  %v3622 = vld [vmem:[%s5 + $0x10] sm:$0xff]
  %v3623 = vld [vmem:[%s5 + $0x18] sm:$0xff]
  %3625 = vset.pattern.permute.xlu0 0
  %3626 = vperm.xlu0 %3625, %v3620
  %v3627 = vpop.permute.xlu0 %3626
  %3630 = vset.pattern.permute.xlu0 0
  %3631 = vperm.xlu0 %3630, %v3621
  %v3632 = vpop.permute.xlu0 %3631
  %3635 = vset.pattern.permute.xlu0 0
  %3636 = vperm.xlu0 %3635, %v3622
  %v3637 = vpop.permute.xlu0 %3636
  %3640 = vset.pattern.permute.xlu0 0
  %3641 = vperm.xlu0 %3640, %v3623
  %v3642 = vpop.permute.xlu0 %3641
  %v3644 = vadd.f32 %v3612, %v3627
  %v3645 = vadd.f32 %v3613, %v3627
  %v3646 = vadd.f32 %v3614, %v3632
  %v3647 = vadd.f32 %v3615, %v3632
  %v3648 = vadd.f32 %v3616, %v3637
  %v3649 = vadd.f32 %v3617, %v3637
  %v3650 = vadd.f32 %v3618, %v3642
  %v3651 = vadd.f32 %v3619, %v3642
  %v3652 = vmax.f32 %v3644, 0.0
  %v3653 = vmax.f32 %v3645, 0.0
  %v3654 = vmax.f32 %v3646, 0.0
  %v3655 = vmax.f32 %v3647, 0.0
  %v3656 = vmax.f32 %v3648, 0.0
  %v3657 = vmax.f32 %v3649, 0.0
  %v3658 = vmax.f32 %v3650, 0.0
  %v3659 = vmax.f32 %v3651, 0.0
  %v3660 = vadd.f32 %v3652, %v3656
  %v3661 = vadd.f32 %v3653, %v3657
  %v3662 = vadd.f32 %v3654, %v3658
  %v3663 = vadd.f32 %v3655, %v3659
  %v3664 = vld [vmem:[%s6] sm:$0xff]
  %v3665 = vld [vmem:[%s6 + $0x8] sm:$0xff]
  %v3666 = vld [vmem:[%s6 + $0x10] sm:$0xff]
  %v3667 = vld [vmem:[%s6 + $0x18] sm:$0xff]
  %v3668 = vld [vmem:[%s6 + $0x20] sm:$0xff]
  %v3669 = vld [vmem:[%s6 + $0x28] sm:$0xff]
  %v3670 = vld [vmem:[%s6 + $0x30] sm:$0xff]
  %v3671 = vld [vmem:[%s6 + $0x38] sm:$0xff]
  %v3672 = vld [vmem:[%s6 + $0x40] sm:$0xff]
  %v3673 = vld [vmem:[%s6 + $0x48] sm:$0xff]
  %v3674 = vld [vmem:[%s6 + $0x50] sm:$0xff]
  %v3675 = vld [vmem:[%s6 + $0x58] sm:$0xff]
  %v3676 = vld [vmem:[%s6 + $0x60] sm:$0xff]
  %v3677 = vld [vmem:[%s6 + $0x68] sm:$0xff]
  %v3678 = vld [vmem:[%s6 + $0x70] sm:$0xff]
  %v3679 = vld [vmem:[%s6 + $0x78] sm:$0xff]
  %v3680 = vld [vmem:[%s6 + $0x80] sm:$0xff]
  %v3681 = vld [vmem:[%s6 + $0x88] sm:$0xf]
  %vm3682 = vcmask 97280
  %v3684 = vsel %vm3682, %v3661, 0
  %v3687 = vsel %vm3682, %v3663, 0
  %vm3689 = vcmask 1043456
  %v3691 = vsel %vm3689, %v3681, 0
  %3693 = vmatprep.subr.mxu0 0.0
  %3694 = vmatpush1.msra.mxu0 %v3664
  %3695 = vmatprep.subr.mxu0 0.0
  %3696 = vmatpush1.msra.mxu0 %v3665
  %3697 = vmatprep.subr.mxu0 0.0
  %3698 = vmatpush1.msra.mxu0 %v3666
  %3699 = vmatprep.subr.mxu0 0.0
  %3700 = vmatpush1.msra.mxu0 %v3667
  %3701 = vmatprep.subr.mxu0 0.0
  %3702 = vmatpush1.msra.mxu0 %v3668
  %3703 = vmatprep.subr.mxu0 0.0
  %3704 = vmatpush1.msra.mxu0 %v3669
  %3705 = vmatprep.subr.mxu0 0.0
  %3706 = vmatpush1.msra.mxu0 %v3670
  %3707 = vmatprep.subr.mxu0 0.0
  %3708 = vmatpush1.msra.mxu0 %v3671
  %3709 = vmatprep.subr.mxu0 0.0
  %3710 = vmatpush1.msra.mxu0 %v3672
  %3711 = vmatprep.subr.mxu0 0.0
  %3712 = vmatpush1.msra.mxu0 %v3673
  %3713 = vmatprep.subr.mxu0 0.0
  %3714 = vmatpush1.msra.mxu0 %v3674
  %3715 = vmatprep.subr.mxu0 0.0
  %3716 = vmatpush1.msra.mxu0 %v3675
  %3717 = vmatprep.subr.mxu0 0.0
  %3718 = vmatpush1.msra.mxu0 %v3676
  %3719 = vmatprep.subr.mxu0 0.0
  %3720 = vmatpush1.msra.mxu0 %v3677
  %3721 = vmatprep.subr.mxu0 0.0
  %3722 = vmatpush1.msra.mxu0 %v3678
  %3723 = vmatprep.subr.mxu0 0.0
  %3724 = vmatpush1.msra.mxu0 %v3679
  %3725 = vmatprep.subr.mxu0 0.0
  %3726 = vmatpush1.msra.mxu0 %v3680
  %3727 = vmatprep.subr.mxu0 0.0
  %3728 = vmatpush1.msra.mxu0 %v3691
  %3729 = vmatprep.subr.mxu0 0.0
  %3730 = vmatpush1.msra.mxu0 0.0
  %3731 = vmatprep.subr.mxu0 0.0
  %3732 = vmatpush1.msra.mxu0 0.0
  %3733 = vmatprep.subr.mxu0 0.0
  %3734 = vmatpush1.msra.mxu0 0.0
  %3735 = vmatprep.subr.mxu0 0.0
  %3736 = vmatpush1.msra.mxu0 0.0
  %3737 = vmatprep.subr.mxu0 0.0
  %3738 = vmatpush1.msra.mxu0 0.0
  %3739 = vmatprep.subr.mxu0 0.0
  %3740 = vmatpush1.msra.mxu0 0.0
  %3741 = vmatprep.subr.mxu0 0.0
  %3742 = vmatpush1.msra.mxu0 0.0
  %3743 = vmatprep.subr.mxu0 0.0
  %3744 = vmatpush1.msra.mxu0 0.0
  %3745 = vmatprep.subr.mxu0 0.0
  %3746 = vmatpush1.msra.mxu0 0.0
  %3747 = vmatprep.subr.mxu0 0.0
  %3748 = vmatpush1.msra.mxu0 0.0
  %3749 = vmatprep.subr.mxu0 0.0
  %3750 = vmatpush1.msra.mxu0 0.0
  %3751 = vmatprep.subr.mxu0 0.0
  %3752 = vmatpush1.msra.mxu0 0.0
  %3753 = vmatprep.subr.mxu0 0.0
  %3754 = vmatpush1.msra.mxu0 0.0
  %3755 = vmatprep.subr.mxu0 0.0
  %3756 = vmatpush1.msra.mxu0 0.0
  %3757 = vmatprep.mubr.f32.mxu0 %v3684
  %3758 = vmatmul.mubr.f32.gmra.mrb[0].mxu0 %v3660
  %v3759 = vpop.f32.mrb[0].mxu0
  %v3760 = vadd.f32 0.0, %v3759
  %v3761 = vpop.f32.mrb[0].mxu0
  %3762 = vmatprep.mubr.f32.mxu0 %v3687
  %3763 = vmatmul.mubr.f32.gmra.mrb[0].mxu0 %v3662
  %v3764 = vpop.f32.mrb[0].mxu0
  %v3765 = vadd.f32 0.0, %v3764
  %v3766 = vpop.f32.mrb[0].mxu0
  %3767 = vdwg.mxu0
  %3770 = vrot.lane.b32.xlu0 %v3760, 126
  %v3771 = vpop.permute.xlu0 %3770
  %3772 = vrot.lane.b32.xlu0 %v3765, 126
  %v3773 = vpop.permute.xlu0 %3772
  %3776 = vrot.lane.b32.xlu0 %v3760, 124
  %v3777 = vpop.permute.xlu0 %3776
  %3778 = vrot.lane.b32.xlu0 %v3765, 124
  %v3779 = vpop.permute.xlu0 %3778
  %3782 = vrot.lane.b32.xlu0 %v3760, 122
  %v3783 = vpop.permute.xlu0 %3782
  %3784 = vrot.lane.b32.xlu0 %v3765, 122
  %v3785 = vpop.permute.xlu0 %3784
  %3788 = vrot.lane.b32.xlu0 %v3760, 120
  %v3789 = vpop.permute.xlu0 %3788
  %3790 = vrot.lane.b32.xlu0 %v3765, 120
  %v3791 = vpop.permute.xlu0 %3790
  %3794 = vrot.lane.b32.xlu0 %v3760, 118
  %v3795 = vpop.permute.xlu0 %3794
  %3796 = vrot.lane.b32.xlu0 %v3765, 118
  %v3797 = vpop.permute.xlu0 %3796
  %3800 = vrot.lane.b32.xlu0 %v3760, 116
  %v3801 = vpop.permute.xlu0 %3800
  %3802 = vrot.lane.b32.xlu0 %v3765, 116
  %v3803 = vpop.permute.xlu0 %3802
  %3806 = vrot.lane.b32.xlu0 %v3760, 114
  %v3807 = vpop.permute.xlu0 %3806
  %3808 = vrot.lane.b32.xlu0 %v3765, 114
  %v3809 = vpop.permute.xlu0 %3808
  %3812 = vrot.lane.b32.xlu0 %v3760, 112
  %v3813 = vpop.permute.xlu0 %3812
  %3814 = vrot.lane.b32.xlu0 %v3765, 112
  %v3815 = vpop.permute.xlu0 %3814
  %3818 = vrot.lane.b32.xlu0 %v3760, 110
  %v3819 = vpop.permute.xlu0 %3818
  %3820 = vrot.lane.b32.xlu0 %v3765, 110
  %v3821 = vpop.permute.xlu0 %3820
  %3824 = vrot.lane.b32.xlu0 %v3760, 108
  %v3825 = vpop.permute.xlu0 %3824
  %3826 = vrot.lane.b32.xlu0 %v3765, 108
  %v3827 = vpop.permute.xlu0 %3826
  %3830 = vrot.lane.b32.xlu0 %v3760, 106
  %v3831 = vpop.permute.xlu0 %3830
  %3832 = vrot.lane.b32.xlu0 %v3765, 106
  %v3833 = vpop.permute.xlu0 %3832
  %3836 = vrot.lane.b32.xlu0 %v3760, 104
  %v3837 = vpop.permute.xlu0 %3836
  %3838 = vrot.lane.b32.xlu0 %v3765, 104
  %v3839 = vpop.permute.xlu0 %3838
  %3842 = vrot.lane.b32.xlu0 %v3760, 102
  %v3843 = vpop.permute.xlu0 %3842
  %3844 = vrot.lane.b32.xlu0 %v3765, 102
  %v3845 = vpop.permute.xlu0 %3844
  %3848 = vrot.lane.b32.xlu0 %v3760, 100
  %v3849 = vpop.permute.xlu0 %3848
  %3850 = vrot.lane.b32.xlu0 %v3765, 100
  %v3851 = vpop.permute.xlu0 %3850
  %3854 = vrot.lane.b32.xlu0 %v3760, 98
  %v3855 = vpop.permute.xlu0 %3854
  %3856 = vrot.lane.b32.xlu0 %v3765, 98
  %v3857 = vpop.permute.xlu0 %3856
  %3860 = vrot.lane.b32.xlu0 %v3760, 96
  %v3861 = vpop.permute.xlu0 %3860
  %3862 = vrot.lane.b32.xlu0 %v3765, 96
  %v3863 = vpop.permute.xlu0 %3862
  %3864 = vrot.lane.b32.xlu0 %v3771, 96
  %v3865 = vpop.permute.xlu0 %3864
  %3866 = vrot.lane.b32.xlu0 %v3773, 96
  %v3867 = vpop.permute.xlu0 %3866
  %3868 = vrot.lane.b32.xlu0 %v3777, 96
  %v3869 = vpop.permute.xlu0 %3868
  %3870 = vrot.lane.b32.xlu0 %v3779, 96
  %v3871 = vpop.permute.xlu0 %3870
  %3872 = vrot.lane.b32.xlu0 %v3783, 96
  %v3873 = vpop.permute.xlu0 %3872
  %3874 = vrot.lane.b32.xlu0 %v3785, 96
  %v3875 = vpop.permute.xlu0 %3874
  %3876 = vrot.lane.b32.xlu0 %v3789, 96
  %v3877 = vpop.permute.xlu0 %3876
  %3878 = vrot.lane.b32.xlu0 %v3791, 96
  %v3879 = vpop.permute.xlu0 %3878
  %3880 = vrot.lane.b32.xlu0 %v3795, 96
  %v3881 = vpop.permute.xlu0 %3880
  %3882 = vrot.lane.b32.xlu0 %v3797, 96
  %v3883 = vpop.permute.xlu0 %3882
  %3884 = vrot.lane.b32.xlu0 %v3801, 96
  %v3885 = vpop.permute.xlu0 %3884
  %3886 = vrot.lane.b32.xlu0 %v3803, 96
  %v3887 = vpop.permute.xlu0 %3886
  %3888 = vrot.lane.b32.xlu0 %v3807, 96
  %v3889 = vpop.permute.xlu0 %3888
  %3890 = vrot.lane.b32.xlu0 %v3809, 96
  %v3891 = vpop.permute.xlu0 %3890
  %3892 = vrot.lane.b32.xlu0 %v3813, 96
  %v3893 = vpop.permute.xlu0 %3892
  %3894 = vrot.lane.b32.xlu0 %v3815, 96
  %v3895 = vpop.permute.xlu0 %3894
  %v3914 = vld [vmem:[%s7] sm:$0xff]
  %v3915 = vld [vmem:[%s7 + $0x8] sm:$0xff]
  %v3916 = vld [vmem:[%s7 + $0x10] sm:$0xff]
  %v3917 = vld [vmem:[%s7 + $0x18] sm:$0xff]
  %v3918 = vld [vmem:[%s7 + $0x20] sm:$0xff]
  %v3919 = vld [vmem:[%s7 + $0x28] sm:$0xff]
  %v3920 = vld [vmem:[%s7 + $0x30] sm:$0xff]
  %v3921 = vld [vmem:[%s7 + $0x38] sm:$0xff]
  %v3922 = vld [vmem:[%s7 + $0x40] sm:$0xff]
  %v3923 = vld [vmem:[%s7 + $0x48] sm:$0xff]
  %v3924 = vld [vmem:[%s7 + $0x50] sm:$0xff]
  %v3925 = vld [vmem:[%s7 + $0x58] sm:$0xff]
  %v3926 = vld [vmem:[%s7 + $0x60] sm:$0xff]
  %v3927 = vld [vmem:[%s7 + $0x68] sm:$0xff]
  %v3928 = vld [vmem:[%s7 + $0x70] sm:$0xff]
  %v3929 = vld [vmem:[%s7 + $0x78] sm:$0xff]
  %v3930 = vld [vmem:[%s7 + $0x80] sm:$0xff]
  %v3931 = vld [vmem:[%s7 + $0x88] sm:$0xff]
  %v3932 = vld [vmem:[%s7 + $0x90] sm:$0xff]
  %v3933 = vld [vmem:[%s7 + $0x98] sm:$0xff]
  %v3934 = vld [vmem:[%s7 + $0xa0] sm:$0xff]
  %v3935 = vld [vmem:[%s7 + $0xa8] sm:$0xff]
  %v3936 = vld [vmem:[%s7 + $0xb0] sm:$0xff]
  %v3937 = vld [vmem:[%s7 + $0xb8] sm:$0xff]
  %v3938 = vld [vmem:[%s7 + $0xc0] sm:$0xff]
  %v3939 = vld [vmem:[%s7 + $0xc8] sm:$0xff]
  %v3940 = vld [vmem:[%s7 + $0xd0] sm:$0xff]
  %v3941 = vld [vmem:[%s7 + $0xd8] sm:$0xff]
  %v3942 = vld [vmem:[%s7 + $0xe0] sm:$0xff]
  %v3943 = vld [vmem:[%s7 + $0xe8] sm:$0xff]
  %v3944 = vld [vmem:[%s7 + $0xf0] sm:$0xff]
  %v3945 = vld [vmem:[%s7 + $0xf8] sm:$0xff]
  %v3946 = vld [vmem:[%s7 + $0x100] sm:$0xff]
  %v3947 = vld [vmem:[%s7 + $0x108] sm:$0xff]
  %v3948 = vld [vmem:[%s7 + $0x110] sm:$0xff]
  %v3949 = vld [vmem:[%s7 + $0x118] sm:$0xff]
  %v3950 = vld [vmem:[%s7 + $0x120] sm:$0xff]
  %v3951 = vld [vmem:[%s7 + $0x128] sm:$0xff]
  %v3952 = vld [vmem:[%s7 + $0x130] sm:$0xff]
  %v3953 = vld [vmem:[%s7 + $0x138] sm:$0xff]
  %v3954 = vld [vmem:[%s7 + $0x140] sm:$0xff]
  %v3955 = vld [vmem:[%s7 + $0x148] sm:$0xff]
  %v3956 = vld [vmem:[%s7 + $0x150] sm:$0xff]
  %v3957 = vld [vmem:[%s7 + $0x158] sm:$0xff]
  %v3958 = vld [vmem:[%s7 + $0x160] sm:$0xff]
  %v3959 = vld [vmem:[%s7 + $0x168] sm:$0xff]
  %v3960 = vld [vmem:[%s7 + $0x170] sm:$0xff]
  %v3961 = vld [vmem:[%s7 + $0x178] sm:$0xff]
  %v3962 = vld [vmem:[%s7 + $0x180] sm:$0xff]
  %v3963 = vld [vmem:[%s7 + $0x188] sm:$0xff]
  %v3964 = vld [vmem:[%s7 + $0x190] sm:$0xff]
  %v3965 = vld [vmem:[%s7 + $0x198] sm:$0xff]
  %v3966 = vld [vmem:[%s7 + $0x1a0] sm:$0xff]
  %v3967 = vld [vmem:[%s7 + $0x1a8] sm:$0xff]
  %v3968 = vld [vmem:[%s7 + $0x1b0] sm:$0xff]
  %v3969 = vld [vmem:[%s7 + $0x1b8] sm:$0xff]
  %v3970 = vld [vmem:[%s7 + $0x1c0] sm:$0xff]
  %v3971 = vld [vmem:[%s7 + $0x1c8] sm:$0xff]
  %v3972 = vld [vmem:[%s7 + $0x1d0] sm:$0xff]
  %v3973 = vld [vmem:[%s7 + $0x1d8] sm:$0xff]
  %v3974 = vld [vmem:[%s8] sm:$0xff]
  %v3975 = vld [vmem:[%s8 + $0x8] sm:$0xff]
  %v3976 = vld [vmem:[%s8 + $0x10] sm:$0xff]
  %v3977 = vld [vmem:[%s8 + $0x18] sm:$0xff]
  %v3978 = vld [vmem:[%s8 + $0x20] sm:$0xff]
  %v3979 = vld [vmem:[%s8 + $0x28] sm:$0xff]
  %v3980 = vld [vmem:[%s8 + $0x30] sm:$0xff]
  %v3981 = vld [vmem:[%s8 + $0x38] sm:$0xff]
  %v3982 = vld [vmem:[%s8 + $0x40] sm:$0xff]
  %v3983 = vld [vmem:[%s8 + $0x48] sm:$0xff]
  %v3984 = vld [vmem:[%s8 + $0x50] sm:$0xff]
  %v3985 = vld [vmem:[%s8 + $0x58] sm:$0xff]
  %v3986 = vld [vmem:[%s8 + $0x60] sm:$0xff]
  %v3987 = vld [vmem:[%s8 + $0x68] sm:$0xff]
  %v3988 = vld [vmem:[%s8 + $0x70] sm:$0xff]
  %3990 = vset.pattern.permute.xlu0 0
  %3991 = vperm.xlu0 %3990, %v3974
  %v3992 = vpop.permute.xlu0 %3991
  %3995 = vset.pattern.permute.xlu0 0
  %3996 = vperm.xlu0 %3995, %v3975
  %v3997 = vpop.permute.xlu0 %3996
  %4000 = vset.pattern.permute.xlu0 0
  %4001 = vperm.xlu0 %4000, %v3976
  %v4002 = vpop.permute.xlu0 %4001
  %4005 = vset.pattern.permute.xlu0 0
  %4006 = vperm.xlu0 %4005, %v3977
  %v4007 = vpop.permute.xlu0 %4006
  %4010 = vset.pattern.permute.xlu0 0
  %4011 = vperm.xlu0 %4010, %v3978
  %v4012 = vpop.permute.xlu0 %4011
  %4015 = vset.pattern.permute.xlu0 0
  %4016 = vperm.xlu0 %4015, %v3979
  %v4017 = vpop.permute.xlu0 %4016
  %4020 = vset.pattern.permute.xlu0 0
  %4021 = vperm.xlu0 %4020, %v3980
  %v4022 = vpop.permute.xlu0 %4021
  %4025 = vset.pattern.permute.xlu0 0
  %4026 = vperm.xlu0 %4025, %v3981
  %v4027 = vpop.permute.xlu0 %4026
  %4030 = vset.pattern.permute.xlu0 0
  %4031 = vperm.xlu0 %4030, %v3982
  %v4032 = vpop.permute.xlu0 %4031
  %4035 = vset.pattern.permute.xlu0 0
  %4036 = vperm.xlu0 %4035, %v3983
  %v4037 = vpop.permute.xlu0 %4036
  %4040 = vset.pattern.permute.xlu0 0
  %4041 = vperm.xlu0 %4040, %v3984
  %v4042 = vpop.permute.xlu0 %4041
  %4045 = vset.pattern.permute.xlu0 0
  %4046 = vperm.xlu0 %4045, %v3985
  %v4047 = vpop.permute.xlu0 %4046
  %4050 = vset.pattern.permute.xlu0 0
  %4051 = vperm.xlu0 %4050, %v3986
  %v4052 = vpop.permute.xlu0 %4051
  %4055 = vset.pattern.permute.xlu0 0
  %4056 = vperm.xlu0 %4055, %v3987
  %v4057 = vpop.permute.xlu0 %4056
  %4060 = vset.pattern.permute.xlu0 0
  %4061 = vperm.xlu0 %4060, %v3988
  %v4062 = vpop.permute.xlu0 %4061
  %v4065 = vsel %vm3080, %v3917, 0
  %v4068 = vsel %vm3080, %v3921, 0
  %v4071 = vsel %vm3080, %v3925, 0
  %v4074 = vsel %vm3080, %v3929, 0
  %v4077 = vsel %vm3080, %v3933, 0
  %v4080 = vsel %vm3080, %v3937, 0
  %v4083 = vsel %vm3080, %v3941, 0
  %v4086 = vsel %vm3080, %v3945, 0
  %v4089 = vsel %vm3080, %v3949, 0
  %v4092 = vsel %vm3080, %v3953, 0
  %v4095 = vsel %vm3080, %v3957, 0
  %v4098 = vsel %vm3080, %v3961, 0
  %v4101 = vsel %vm3080, %v3965, 0
  %v4104 = vsel %vm3080, %v3969, 0
  %v4107 = vsel %vm3080, %v3973, 0
  %4109 = vmatprep.subr.mxu0 0.0
  %4110 = vmatpush1.msra.mxu0 %v3760
  %4111 = vmatprep.subr.mxu0 0.0
  %4112 = vmatpush1.msra.mxu0 %v3765
  %4113 = vmatprep.subr.mxu0 0.0
  %4114 = vmatpush1.msra.mxu0 %v3771
  %4115 = vmatprep.subr.mxu0 0.0
  %4116 = vmatpush1.msra.mxu0 %v3773
  %4117 = vmatprep.subr.mxu0 0.0
  %4118 = vmatpush1.msra.mxu0 %v3777
  %4119 = vmatprep.subr.mxu0 0.0
  %4120 = vmatpush1.msra.mxu0 %v3779
  %4121 = vmatprep.subr.mxu0 0.0
  %4122 = vmatpush1.msra.mxu0 %v3783
  %4123 = vmatprep.subr.mxu0 0.0
  %4124 = vmatpush1.msra.mxu0 %v3785
  %4125 = vmatprep.subr.mxu0 0.0
  %4126 = vmatpush1.msra.mxu0 %v3789
  %4127 = vmatprep.subr.mxu0 0.0
  %4128 = vmatpush1.msra.mxu0 %v3791
  %4129 = vmatprep.subr.mxu0 0.0
  %4130 = vmatpush1.msra.mxu0 %v3795
  %4131 = vmatprep.subr.mxu0 0.0
  %4132 = vmatpush1.msra.mxu0 %v3797
  %4133 = vmatprep.subr.mxu0 0.0
  %4134 = vmatpush1.msra.mxu0 %v3801
  %4135 = vmatprep.subr.mxu0 0.0
  %4136 = vmatpush1.msra.mxu0 %v3803
  %4137 = vmatprep.subr.mxu0 0.0
  %4138 = vmatpush1.msra.mxu0 %v3807
  %4139 = vmatprep.subr.mxu0 0.0
  %4140 = vmatpush1.msra.mxu0 %v3809
  %4141 = vmatprep.subr.mxu0 0.0
  %4142 = vmatpush1.msra.mxu0 %v3813
  %4143 = vmatprep.subr.mxu0 0.0
  %4144 = vmatpush1.msra.mxu0 %v3815
  %4145 = vmatprep.subr.mxu0 0.0
  %4146 = vmatpush1.msra.mxu0 %v3819
  %4147 = vmatprep.subr.mxu0 0.0
  %4148 = vmatpush1.msra.mxu0 %v3821
  %4149 = vmatprep.subr.mxu0 0.0
  %4150 = vmatpush1.msra.mxu0 %v3825
  %4151 = vmatprep.subr.mxu0 0.0
  %4152 = vmatpush1.msra.mxu0 %v3827
  %4153 = vmatprep.subr.mxu0 0.0
  %4154 = vmatpush1.msra.mxu0 %v3831
  %4155 = vmatprep.subr.mxu0 0.0
  %4156 = vmatpush1.msra.mxu0 %v3833
  %4157 = vmatprep.subr.mxu0 0.0
  %4158 = vmatpush1.msra.mxu0 %v3837
  %4159 = vmatprep.subr.mxu0 0.0
  %4160 = vmatpush1.msra.mxu0 %v3839
  %4161 = vmatprep.subr.mxu0 0.0
  %4162 = vmatpush1.msra.mxu0 %v3843
  %4163 = vmatprep.subr.mxu0 0.0
  %4164 = vmatpush1.msra.mxu0 %v3845
  %4165 = vmatprep.subr.mxu0 0.0
  %4166 = vmatpush1.msra.mxu0 %v3849
  %4167 = vmatprep.subr.mxu0 0.0
  %4168 = vmatpush1.msra.mxu0 %v3851
  %4169 = vmatprep.subr.mxu0 0.0
  %4170 = vmatpush1.msra.mxu0 %v3855
  %4171 = vmatprep.subr.mxu0 0.0
  %4172 = vmatpush1.msra.mxu0 %v3857
  %4173 = vmatprep.mubr.f32.mxu0 %v3915
  %4174 = vmatmul.mubr.f32.gmra.mrb[0].mxu0 %v3914
  %v4175 = vpop.f32.mrb[0].mxu0
  %v4176 = vadd.f32 %v3992, %v4175
  %v4177 = vpop.f32.mrb[0].mxu0
  %4178 = vmatprep.mubr.f32.mxu0 %v3919
  %4179 = vmatmul.mubr.f32.gmra.mrb[0].mxu0 %v3918
  %v4180 = vpop.f32.mrb[0].mxu0
  %v4181 = vadd.f32 %v3997, %v4180
  %v4182 = vpop.f32.mrb[0].mxu0
  %4183 = vmatprep.mubr.f32.mxu0 %v3923
  %4184 = vmatmul.mubr.f32.gmra.mrb[0].mxu0 %v3922
  %v4185 = vpop.f32.mrb[0].mxu0
  %v4186 = vadd.f32 %v4002, %v4185
  %v4187 = vpop.f32.mrb[0].mxu0
  %4188 = vmatprep.mubr.f32.mxu0 %v3927
  %4189 = vmatmul.mubr.f32.gmra.mrb[0].mxu0 %v3926
  %v4190 = vpop.f32.mrb[0].mxu0
  %v4191 = vadd.f32 %v4007, %v4190
  %v4192 = vpop.f32.mrb[0].mxu0
  %4193 = vmatprep.mubr.f32.mxu0 %v3931
  %4194 = vmatmul.mubr.f32.gmra.mrb[0].mxu0 %v3930
  %v4195 = vpop.f32.mrb[0].mxu0
  %v4196 = vadd.f32 %v4012, %v4195
  %v4197 = vpop.f32.mrb[0].mxu0
  %4198 = vmatprep.mubr.f32.mxu0 %v3935
  %4199 = vmatmul.mubr.f32.gmra.mrb[0].mxu0 %v3934
  %v4200 = vpop.f32.mrb[0].mxu0
  %v4201 = vadd.f32 %v4017, %v4200
  %v4202 = vpop.f32.mrb[0].mxu0
  %4203 = vmatprep.mubr.f32.mxu0 %v3939
  %4204 = vmatmul.mubr.f32.gmra.mrb[0].mxu0 %v3938
  %v4205 = vpop.f32.mrb[0].mxu0
  %v4206 = vadd.f32 %v4022, %v4205
  %v4207 = vpop.f32.mrb[0].mxu0
  %4208 = vmatprep.mubr.f32.mxu0 %v3943
  %4209 = vmatmul.mubr.f32.gmra.mrb[0].mxu0 %v3942
  %v4210 = vpop.f32.mrb[0].mxu0
  %v4211 = vadd.f32 %v4027, %v4210
  %v4212 = vpop.f32.mrb[0].mxu0
  %4213 = vmatprep.mubr.f32.mxu0 %v3947
  %4214 = vmatmul.mubr.f32.gmra.mrb[0].mxu0 %v3946
  %v4215 = vpop.f32.mrb[0].mxu0
  %v4216 = vadd.f32 %v4032, %v4215
  %v4217 = vpop.f32.mrb[0].mxu0
  %4218 = vmatprep.mubr.f32.mxu0 %v3951
  %4219 = vmatmul.mubr.f32.gmra.mrb[0].mxu0 %v3950
  %v4220 = vpop.f32.mrb[0].mxu0
  %v4221 = vadd.f32 %v4037, %v4220
  %v4222 = vpop.f32.mrb[0].mxu0
  %4223 = vmatprep.mubr.f32.mxu0 %v3955
  %4224 = vmatmul.mubr.f32.gmra.mrb[0].mxu0 %v3954
  %v4225 = vpop.f32.mrb[0].mxu0
  %v4226 = vadd.f32 %v4042, %v4225
  %v4227 = vpop.f32.mrb[0].mxu0
  %4228 = vmatprep.mubr.f32.mxu0 %v3959
  %4229 = vmatmul.mubr.f32.gmra.mrb[0].mxu0 %v3958
  %v4230 = vpop.f32.mrb[0].mxu0
  %v4231 = vadd.f32 %v4047, %v4230
  %v4232 = vpop.f32.mrb[0].mxu0
  %4233 = vmatprep.mubr.f32.mxu0 %v3963
  %4234 = vmatmul.mubr.f32.gmra.mrb[0].mxu0 %v3962
  %v4235 = vpop.f32.mrb[0].mxu0
  %v4236 = vadd.f32 %v4052, %v4235
  %v4237 = vpop.f32.mrb[0].mxu0
  %4238 = vmatprep.mubr.f32.mxu0 %v3967
  %4239 = vmatmul.mubr.f32.gmra.mrb[0].mxu0 %v3966
  %v4240 = vpop.f32.mrb[0].mxu0
  %v4241 = vadd.f32 %v4057, %v4240
  %v4242 = vpop.f32.mrb[0].mxu0
  %4243 = vmatprep.mubr.f32.mxu0 %v3971
  %4244 = vmatmul.mubr.f32.gmra.mrb[0].mxu0 %v3970
  %v4245 = vpop.f32.mrb[0].mxu0
  %v4246 = vadd.f32 %v4062, %v4245
  %v4247 = vpop.f32.mrb[0].mxu0
  %4248 = vdwg.mxu0
  %4249 = vmatprep.subr.mxu0 0.0
  %4250 = vmatpush1.msra.mxu0 %v3861
  %4251 = vmatprep.subr.mxu0 0.0
  %4252 = vmatpush1.msra.mxu0 %v3863
  %4253 = vmatprep.subr.mxu0 0.0
  %4254 = vmatpush1.msra.mxu0 %v3865
  %4255 = vmatprep.subr.mxu0 0.0
  %4256 = vmatpush1.msra.mxu0 %v3867
  %4257 = vmatprep.subr.mxu0 0.0
  %4258 = vmatpush1.msra.mxu0 %v3869
  %4259 = vmatprep.subr.mxu0 0.0
  %4260 = vmatpush1.msra.mxu0 %v3871
  %4261 = vmatprep.subr.mxu0 0.0
  %4262 = vmatpush1.msra.mxu0 %v3873
  %4263 = vmatprep.subr.mxu0 0.0
  %4264 = vmatpush1.msra.mxu0 %v3875
  %4265 = vmatprep.subr.mxu0 0.0
  %4266 = vmatpush1.msra.mxu0 %v3877
  %4267 = vmatprep.subr.mxu0 0.0
  %4268 = vmatpush1.msra.mxu0 %v3879
  %4269 = vmatprep.subr.mxu0 0.0
  %4270 = vmatpush1.msra.mxu0 %v3881
  %4271 = vmatprep.subr.mxu0 0.0
  %4272 = vmatpush1.msra.mxu0 %v3883
  %4273 = vmatprep.subr.mxu0 0.0
  %4274 = vmatpush1.msra.mxu0 %v3885
  %4275 = vmatprep.subr.mxu0 0.0
  %4276 = vmatpush1.msra.mxu0 %v3887
  %4277 = vmatprep.subr.mxu0 0.0
  %4278 = vmatpush1.msra.mxu0 %v3889
  %4279 = vmatprep.subr.mxu0 0.0
  %4280 = vmatpush1.msra.mxu0 %v3891
  %4281 = vmatprep.subr.mxu0 0.0
  %4282 = vmatpush1.msra.mxu0 %v3893
  %4283 = vmatprep.subr.mxu0 0.0
  %4284 = vmatpush1.msra.mxu0 %v3895
  %4285 = vmatprep.subr.mxu0 0.0
  %4286 = vmatpush1.msra.mxu0 0.0
  %4287 = vmatprep.subr.mxu0 0.0
  %4288 = vmatpush1.msra.mxu0 0.0
  %4289 = vmatprep.subr.mxu0 0.0
  %4290 = vmatpush1.msra.mxu0 0.0
  %4291 = vmatprep.subr.mxu0 0.0
  %4292 = vmatpush1.msra.mxu0 0.0
  %4293 = vmatprep.subr.mxu0 0.0
  %4294 = vmatpush1.msra.mxu0 0.0
  %4295 = vmatprep.subr.mxu0 0.0
  %4296 = vmatpush1.msra.mxu0 0.0
  %4297 = vmatprep.subr.mxu0 0.0
  %4298 = vmatpush1.msra.mxu0 0.0
  %4299 = vmatprep.subr.mxu0 0.0
  %4300 = vmatpush1.msra.mxu0 0.0
  %4301 = vmatprep.subr.mxu0 0.0
  %4302 = vmatpush1.msra.mxu0 0.0
  %4303 = vmatprep.subr.mxu0 0.0
  %4304 = vmatpush1.msra.mxu0 0.0
  %4305 = vmatprep.subr.mxu0 0.0
  %4306 = vmatpush1.msra.mxu0 0.0
  %4307 = vmatprep.subr.mxu0 0.0
  %4308 = vmatpush1.msra.mxu0 0.0
  %4309 = vmatprep.subr.mxu0 0.0
  %4310 = vmatpush1.msra.mxu0 0.0
  %4311 = vmatprep.subr.mxu0 0.0
  %4312 = vmatpush1.msra.mxu0 0.0
  %4313 = vmatprep.mubr.f32.mxu0 %v4065
  %4314 = vmatmul.mubr.f32.gmra.mrb[0].mxu0 %v3916
  %v4315 = vpop.f32.mrb[0].mxu0
  %v4316 = vadd.f32 %v4176, %v4315
  %v4317 = vpop.f32.mrb[0].mxu0
  %4318 = vmatprep.mubr.f32.mxu0 %v4068
  %4319 = vmatmul.mubr.f32.gmra.mrb[0].mxu0 %v3920
  %v4320 = vpop.f32.mrb[0].mxu0
  %v4321 = vadd.f32 %v4181, %v4320
  %v4322 = vpop.f32.mrb[0].mxu0
  %4323 = vmatprep.mubr.f32.mxu0 %v4071
  %4324 = vmatmul.mubr.f32.gmra.mrb[0].mxu0 %v3924
  %v4325 = vpop.f32.mrb[0].mxu0
  %v4326 = vadd.f32 %v4186, %v4325
  %v4327 = vpop.f32.mrb[0].mxu0
  %4328 = vmatprep.mubr.f32.mxu0 %v4074
  %4329 = vmatmul.mubr.f32.gmra.mrb[0].mxu0 %v3928
  %v4330 = vpop.f32.mrb[0].mxu0
  %v4331 = vadd.f32 %v4191, %v4330
  %v4332 = vpop.f32.mrb[0].mxu0
  %4333 = vmatprep.mubr.f32.mxu0 %v4077
  %4334 = vmatmul.mubr.f32.gmra.mrb[0].mxu0 %v3932
  %v4335 = vpop.f32.mrb[0].mxu0
  %v4336 = vadd.f32 %v4196, %v4335
  %v4337 = vpop.f32.mrb[0].mxu0
  %4338 = vmatprep.mubr.f32.mxu0 %v4080
  %4339 = vmatmul.mubr.f32.gmra.mrb[0].mxu0 %v3936
  %v4340 = vpop.f32.mrb[0].mxu0
  %v4341 = vadd.f32 %v4201, %v4340
  %v4342 = vpop.f32.mrb[0].mxu0
  %4343 = vmatprep.mubr.f32.mxu0 %v4083
  %4344 = vmatmul.mubr.f32.gmra.mrb[0].mxu0 %v3940
  %v4345 = vpop.f32.mrb[0].mxu0
  %v4346 = vadd.f32 %v4206, %v4345
  %v4347 = vpop.f32.mrb[0].mxu0
  %4348 = vmatprep.mubr.f32.mxu0 %v4086
  %4349 = vmatmul.mubr.f32.gmra.mrb[0].mxu0 %v3944
  %v4350 = vpop.f32.mrb[0].mxu0
  %v4351 = vadd.f32 %v4211, %v4350
  %v4352 = vpop.f32.mrb[0].mxu0
  %4353 = vmatprep.mubr.f32.mxu0 %v4089
  %4354 = vmatmul.mubr.f32.gmra.mrb[0].mxu0 %v3948
  %v4355 = vpop.f32.mrb[0].mxu0
  %v4356 = vadd.f32 %v4216, %v4355
  %v4357 = vpop.f32.mrb[0].mxu0
  %4358 = vmatprep.mubr.f32.mxu0 %v4092
  %4359 = vmatmul.mubr.f32.gmra.mrb[0].mxu0 %v3952
  %v4360 = vpop.f32.mrb[0].mxu0
  %v4361 = vadd.f32 %v4221, %v4360
  %v4362 = vpop.f32.mrb[0].mxu0
  %4363 = vmatprep.mubr.f32.mxu0 %v4095
  %4364 = vmatmul.mubr.f32.gmra.mrb[0].mxu0 %v3956
  %v4365 = vpop.f32.mrb[0].mxu0
  %v4366 = vadd.f32 %v4226, %v4365
  %v4367 = vpop.f32.mrb[0].mxu0
  %4368 = vmatprep.mubr.f32.mxu0 %v4098
  %4369 = vmatmul.mubr.f32.gmra.mrb[0].mxu0 %v3960
  %v4370 = vpop.f32.mrb[0].mxu0
  %v4371 = vadd.f32 %v4231, %v4370
  %v4372 = vpop.f32.mrb[0].mxu0
  %4373 = vmatprep.mubr.f32.mxu0 %v4101
  %4374 = vmatmul.mubr.f32.gmra.mrb[0].mxu0 %v3964
  %v4375 = vpop.f32.mrb[0].mxu0
  %v4376 = vadd.f32 %v4236, %v4375
  %v4377 = vpop.f32.mrb[0].mxu0
  %4378 = vmatprep.mubr.f32.mxu0 %v4104
  %4379 = vmatmul.mubr.f32.gmra.mrb[0].mxu0 %v3968
  %v4380 = vpop.f32.mrb[0].mxu0
  %v4381 = vadd.f32 %v4241, %v4380
  %v4382 = vpop.f32.mrb[0].mxu0
  %4383 = vmatprep.mubr.f32.mxu0 %v4107
  %4384 = vmatmul.mubr.f32.gmra.mrb[0].mxu0 %v3972
  %v4385 = vpop.f32.mrb[0].mxu0
  %v4386 = vadd.f32 %v4246, %v4385
  %v4387 = vpop.f32.mrb[0].mxu0
  %4388 = vdwg.mxu0
  %v4389 = vmax.f32 %v4316, 0.0
  %v4390 = vmax.f32 %v4321, 0.0
  %v4391 = vmax.f32 %v4326, 0.0
  %v4392 = vmax.f32 %v4331, 0.0
  %v4393 = vmax.f32 %v4336, 0.0
  %v4394 = vmax.f32 %v4341, 0.0
  %v4395 = vmax.f32 %v4346, 0.0
  %v4396 = vmax.f32 %v4351, 0.0
  %v4397 = vmax.f32 %v4356, 0.0
  %v4398 = vmax.f32 %v4361, 0.0
  %v4399 = vmax.f32 %v4366, 0.0
  %v4400 = vmax.f32 %v4371, 0.0
  %v4401 = vmax.f32 %v4376, 0.0
  %v4402 = vmax.f32 %v4381, 0.0
  %v4403 = vmax.f32 %v4386, 0.0
  %v4404 = vld [vmem:[%s9] sm:$0xff]
  %v4405 = vld [vmem:[%s9 + $0x8] sm:$0xff]
  %v4406 = vld [vmem:[%s9 + $0x10] sm:$0xff]
  %v4407 = vld [vmem:[%s9 + $0x18] sm:$0xff]
  %v4408 = vld [vmem:[%s9 + $0x20] sm:$0xff]
  %v4409 = vld [vmem:[%s9 + $0x28] sm:$0xff]
  %v4410 = vld [vmem:[%s9 + $0x30] sm:$0xff]
  %v4411 = vld [vmem:[%s9 + $0x38] sm:$0xff]
  %v4412 = vld [vmem:[%s9 + $0x40] sm:$0xff]
  %v4413 = vld [vmem:[%s9 + $0x48] sm:$0xff]
  %v4414 = vld [vmem:[%s9 + $0x50] sm:$0xf]
  %v4415 = vld [vmem:[%s10] sm:$0xff]
  %v4416 = vld [vmem:[%s10 + $0x8] sm:$0xff]
  %v4417 = vld [vmem:[%s10 + $0x10] sm:$0xff]
  %v4418 = vld [vmem:[%s10 + $0x18] sm:$0xff]
  %v4419 = vld [vmem:[%s10 + $0x20] sm:$0xff]
  %v4420 = vld [vmem:[%s10 + $0x28] sm:$0xff]
  %v4421 = vld [vmem:[%s10 + $0x30] sm:$0xff]
  %v4422 = vld [vmem:[%s10 + $0x38] sm:$0xff]
  %v4423 = vld [vmem:[%s10 + $0x40] sm:$0xff]
  %v4424 = vld [vmem:[%s10 + $0x48] sm:$0xff]
  %v4425 = vld [vmem:[%s10 + $0x50] sm:$0xf]
  %4427 = vset.pattern.permute.xlu0 0
  %4428 = vperm.xlu0 %4427, %v4415
  %v4429 = vpop.permute.xlu0 %4428
  %4432 = vset.pattern.permute.xlu0 0
  %4433 = vperm.xlu0 %4432, %v4416
  %v4434 = vpop.permute.xlu0 %4433
  %4437 = vset.pattern.permute.xlu0 0
  %4438 = vperm.xlu0 %4437, %v4417
  %v4439 = vpop.permute.xlu0 %4438
  %4442 = vset.pattern.permute.xlu0 0
  %4443 = vperm.xlu0 %4442, %v4418
  %v4444 = vpop.permute.xlu0 %4443
  %4447 = vset.pattern.permute.xlu0 0
  %4448 = vperm.xlu0 %4447, %v4419
  %v4449 = vpop.permute.xlu0 %4448
  %4452 = vset.pattern.permute.xlu0 0
  %4453 = vperm.xlu0 %4452, %v4420
  %v4454 = vpop.permute.xlu0 %4453
  %4457 = vset.pattern.permute.xlu0 0
  %4458 = vperm.xlu0 %4457, %v4421
  %v4459 = vpop.permute.xlu0 %4458
  %4462 = vset.pattern.permute.xlu0 0
  %4463 = vperm.xlu0 %4462, %v4422
  %v4464 = vpop.permute.xlu0 %4463
  %4467 = vset.pattern.permute.xlu0 0
  %4468 = vperm.xlu0 %4467, %v4423
  %v4469 = vpop.permute.xlu0 %4468
  %4472 = vset.pattern.permute.xlu0 0
  %4473 = vperm.xlu0 %4472, %v4424
  %v4474 = vpop.permute.xlu0 %4473
  %4477 = vset.pattern.permute.xlu0 0
  %4478 = vperm.xlu0 %4477, %v4425
  %v4479 = vpop.permute.xlu0 %4478
  %vm4481 = vcmask 982016
  %v4483 = vsel %vm4481, %v4404, 0
  %v4486 = vsel %vm4481, %v4405, 0
  %v4489 = vsel %vm4481, %v4406, 0
  %v4492 = vsel %vm4481, %v4407, 0
  %v4495 = vsel %vm4481, %v4408, 0
  %v4498 = vsel %vm4481, %v4409, 0
  %v4501 = vsel %vm4481, %v4410, 0
  %v4504 = vsel %vm4481, %v4411, 0
  %v4507 = vsel %vm4481, %v4412, 0
  %v4510 = vsel %vm4481, %v4413, 0
  %v4513 = vsel %vm4481, %v4414, 0
  %4515 = vmatprep.subr.mxu0 0.0
  %4516 = vmatpush1.msra.mxu0 %v4389
  %4517 = vmatprep.subr.mxu0 0.0
  %4518 = vmatpush1.msra.mxu0 %v4390
  %4519 = vmatprep.subr.mxu0 0.0
  %4520 = vmatpush1.msra.mxu0 %v4391
  %4521 = vmatprep.subr.mxu0 0.0
  %4522 = vmatpush1.msra.mxu0 %v4392
  %4523 = vmatprep.subr.mxu0 0.0
  %4524 = vmatpush1.msra.mxu0 %v4393
  %4525 = vmatprep.subr.mxu0 0.0
  %4526 = vmatpush1.msra.mxu0 %v4394
  %4527 = vmatprep.subr.mxu0 0.0
  %4528 = vmatpush1.msra.mxu0 %v4395
  %4529 = vmatprep.subr.mxu0 0.0
  %4530 = vmatpush1.msra.mxu0 %v4396
  %4531 = vmatprep.subr.mxu0 0.0
  %4532 = vmatpush1.msra.mxu0 %v4397
  %4533 = vmatprep.subr.mxu0 0.0
  %4534 = vmatpush1.msra.mxu0 %v4398
  %4535 = vmatprep.subr.mxu0 0.0
  %4536 = vmatpush1.msra.mxu0 %v4399
  %4537 = vmatprep.subr.mxu0 0.0
  %4538 = vmatpush1.msra.mxu0 %v4400
  %4539 = vmatprep.subr.mxu0 0.0
  %4540 = vmatpush1.msra.mxu0 %v4401
  %4541 = vmatprep.subr.mxu0 0.0
  %4542 = vmatpush1.msra.mxu0 %v4402
  %4543 = vmatprep.subr.mxu0 0.0
  %4544 = vmatpush1.msra.mxu0 %v4403
  %4545 = vmatprep.subr.mxu0 0.0
  %4546 = vmatpush1.msra.mxu0 0.0
  %4547 = vmatprep.subr.mxu0 0.0
  %4548 = vmatpush1.msra.mxu0 0.0
  %4549 = vmatprep.subr.mxu0 0.0
  %4550 = vmatpush1.msra.mxu0 0.0
  %4551 = vmatprep.subr.mxu0 0.0
  %4552 = vmatpush1.msra.mxu0 0.0
  %4553 = vmatprep.subr.mxu0 0.0
  %4554 = vmatpush1.msra.mxu0 0.0
  %4555 = vmatprep.subr.mxu0 0.0
  %4556 = vmatpush1.msra.mxu0 0.0
  %4557 = vmatprep.subr.mxu0 0.0
  %4558 = vmatpush1.msra.mxu0 0.0
  %4559 = vmatprep.subr.mxu0 0.0
  %4560 = vmatpush1.msra.mxu0 0.0
  %4561 = vmatprep.subr.mxu0 0.0
  %4562 = vmatpush1.msra.mxu0 0.0
  %4563 = vmatprep.subr.mxu0 0.0
  %4564 = vmatpush1.msra.mxu0 0.0
  %4565 = vmatprep.subr.mxu0 0.0
  %4566 = vmatpush1.msra.mxu0 0.0
  %4567 = vmatprep.subr.mxu0 0.0
  %4568 = vmatpush1.msra.mxu0 0.0
  %4569 = vmatprep.subr.mxu0 0.0
  %4570 = vmatpush1.msra.mxu0 0.0
  %4571 = vmatprep.subr.mxu0 0.0
  %4572 = vmatpush1.msra.mxu0 0.0
  %4573 = vmatprep.subr.mxu0 0.0
  %4574 = vmatpush1.msra.mxu0 0.0
  %4575 = vmatprep.subr.mxu0 0.0
  %4576 = vmatpush1.msra.mxu0 0.0
  %4577 = vmatprep.subr.mxu0 0.0
  %4578 = vmatpush1.msra.mxu0 0.0
  %4579 = vmatprep.mubr.f32.mxu0 0.0
  %4580 = vmatmul.mubr.f32.gmra.mrb[0].mxu0 %v4483
  %v4581 = vpop.f32.mrb[0].mxu0
  %v4582 = vadd.f32 %v4429, %v4581
  %v4583 = vpop.f32.mrb[0].mxu0
  %4584 = vmatprep.mubr.f32.mxu0 0.0
  %4585 = vmatmul.mubr.f32.gmra.mrb[0].mxu0 %v4486
  %v4586 = vpop.f32.mrb[0].mxu0
  %v4587 = vadd.f32 %v4434, %v4586
  %v4588 = vpop.f32.mrb[0].mxu0
  %4589 = vmatprep.mubr.f32.mxu0 0.0
  %4590 = vmatmul.mubr.f32.gmra.mrb[0].mxu0 %v4489
  %v4591 = vpop.f32.mrb[0].mxu0
  %v4592 = vadd.f32 %v4439, %v4591
  %v4593 = vpop.f32.mrb[0].mxu0
  %4594 = vmatprep.mubr.f32.mxu0 0.0
  %4595 = vmatmul.mubr.f32.gmra.mrb[0].mxu0 %v4492
  %v4596 = vpop.f32.mrb[0].mxu0
  %v4597 = vadd.f32 %v4444, %v4596
  %v4598 = vpop.f32.mrb[0].mxu0
  %4599 = vmatprep.mubr.f32.mxu0 0.0
  %4600 = vmatmul.mubr.f32.gmra.mrb[0].mxu0 %v4495
  %v4601 = vpop.f32.mrb[0].mxu0
  %v4602 = vadd.f32 %v4449, %v4601
  %v4603 = vpop.f32.mrb[0].mxu0
  %4604 = vmatprep.mubr.f32.mxu0 0.0
  %4605 = vmatmul.mubr.f32.gmra.mrb[0].mxu0 %v4498
  %v4606 = vpop.f32.mrb[0].mxu0
  %v4607 = vadd.f32 %v4454, %v4606
  %v4608 = vpop.f32.mrb[0].mxu0
  %4609 = vmatprep.mubr.f32.mxu0 0.0
  %4610 = vmatmul.mubr.f32.gmra.mrb[0].mxu0 %v4501
  %v4611 = vpop.f32.mrb[0].mxu0
  %v4612 = vadd.f32 %v4459, %v4611
  %v4613 = vpop.f32.mrb[0].mxu0
  %4614 = vmatprep.mubr.f32.mxu0 0.0
  %4615 = vmatmul.mubr.f32.gmra.mrb[0].mxu0 %v4504
  %v4616 = vpop.f32.mrb[0].mxu0
  %v4617 = vadd.f32 %v4464, %v4616
  %v4618 = vpop.f32.mrb[0].mxu0
  %4619 = vmatprep.mubr.f32.mxu0 0.0
  %4620 = vmatmul.mubr.f32.gmra.mrb[0].mxu0 %v4507
  %v4621 = vpop.f32.mrb[0].mxu0
  %v4622 = vadd.f32 %v4469, %v4621
  %v4623 = vpop.f32.mrb[0].mxu0
  %4624 = vmatprep.mubr.f32.mxu0 0.0
  %4625 = vmatmul.mubr.f32.gmra.mrb[0].mxu0 %v4510
  %v4626 = vpop.f32.mrb[0].mxu0
  %v4627 = vadd.f32 %v4474, %v4626
  %v4628 = vpop.f32.mrb[0].mxu0
  %4629 = vmatprep.mubr.f32.mxu0 0.0
  %4630 = vmatmul.mubr.f32.gmra.mrb[0].mxu0 %v4513
  %v4631 = vpop.f32.mrb[0].mxu0
  %v4632 = vadd.f32 %v4479, %v4631
  %v4633 = vpop.f32.mrb[0].mxu0
  %4634 = vdwg.mxu0
  %v4635 = vmax.f32 %v4582, 0.0
  %v4636 = vmax.f32 %v4587, 0.0
  %v4637 = vmax.f32 %v4592, 0.0
  %v4638 = vmax.f32 %v4597, 0.0
  %v4639 = vmax.f32 %v4602, 0.0
  %v4640 = vmax.f32 %v4607, 0.0
  %v4641 = vmax.f32 %v4612, 0.0
  %v4642 = vmax.f32 %v4617, 0.0
  %v4643 = vmax.f32 %v4622, 0.0
  %v4644 = vmax.f32 %v4627, 0.0
  %v4645 = vmax.f32 %v4632, 0.0
  %v4646 = vld [vmem:[%s11] sm:$0xff]
  %v4647 = vld [vmem:[%s11 + $0x8] sm:$0x3]
  %v4648 = vld [vmem:[%s12] sm:$0xff]
  %v4649 = vld [vmem:[%s12 + $0x8] sm:$0x3]
  %4651 = vset.pattern.permute.xlu0 0
  %4652 = vperm.xlu0 %4651, %v4648
  %v4653 = vpop.permute.xlu0 %4652
  %4656 = vset.pattern.permute.xlu0 0
  %4657 = vperm.xlu0 %4656, %v4649
  %v4658 = vpop.permute.xlu0 %4657
  %v4661 = vsel %vm3035, %v4646, 0
  %v4664 = vsel %vm3035, %v4647, 0
  %v4667 = vsel %vm3689, %v4645, 0
  %4669 = vmatprep.subr.mxu0 0.0
  %4670 = vmatpush1.msra.mxu0 %v4635
  %4671 = vmatprep.subr.mxu0 0.0
  %4672 = vmatpush1.msra.mxu0 %v4636
  %4673 = vmatprep.subr.mxu0 0.0
  %4674 = vmatpush1.msra.mxu0 %v4637
  %4675 = vmatprep.subr.mxu0 0.0
  %4676 = vmatpush1.msra.mxu0 %v4638
  %4677 = vmatprep.subr.mxu0 0.0
  %4678 = vmatpush1.msra.mxu0 %v4639
  %4679 = vmatprep.subr.mxu0 0.0
  %4680 = vmatpush1.msra.mxu0 %v4640
  %4681 = vmatprep.subr.mxu0 0.0
  %4682 = vmatpush1.msra.mxu0 %v4641
  %4683 = vmatprep.subr.mxu0 0.0
  %4684 = vmatpush1.msra.mxu0 %v4642
  %4685 = vmatprep.subr.mxu0 0.0
  %4686 = vmatpush1.msra.mxu0 %v4643
  %4687 = vmatprep.subr.mxu0 0.0
  %4688 = vmatpush1.msra.mxu0 %v4644
  %4689 = vmatprep.subr.mxu0 0.0
  %4690 = vmatpush1.msra.mxu0 %v4667
  %4691 = vmatprep.subr.mxu0 0.0
  %4692 = vmatpush1.msra.mxu0 0.0
  %4693 = vmatprep.subr.mxu0 0.0
  %4694 = vmatpush1.msra.mxu0 0.0
  %4695 = vmatprep.subr.mxu0 0.0
  %4696 = vmatpush1.msra.mxu0 0.0
  %4697 = vmatprep.subr.mxu0 0.0
  %4698 = vmatpush1.msra.mxu0 0.0
  %4699 = vmatprep.subr.mxu0 0.0
  %4700 = vmatpush1.msra.mxu0 0.0
  %4701 = vmatprep.subr.mxu0 0.0
  %4702 = vmatpush1.msra.mxu0 0.0
  %4703 = vmatprep.subr.mxu0 0.0
  %4704 = vmatpush1.msra.mxu0 0.0
  %4705 = vmatprep.subr.mxu0 0.0
  %4706 = vmatpush1.msra.mxu0 0.0
  %4707 = vmatprep.subr.mxu0 0.0
  %4708 = vmatpush1.msra.mxu0 0.0
  %4709 = vmatprep.subr.mxu0 0.0
  %4710 = vmatpush1.msra.mxu0 0.0
  %4711 = vmatprep.subr.mxu0 0.0
  %4712 = vmatpush1.msra.mxu0 0.0
  %4713 = vmatprep.subr.mxu0 0.0
  %4714 = vmatpush1.msra.mxu0 0.0
  %4715 = vmatprep.subr.mxu0 0.0
  %4716 = vmatpush1.msra.mxu0 0.0
  %4717 = vmatprep.subr.mxu0 0.0
  %4718 = vmatpush1.msra.mxu0 0.0
  %4719 = vmatprep.subr.mxu0 0.0
  %4720 = vmatpush1.msra.mxu0 0.0
  %4721 = vmatprep.subr.mxu0 0.0
  %4722 = vmatpush1.msra.mxu0 0.0
  %4723 = vmatprep.subr.mxu0 0.0
  %4724 = vmatpush1.msra.mxu0 0.0
  %4725 = vmatprep.subr.mxu0 0.0
  %4726 = vmatpush1.msra.mxu0 0.0
  %4727 = vmatprep.subr.mxu0 0.0
  %4728 = vmatpush1.msra.mxu0 0.0
  %4729 = vmatprep.subr.mxu0 0.0
  %4730 = vmatpush1.msra.mxu0 0.0
  %4731 = vmatprep.subr.mxu0 0.0
  %4732 = vmatpush1.msra.mxu0 0.0
  %4733 = vmatprep.mubr.f32.mxu0 0.0
  %4734 = vmatmul.mubr.f32.gmra.mrb[0].mxu0 %v4661
  %v4735 = vpop.f32.mrb[0].mxu0
  %v4736 = vadd.f32 %v4653, %v4735
  %v4737 = vpop.f32.mrb[0].mxu0
  %4738 = vmatprep.mubr.f32.mxu0 0.0
  %4739 = vmatmul.mubr.f32.gmra.mrb[0].mxu0 %v4664
  %v4740 = vpop.f32.mrb[0].mxu0
  %v4741 = vadd.f32 %v4658, %v4740
  %v4742 = vpop.f32.mrb[0].mxu0
  %4743 = vdwg.mxu0
  %vm4744 = vcmask 15360
  %4745 = vst.msk [vmem:[%s13] sm:$0xff] %vm4744, %v4736
  %vm4746 = vcmask 9216
  %4747 = vst.msk [vmem:[%s13 + $0x8] sm:$0x3] %vm4746, %v4741
  // Predicated region
  $region54: #{lenet_forward.1} parent=0 // pred_check
    _
  $region55: #{lenet_forward.1} parent=0 // pred_check_branch
    %4749 = sbr.rel (0) target = $region57
  $region56: #{lenet_forward.1} parent=0 // pred_region
    _
  $region57: #{lenet_forward.1} parent=0 // pred_fallthru
    _
  // Predicated region
  $region58: #{lenet_forward.1} parent=0 // pred_check
    _
  $region59: #{lenet_forward.1} parent=0 // pred_check_branch
    %4751 = sbr.rel (0) target = $region61
  $region60: #{lenet_forward.1} parent=0 // pred_region
    _
  $region61: #{lenet_forward.1} parent=0 // pred_fallthru
    _

</llo_original>
